<compile_context>
chip_gen: v7x
topology: tpu7x:2x2x1
jax: 0.10.0
libtpu: 0.0.40
codegen_flags: <defaults>
</compile_context>

<pallas_src>
import jax
import jax.numpy as jnp
from jax.experimental import pallas as pl
from jax.experimental.pallas import tpu as pltpu

# ---- small, synthetic hyper-parameters (same topology as mixer_b16_224) ----
PATCH = 16
IMG = 64                      # -> S = (64/16)^2 = 16 tokens
IN_CH = 3
DIM = 128                     # hidden dim       (B/16 uses 768)
TOKENS_MLP = 64               # tokens MLP dim   (B/16 uses 384)
CHANNELS_MLP = 256            # channels MLP dim (B/16 uses 3072)
NUM_BLOCKS = 2                # mixer blocks     (B/16 uses 12)
ENC_CLASSES = 1000            # encoder head -> "embedding" is 1000-d
ENC_PAD = 1024                # lane-dense padding of the 1000-wide head
NUM_CLASSES_END = 2
OUT_PAD = 128                 # lane-dense padding of the 2-wide classifier
LN_EPS = 1e-6
_GELU_C = 0.7978845608028654  # sqrt(2/pi)

S_TOKENS = (IMG // PATCH) ** 2
PATCH_DIM = IN_CH * PATCH * PATCH


def _gelu(x):
    # TODO(synk): torch nn.GELU() defaults to the exact erf form; the tanh
    # approximation is used since erf lowering in Mosaic is not guaranteed.
    return 0.5 * x * (1.0 + jnp.tanh(_GELU_C * (x + 0.044715 * x * x * x)))


def _layernorm(x, g, b):
    mu = jnp.mean(x, axis=-1, keepdims=True)
    var = jnp.mean((x - mu) ** 2, axis=-1, keepdims=True)
    return (x - mu) * jax.lax.rsqrt(var + LN_EPS) * g + b


def mixer_kernel(patches_ref, wp_ref, bp_ref,
                 ln1g_ref, ln1b_ref, tw1_ref, tb1_ref, tw2_ref, tb2_ref,
                 ln2g_ref, ln2b_ref, cw1_ref, cb1_ref, cw2_ref, cb2_ref,
                 lnfg_ref, lnfb_ref, hw_ref, hb_ref, clsw_ref, clsb_ref,
                 emb_ref, out_ref):
    BB, S, P = patches_ref.shape          # samples in this grid block, tokens, patch dim
    D = wp_ref.shape[1]

    # ---- patch embedding: one [BB*S, P] @ [P, D] bf16 matmul, f32 accum ----
    x = patches_ref[...].reshape(BB * S, P)                                   # bf16
    h = jnp.dot(x, wp_ref[...], preferred_element_type=jnp.float32) + bp_ref[...]  # [BB*S, D] f32

    # TODO(synk): at NUM_BLOCKS=12 / real scale, replace this static unroll +
    # resident weights with a streamed layer grid axis (or lax.fori_loop over
    # stacked weight refs) to bound live ranges and VMEM.
    for l in range(NUM_BLOCKS):           # static unroll (NUM_BLOCKS small)
        # -------- token mixing: weight-on-the-left, no transposes --------
        # tw1 stored [T, S], tw2 stored [S, T]; y stays in [BB, S, D] layout.
        # Outputs are lane-dense in D=128 -> no XLU relayouts, no vst.msk.
        y = _layernorm(h, ln1g_ref[l], ln1b_ref[l]).astype(jnp.bfloat16)      # [BB*S, D]
        y3 = y.reshape(BB, S, D)                                              # layout no-op
        w1 = jnp.broadcast_to(tw1_ref[l], (BB, TOKENS_MLP, S))                # [BB, T, S] bf16 (tiny)
        u = jnp.einsum('bts,bsd->btd', w1, y3,
                       preferred_element_type=jnp.float32)                    # [BB, T, D] f32
        u = _gelu(u + tb1_ref[l]).astype(jnp.bfloat16)                        # bias per-t: [T, 1]
        w2 = jnp.broadcast_to(tw2_ref[l], (BB, S, TOKENS_MLP))                # [BB, S, T]
        v = jnp.einsum('bst,btd->bsd', w2, u,
                       preferred_element_type=jnp.float32)                    # [BB, S, D] f32
        v = v + tb2_ref[l]                                                    # bias per-s: [S, 1]
        h = h + v.reshape(BB * S, D)

        # -------- channel mixing (single [BB*S, D] slab) --------
        y = _layernorm(h, ln2g_ref[l], ln2b_ref[l]).astype(jnp.bfloat16)      # [BB*S, D]
        u = jnp.dot(y, cw1_ref[l],
                    preferred_element_type=jnp.float32) + cb1_ref[l]          # [BB*S, C]
        u = _gelu(u).astype(jnp.bfloat16)
        v = jnp.dot(u, cw2_ref[l],
                    preferred_element_type=jnp.float32) + cb2_ref[l]          # [BB*S, D]
        h = h + v

    # ---- final norm, mean pool over tokens, padded encoder head ----
    h = _layernorm(h, lnfg_ref[...], lnfb_ref[...])                           # [BB*S, D] f32
    pooled = jnp.mean(h.reshape(BB, S, D), axis=1)                            # [BB, D]
    emb = jnp.dot(pooled.astype(jnp.bfloat16), hw_ref[...],
                  preferred_element_type=jnp.float32) + hb_ref[...]           # [BB, ENC_PAD]
    emb_ref[...] = emb.reshape(emb_ref.shape).astype(emb_ref.dtype)           # lane-dense store

    # ---- dropout(p=0.1) is identity at inference; GELU; Linear(1000->2 padded) ----
    # Padding invariant: hw/hb columns 1000..1023 and clsw rows 1000..1023 are
    # exactly zero, so padded lanes stay 0 (gelu(0)=0) and contribute nothing.
    z = _gelu(emb).astype(jnp.bfloat16)
    logits = jnp.dot(z, clsw_ref[...],
                     preferred_element_type=jnp.float32) + clsb_ref[...]      # [BB, OUT_PAD]
    out_ref[...] = logits.reshape(out_ref.shape).astype(out_ref.dtype)


def extract_patches(x):
    """NCHW image -> [B, S, C*P*P] patches (Conv2d(stride=patch) ordering)."""
    B, C, H, W = x.shape
    gh, gw = H // PATCH, W // PATCH
    x = x.reshape(B, C, gh, PATCH, gw, PATCH)
    x = x.transpose(0, 2, 4, 1, 3, 5)            # [B, gh, gw, C, p, p]
    return x.reshape(B, gh * gw, C * PATCH * PATCH)


def init_params(key):
    """Deterministic synthetic parameters (module __init__ defines shapes).

    Matmul weights are stored in bf16 (MXU-native); biases / LayerNorm params
    stay f32.  Token-MLP weights are stored pre-transposed for the
    weight-on-the-left form (tw1:[NB,T,S], tw2:[NB,S,T]) with per-row biases
    (tb1:[NB,T,1], tb2:[NB,S,1]).  Encoder head / classifier are zero-padded
    to 1024 / 128 columns (padded entries MUST stay exactly zero).
    """
    keys = jax.random.split(key, 8)

    def nrm(k, shape, scale=0.02):
        return (scale * jax.random.normal(k, shape)).astype(jnp.float32)

    wp = nrm(keys[0], (PATCH_DIM, DIM)).astype(jnp.bfloat16)
    bp = jnp.zeros((1, DIM), jnp.float32)
    ln1g = jnp.ones((NUM_BLOCKS, 1, DIM), jnp.float32)
    ln1b = jnp.zeros((NUM_BLOCKS, 1, DIM), jnp.float32)
    tw1 = nrm(keys[1], (NUM_BLOCKS, TOKENS_MLP, S_TOKENS)).astype(jnp.bfloat16)   # [NB, T, S]
    tb1 = jnp.zeros((NUM_BLOCKS, TOKENS_MLP, 1), jnp.float32)
    tw2 = nrm(keys[2], (NUM_BLOCKS, S_TOKENS, TOKENS_MLP)).astype(jnp.bfloat16)   # [NB, S, T]
    tb2 = jnp.zeros((NUM_BLOCKS, S_TOKENS, 1), jnp.float32)
    ln2g = jnp.ones((NUM_BLOCKS, 1, DIM), jnp.float32)
    ln2b = jnp.zeros((NUM_BLOCKS, 1, DIM), jnp.float32)
    cw1 = nrm(keys[3], (NUM_BLOCKS, DIM, CHANNELS_MLP)).astype(jnp.bfloat16)
    cb1 = jnp.zeros((NUM_BLOCKS, 1, CHANNELS_MLP), jnp.float32)
    cw2 = nrm(keys[4], (NUM_BLOCKS, CHANNELS_MLP, DIM)).astype(jnp.bfloat16)
    cb2 = jnp.zeros((NUM_BLOCKS, 1, DIM), jnp.float32)
    lnfg = jnp.ones((1, DIM), jnp.float32)
    lnfb = jnp.zeros((1, DIM), jnp.float32)
    # encoder head: zero-pad 1000 -> 1024 columns (padded cols contribute 0)
    hw = jnp.pad(nrm(keys[5], (DIM, ENC_CLASSES)),
                 ((0, 0), (0, ENC_PAD - ENC_CLASSES))).astype(jnp.bfloat16)
    hb = jnp.zeros((1, ENC_PAD), jnp.float32)
    # classifier Linear(1000, 2): zero-pad rows 1000->1024 and cols 2->128
    clsw = jnp.pad(nrm(keys[6], (ENC_CLASSES, NUM_CLASSES_END)),
                   ((0, ENC_PAD - ENC_CLASSES),
                    (0, OUT_PAD - NUM_CLASSES_END))).astype(jnp.bfloat16)
    clsb = jnp.zeros((1, OUT_PAD), jnp.float32)
    return (wp, bp, ln1g, ln1b, tw1, tb1, tw2, tb2, ln2g, ln2b,
            cw1, cb1, cw2, cb2, lnfg, lnfb, hw, hb, clsw, clsb)


def _full_spec(arr):
    """Whole-array block, constant index_map -> stays resident across grid.

    TODO(synk): at real scale, single-buffer these resident weights
    (pipeline_mode=pl.Buffered(1)) or stream them per layer; omitted at toy
    size to keep lowering maximally portable.
    """
    nd = arr.ndim
    return pl.BlockSpec(arr.shape, lambda i, _nd=nd: (0,) * _nd)


def _num_batch_blocks(batch):
    """Grid blocks along the batch.

    v5e/v6e have a single TensorCore: splitting the batch just serializes the
    grid (~0.35 us/step) and halves matmul M.  Split only when the chip has
    2 TCs (v7x) AND the per-block row count stays MXU-friendly (>= 256 rows).
    """
    if batch < 2 or batch % 2 != 0:
        return 1
    if (batch // 2) * S_TOKENS < 256:
        return 1
    try:
        kind = jax.devices()[0].device_kind.lower()
    except Exception:
        return 1
    return 2 if ("v7" in kind or "tpu7" in kind) else 1


@jax.jit
def mlp_mixer_forward(x, params):
    B = x.shape[0]
    # Cast to bf16 BEFORE the patch-extraction transpose: halves the HBM
    # traffic of the XLA transpose that feeds the kernel.
    patches = extract_patches(x.astype(jnp.bfloat16))           # [B, S, P] bf16

    nb = _num_batch_blocks(B)
    bb = B // nb

    in_specs = [pl.BlockSpec((bb, S_TOKENS, PATCH_DIM), lambda i: (i, 0, 0))]
    in_specs += [_full_spec(p) for p in params]

    out_shapes = (jax.ShapeDtypeStruct((nb, bb, ENC_PAD), jnp.float32),
                  jax.ShapeDtypeStruct((nb, bb, OUT_PAD), jnp.float32))
    out_specs = (pl.BlockSpec((1, bb, ENC_PAD), lambda i: (i, 0, 0)),
                 pl.BlockSpec((1, bb, OUT_PAD), lambda i: (i, 0, 0)))

    emb_p, out_p = pl.pallas_call(
        mixer_kernel,
        out_shape=out_shapes,
        grid=(nb,),
        in_specs=in_specs,
        out_specs=out_specs,
        compiler_params=pltpu.CompilerParams(
            dimension_semantics=("parallel",),
            vmem_limit_bytes=64 * 1024 * 1024),
    )(patches, *params)

    embedding = emb_p.reshape(B, ENC_PAD)[:, :ENC_CLASSES]      # slice off padding
    logits = out_p.reshape(B, OUT_PAD)[:, :NUM_CLASSES_END]
    return embedding, logits


if __name__ == "__main__":
    key = jax.random.PRNGKey(0)
    kx, kp = jax.random.split(key)
    x = jax.random.normal(kx, (2, IN_CH, IMG, IMG), dtype=jnp.float32)
    params = init_params(kp)
    embedding, logits = mlp_mixer_forward(x, params)
    jax.block_until_ready((embedding, logits))
    assert embedding.shape == (2, ENC_CLASSES)
    assert logits.shape == (2, NUM_CLASSES_END)
    assert bool(jnp.all(jnp.isfinite(embedding))) and bool(jnp.all(jnp.isfinite(logits)))
    print("KERNEL_OK")
</pallas_src>

<mosaic_0001>
module attributes {stable_mosaic.version = 11 : i64} {
  func.func @mixer_kernel(%arg0: i32, %arg1: memref<2x16x768xbf16, #tpu.memory_space<vmem>>, %arg2: memref<768x128xbf16, #tpu.memory_space<vmem>>, %arg3: memref<1x128xf32, #tpu.memory_space<vmem>>, %arg4: memref<2x1x128xf32, #tpu.memory_space<vmem>>, %arg5: memref<2x1x128xf32, #tpu.memory_space<vmem>>, %arg6: memref<2x64x16xbf16, #tpu.memory_space<vmem>>, %arg7: memref<2x64x1xf32, #tpu.memory_space<vmem>>, %arg8: memref<2x16x64xbf16, #tpu.memory_space<vmem>>, %arg9: memref<2x16x1xf32, #tpu.memory_space<vmem>>, %arg10: memref<2x1x128xf32, #tpu.memory_space<vmem>>, %arg11: memref<2x1x128xf32, #tpu.memory_space<vmem>>, %arg12: memref<2x128x256xbf16, #tpu.memory_space<vmem>>, %arg13: memref<2x1x256xf32, #tpu.memory_space<vmem>>, %arg14: memref<2x256x128xbf16, #tpu.memory_space<vmem>>, %arg15: memref<2x1x128xf32, #tpu.memory_space<vmem>>, %arg16: memref<1x128xf32, #tpu.memory_space<vmem>>, %arg17: memref<1x128xf32, #tpu.memory_space<vmem>>, %arg18: memref<128x1024xbf16, #tpu.memory_space<vmem>>, %arg19: memref<1x1024xf32, #tpu.memory_space<vmem>>, %arg20: memref<1024x128xbf16, #tpu.memory_space<vmem>>, %arg21: memref<1x128xf32, #tpu.memory_space<vmem>>, %arg22: memref<1x2x1024xf32, #tpu.memory_space<vmem>>, %arg23: memref<1x2x128xf32, #tpu.memory_space<vmem>>) attributes {dimension_semantics = [#tpu.dimension_semantics<parallel>], iteration_bounds = array<i64: 1>, scalar_prefetch = 0 : i64, scratch_operands = 0 : i64, tpu.core_type = #tpu.core_type<tc>, window_params = [{transform_indices = @transform_0, window_bounds = array<i64: 2, 16, 768>}, {pipeline_mode = #tpu.pipeline_mode<synchronous>, transform_indices = @transform_1, window_bounds = array<i64: 768, 128>}, {pipeline_mode = #tpu.pipeline_mode<synchronous>, transform_indices = @transform_2, window_bounds = array<i64: 1, 128>}, {pipeline_mode = #tpu.pipeline_mode<synchronous>, transform_indices = @transform_3, window_bounds = array<i64: 2, 1, 128>}, {pipeline_mode = #tpu.pipeline_mode<synchronous>, transform_indices = @transform_4, window_bounds = array<i64: 2, 1, 128>}, {pipeline_mode = #tpu.pipeline_mode<synchronous>, transform_indices = @transform_5, window_bounds = array<i64: 2, 64, 16>}, {pipeline_mode = #tpu.pipeline_mode<synchronous>, transform_indices = @transform_6, window_bounds = array<i64: 2, 64, 1>}, {pipeline_mode = #tpu.pipeline_mode<synchronous>, transform_indices = @transform_7, window_bounds = array<i64: 2, 16, 64>}, {pipeline_mode = #tpu.pipeline_mode<synchronous>, transform_indices = @transform_8, window_bounds = array<i64: 2, 16, 1>}, {pipeline_mode = #tpu.pipeline_mode<synchronous>, transform_indices = @transform_9, window_bounds = array<i64: 2, 1, 128>}, {pipeline_mode = #tpu.pipeline_mode<synchronous>, transform_indices = @transform_10, window_bounds = array<i64: 2, 1, 128>}, {pipeline_mode = #tpu.pipeline_mode<synchronous>, transform_indices = @transform_11, window_bounds = array<i64: 2, 128, 256>}, {pipeline_mode = #tpu.pipeline_mode<synchronous>, transform_indices = @transform_12, window_bounds = array<i64: 2, 1, 256>}, {pipeline_mode = #tpu.pipeline_mode<synchronous>, transform_indices = @transform_13, window_bounds = array<i64: 2, 256, 128>}, {pipeline_mode = #tpu.pipeline_mode<synchronous>, transform_indices = @transform_14, window_bounds = array<i64: 2, 1, 128>}, {pipeline_mode = #tpu.pipeline_mode<synchronous>, transform_indices = @transform_15, window_bounds = array<i64: 1, 128>}, {pipeline_mode = #tpu.pipeline_mode<synchronous>, transform_indices = @transform_16, window_bounds = array<i64: 1, 128>}, {pipeline_mode = #tpu.pipeline_mode<synchronous>, transform_indices = @transform_17, window_bounds = array<i64: 128, 1024>}, {pipeline_mode = #tpu.pipeline_mode<synchronous>, transform_indices = @transform_18, window_bounds = array<i64: 1, 1024>}, {pipeline_mode = #tpu.pipeline_mode<synchronous>, transform_indices = @transform_19, window_bounds = array<i64: 1024, 128>}, {pipeline_mode = #tpu.pipeline_mode<synchronous>, transform_indices = @transform_20, window_bounds = array<i64: 1, 128>}, {transform_indices = @transform_21, window_bounds = array<i64: 1, 2, 1024>}, {transform_indices = @transform_22, window_bounds = array<i64: 1, 2, 128>}]} {
    %c0 = arith.constant 0 : index
    %c0_0 = arith.constant 0 : index
    %c0_1 = arith.constant 0 : index
    %0 = vector.load %arg1[%c0, %c0_0, %c0_1] : memref<2x16x768xbf16, #tpu.memory_space<vmem>>, vector<2x16x768xbf16>
    %1 = vector.shape_cast %0 : vector<2x16x768xbf16> to vector<32x768xbf16>
    %c0_2 = arith.constant 0 : index
    %c0_3 = arith.constant 0 : index
    %2 = vector.load %arg2[%c0_2, %c0_3] : memref<768x128xbf16, #tpu.memory_space<vmem>>, vector<768x128xbf16>
    %cst = arith.constant dense<0.000000e+00> : vector<32x128xf32>
    %3 = tpu.matmul %1, %2, %cst {dimension_numbers = #tpu.dot_dimension_numbers<[1], [0], [0], [1], [0, 0, 1, 1], [], []>} : vector<32x768xbf16>, vector<768x128xbf16>, vector<32x128xf32> -> vector<32x128xf32>
    %c0_4 = arith.constant 0 : index
    %c0_5 = arith.constant 0 : index
    %4 = vector.load %arg3[%c0_4, %c0_5] : memref<1x128xf32, #tpu.memory_space<vmem>>, vector<1x128xf32>
    %5 = vector.broadcast %4 : vector<1x128xf32> to vector<32x128xf32>
    %6 = arith.addf %3, %5 : vector<32x128xf32>
    %c0_6 = arith.constant 0 : index
    %c0_7 = arith.constant 0 : index
    %c0_8 = arith.constant 0 : index
    %7 = vector.load %arg4[%c0_6, %c0_7, %c0_8] : memref<2x1x128xf32, #tpu.memory_space<vmem>>, vector<1x1x128xf32>
    %8 = vector.shape_cast %7 : vector<1x1x128xf32> to vector<1x128xf32>
    %c0_9 = arith.constant 0 : index
    %c0_10 = arith.constant 0 : index
    %c0_11 = arith.constant 0 : index
    %9 = vector.load %arg5[%c0_9, %c0_10, %c0_11] : memref<2x1x128xf32, #tpu.memory_space<vmem>>, vector<1x1x128xf32>
    %10 = vector.shape_cast %9 : vector<1x1x128xf32> to vector<1x128xf32>
    %cst_12 = arith.constant dense<0.000000e+00> : vector<32xf32>
    %11 = vector.multi_reduction <add>, %6, %cst_12 [1] : vector<32x128xf32> to vector<32xf32>
    %12 = vector.shape_cast %11 : vector<32xf32> to vector<32x1xf32>
    %cst_13 = arith.constant 1.280000e+02 : f32
    %13 = vector.broadcast %cst_13 : f32 to vector<32x1xf32>
    %14 = arith.divf %12, %13 : vector<32x1xf32>
    %15 = vector.broadcast %14 : vector<32x1xf32> to vector<32x128xf32>
    %16 = arith.subf %6, %15 : vector<32x128xf32>
    %17 = arith.mulf %16, %16 : vector<32x128xf32>
    %cst_14 = arith.constant dense<0.000000e+00> : vector<32xf32>
    %18 = vector.multi_reduction <add>, %17, %cst_14 [1] : vector<32x128xf32> to vector<32xf32>
    %19 = vector.shape_cast %18 : vector<32xf32> to vector<32x1xf32>
    %cst_15 = arith.constant 1.280000e+02 : f32
    %20 = vector.broadcast %cst_15 : f32 to vector<32x1xf32>
    %21 = arith.divf %19, %20 : vector<32x1xf32>
    %22 = vector.broadcast %14 : vector<32x1xf32> to vector<32x128xf32>
    %23 = arith.subf %6, %22 : vector<32x128xf32>
    %cst_16 = arith.constant 9.99999997E-7 : f32
    %24 = vector.broadcast %cst_16 : f32 to vector<32x1xf32>
    %25 = arith.addf %21, %24 : vector<32x1xf32>
    %26 = math.rsqrt %25 : vector<32x1xf32>
    %27 = vector.broadcast %26 : vector<32x1xf32> to vector<32x128xf32>
    %28 = arith.mulf %23, %27 : vector<32x128xf32>
    %29 = vector.broadcast %8 : vector<1x128xf32> to vector<32x128xf32>
    %30 = arith.mulf %28, %29 : vector<32x128xf32>
    %31 = vector.broadcast %10 : vector<1x128xf32> to vector<32x128xf32>
    %32 = arith.addf %30, %31 : vector<32x128xf32>
    %33 = arith.truncf %32 : vector<32x128xf32> to vector<32x128xbf16>
    %34 = vector.shape_cast %33 : vector<32x128xbf16> to vector<2x16x128xbf16>
    %c0_17 = arith.constant 0 : index
    %c0_18 = arith.constant 0 : index
    %c0_19 = arith.constant 0 : index
    %35 = vector.load %arg6[%c0_17, %c0_18, %c0_19] : memref<2x64x16xbf16, #tpu.memory_space<vmem>>, vector<1x64x16xbf16>
    %36 = vector.shape_cast %35 : vector<1x64x16xbf16> to vector<64x16xbf16>
    %37 = vector.shape_cast %36 : vector<64x16xbf16> to vector<1x64x16xbf16>
    %38 = vector.broadcast %37 : vector<1x64x16xbf16> to vector<2x64x16xbf16>
    "tpu.trace_start"() <{level = 10 : i32, message = "bts,bsd->btd"}> : () -> ()
    %cst_20 = arith.constant dense<0.000000e+00> : vector<2x64x128xf32>
    %39 = tpu.matmul %38, %34, %cst_20 {dimension_numbers = #tpu.dot_dimension_numbers<[2], [1], [1], [2], [0, 0, 0, 1, 1, 2], [0], [0]>} : vector<2x64x16xbf16>, vector<2x16x128xbf16>, vector<2x64x128xf32> -> vector<2x64x128xf32>
    "tpu.trace_stop"() : () -> ()
    %c0_21 = arith.constant 0 : index
    %c0_22 = arith.constant 0 : index
    %c0_23 = arith.constant 0 : index
    %40 = vector.load %arg7[%c0_21, %c0_22, %c0_23] : memref<2x64x1xf32, #tpu.memory_space<vmem>>, vector<1x64x1xf32>
    %41 = vector.shape_cast %40 : vector<1x64x1xf32> to vector<64x1xf32>
    %42 = vector.shape_cast %41 : vector<64x1xf32> to vector<1x64x1xf32>
    %43 = vector.broadcast %42 : vector<1x64x1xf32> to vector<2x64x128xf32>
    %44 = arith.addf %39, %43 : vector<2x64x128xf32>
    %cst_24 = arith.constant 5.000000e-01 : f32
    %45 = vector.broadcast %cst_24 : f32 to vector<2x64x128xf32>
    %46 = arith.mulf %45, %44 : vector<2x64x128xf32>
    %cst_25 = arith.constant 4.471500e-02 : f32
    %47 = vector.broadcast %cst_25 : f32 to vector<2x64x128xf32>
    %48 = arith.mulf %47, %44 : vector<2x64x128xf32>
    %49 = arith.mulf %48, %44 : vector<2x64x128xf32>
    %50 = arith.mulf %49, %44 : vector<2x64x128xf32>
    %51 = arith.addf %44, %50 : vector<2x64x128xf32>
    %cst_26 = arith.constant 0.797884583 : f32
    %52 = vector.broadcast %cst_26 : f32 to vector<2x64x128xf32>
    %53 = arith.mulf %52, %51 : vector<2x64x128xf32>
    %54 = math.tanh %53 : vector<2x64x128xf32>
    %cst_27 = arith.constant 1.000000e+00 : f32
    %55 = vector.broadcast %cst_27 : f32 to vector<2x64x128xf32>
    %56 = arith.addf %55, %54 : vector<2x64x128xf32>
    %57 = arith.mulf %46, %56 : vector<2x64x128xf32>
    %58 = arith.truncf %57 : vector<2x64x128xf32> to vector<2x64x128xbf16>
    %c0_28 = arith.constant 0 : index
    %c0_29 = arith.constant 0 : index
    %c0_30 = arith.constant 0 : index
    %59 = vector.load %arg8[%c0_28, %c0_29, %c0_30] : memref<2x16x64xbf16, #tpu.memory_space<vmem>>, vector<1x16x64xbf16>
    %60 = vector.shape_cast %59 : vector<1x16x64xbf16> to vector<16x64xbf16>
    %61 = vector.shape_cast %60 : vector<16x64xbf16> to vector<1x16x64xbf16>
    %62 = vector.broadcast %61 : vector<1x16x64xbf16> to vector<2x16x64xbf16>
    "tpu.trace_start"() <{level = 10 : i32, message = "bst,btd->bsd"}> : () -> ()
    %cst_31 = arith.constant dense<0.000000e+00> : vector<2x16x128xf32>
    %63 = tpu.matmul %62, %58, %cst_31 {dimension_numbers = #tpu.dot_dimension_numbers<[2], [1], [1], [2], [0, 0, 0, 1, 1, 2], [0], [0]>} : vector<2x16x64xbf16>, vector<2x64x128xbf16>, vector<2x16x128xf32> -> vector<2x16x128xf32>
    "tpu.trace_stop"() : () -> ()
    %c0_32 = arith.constant 0 : index
    %c0_33 = arith.constant 0 : index
    %c0_34 = arith.constant 0 : index
    %64 = vector.load %arg9[%c0_32, %c0_33, %c0_34] : memref<2x16x1xf32, #tpu.memory_space<vmem>>, vector<1x16x1xf32>
    %65 = vector.shape_cast %64 : vector<1x16x1xf32> to vector<16x1xf32>
    %66 = vector.shape_cast %65 : vector<16x1xf32> to vector<1x16x1xf32>
    %67 = vector.broadcast %66 : vector<1x16x1xf32> to vector<2x16x128xf32>
    %68 = arith.addf %63, %67 : vector<2x16x128xf32>
    %69 = vector.shape_cast %68 : vector<2x16x128xf32> to vector<32x128xf32>
    %70 = arith.addf %6, %69 : vector<32x128xf32>
    %c0_35 = arith.constant 0 : index
    %c0_36 = arith.constant 0 : index
    %c0_37 = arith.constant 0 : index
    %71 = vector.load %arg10[%c0_35, %c0_36, %c0_37] : memref<2x1x128xf32, #tpu.memory_space<vmem>>, vector<1x1x128xf32>
    %72 = vector.shape_cast %71 : vector<1x1x128xf32> to vector<1x128xf32>
    %c0_38 = arith.constant 0 : index
    %c0_39 = arith.constant 0 : index
    %c0_40 = arith.constant 0 : index
    %73 = vector.load %arg11[%c0_38, %c0_39, %c0_40] : memref<2x1x128xf32, #tpu.memory_space<vmem>>, vector<1x1x128xf32>
    %74 = vector.shape_cast %73 : vector<1x1x128xf32> to vector<1x128xf32>
    %cst_41 = arith.constant dense<0.000000e+00> : vector<32xf32>
    %75 = vector.multi_reduction <add>, %70, %cst_41 [1] : vector<32x128xf32> to vector<32xf32>
    %76 = vector.shape_cast %75 : vector<32xf32> to vector<32x1xf32>
    %cst_42 = arith.constant 1.280000e+02 : f32
    %77 = vector.broadcast %cst_42 : f32 to vector<32x1xf32>
    %78 = arith.divf %76, %77 : vector<32x1xf32>
    %79 = vector.broadcast %78 : vector<32x1xf32> to vector<32x128xf32>
    %80 = arith.subf %70, %79 : vector<32x128xf32>
    %81 = arith.mulf %80, %80 : vector<32x128xf32>
    %cst_43 = arith.constant dense<0.000000e+00> : vector<32xf32>
    %82 = vector.multi_reduction <add>, %81, %cst_43 [1] : vector<32x128xf32> to vector<32xf32>
    %83 = vector.shape_cast %82 : vector<32xf32> to vector<32x1xf32>
    %cst_44 = arith.constant 1.280000e+02 : f32
    %84 = vector.broadcast %cst_44 : f32 to vector<32x1xf32>
    %85 = arith.divf %83, %84 : vector<32x1xf32>
    %86 = vector.broadcast %78 : vector<32x1xf32> to vector<32x128xf32>
    %87 = arith.subf %70, %86 : vector<32x128xf32>
    %cst_45 = arith.constant 9.99999997E-7 : f32
    %88 = vector.broadcast %cst_45 : f32 to vector<32x1xf32>
    %89 = arith.addf %85, %88 : vector<32x1xf32>
    %90 = math.rsqrt %89 : vector<32x1xf32>
    %91 = vector.broadcast %90 : vector<32x1xf32> to vector<32x128xf32>
    %92 = arith.mulf %87, %91 : vector<32x128xf32>
    %93 = vector.broadcast %72 : vector<1x128xf32> to vector<32x128xf32>
    %94 = arith.mulf %92, %93 : vector<32x128xf32>
    %95 = vector.broadcast %74 : vector<1x128xf32> to vector<32x128xf32>
    %96 = arith.addf %94, %95 : vector<32x128xf32>
    %97 = arith.truncf %96 : vector<32x128xf32> to vector<32x128xbf16>
    %c0_46 = arith.constant 0 : index
    %c0_47 = arith.constant 0 : index
    %c0_48 = arith.constant 0 : index
    %98 = vector.load %arg12[%c0_46, %c0_47, %c0_48] : memref<2x128x256xbf16, #tpu.memory_space<vmem>>, vector<1x128x256xbf16>
    %99 = vector.shape_cast %98 : vector<1x128x256xbf16> to vector<128x256xbf16>
    %cst_49 = arith.constant dense<0.000000e+00> : vector<32x256xf32>
    %100 = tpu.matmul %97, %99, %cst_49 {dimension_numbers = #tpu.dot_dimension_numbers<[1], [0], [0], [1], [0, 0, 1, 1], [], []>} : vector<32x128xbf16>, vector<128x256xbf16>, vector<32x256xf32> -> vector<32x256xf32>
    %c0_50 = arith.constant 0 : index
    %c0_51 = arith.constant 0 : index
    %c0_52 = arith.constant 0 : index
    %101 = vector.load %arg13[%c0_50, %c0_51, %c0_52] : memref<2x1x256xf32, #tpu.memory_space<vmem>>, vector<1x1x256xf32>
    %102 = vector.shape_cast %101 : vector<1x1x256xf32> to vector<1x256xf32>
    %103 = vector.broadcast %102 : vector<1x256xf32> to vector<32x256xf32>
    %104 = arith.addf %100, %103 : vector<32x256xf32>
    %cst_53 = arith.constant 5.000000e-01 : f32
    %105 = vector.broadcast %cst_53 : f32 to vector<32x256xf32>
    %106 = arith.mulf %105, %104 : vector<32x256xf32>
    %cst_54 = arith.constant 4.471500e-02 : f32
    %107 = vector.broadcast %cst_54 : f32 to vector<32x256xf32>
    %108 = arith.mulf %107, %104 : vector<32x256xf32>
    %109 = arith.mulf %108, %104 : vector<32x256xf32>
    %110 = arith.mulf %109, %104 : vector<32x256xf32>
    %111 = arith.addf %104, %110 : vector<32x256xf32>
    %cst_55 = arith.constant 0.797884583 : f32
    %112 = vector.broadcast %cst_55 : f32 to vector<32x256xf32>
    %113 = arith.mulf %112, %111 : vector<32x256xf32>
    %114 = math.tanh %113 : vector<32x256xf32>
    %cst_56 = arith.constant 1.000000e+00 : f32
    %115 = vector.broadcast %cst_56 : f32 to vector<32x256xf32>
    %116 = arith.addf %115, %114 : vector<32x256xf32>
    %117 = arith.mulf %106, %116 : vector<32x256xf32>
    %118 = arith.truncf %117 : vector<32x256xf32> to vector<32x256xbf16>
    %c0_57 = arith.constant 0 : index
    %c0_58 = arith.constant 0 : index
    %c0_59 = arith.constant 0 : index
    %119 = vector.load %arg14[%c0_57, %c0_58, %c0_59] : memref<2x256x128xbf16, #tpu.memory_space<vmem>>, vector<1x256x128xbf16>
    %120 = vector.shape_cast %119 : vector<1x256x128xbf16> to vector<256x128xbf16>
    %cst_60 = arith.constant dense<0.000000e+00> : vector<32x128xf32>
    %121 = tpu.matmul %118, %120, %cst_60 {dimension_numbers = #tpu.dot_dimension_numbers<[1], [0], [0], [1], [0, 0, 1, 1], [], []>} : vector<32x256xbf16>, vector<256x128xbf16>, vector<32x128xf32> -> vector<32x128xf32>
    %c0_61 = arith.constant 0 : index
    %c0_62 = arith.constant 0 : index
    %c0_63 = arith.constant 0 : index
    %122 = vector.load %arg15[%c0_61, %c0_62, %c0_63] : memref<2x1x128xf32, #tpu.memory_space<vmem>>, vector<1x1x128xf32>
    %123 = vector.shape_cast %122 : vector<1x1x128xf32> to vector<1x128xf32>
    %124 = vector.broadcast %123 : vector<1x128xf32> to vector<32x128xf32>
    %125 = arith.addf %121, %124 : vector<32x128xf32>
    %126 = arith.addf %70, %125 : vector<32x128xf32>
    %c1 = arith.constant 1 : index
    %c0_64 = arith.constant 0 : index
    %c0_65 = arith.constant 0 : index
    %127 = vector.load %arg4[%c1, %c0_64, %c0_65] : memref<2x1x128xf32, #tpu.memory_space<vmem>>, vector<1x1x128xf32>
    %128 = vector.shape_cast %127 : vector<1x1x128xf32> to vector<1x128xf32>
    %c1_66 = arith.constant 1 : index
    %c0_67 = arith.constant 0 : index
    %c0_68 = arith.constant 0 : index
    %129 = vector.load %arg5[%c1_66, %c0_67, %c0_68] : memref<2x1x128xf32, #tpu.memory_space<vmem>>, vector<1x1x128xf32>
    %130 = vector.shape_cast %129 : vector<1x1x128xf32> to vector<1x128xf32>
    %cst_69 = arith.constant dense<0.000000e+00> : vector<32xf32>
    %131 = vector.multi_reduction <add>, %126, %cst_69 [1] : vector<32x128xf32> to vector<32xf32>
    %132 = vector.shape_cast %131 : vector<32xf32> to vector<32x1xf32>
    %cst_70 = arith.constant 1.280000e+02 : f32
    %133 = vector.broadcast %cst_70 : f32 to vector<32x1xf32>
    %134 = arith.divf %132, %133 : vector<32x1xf32>
    %135 = vector.broadcast %134 : vector<32x1xf32> to vector<32x128xf32>
    %136 = arith.subf %126, %135 : vector<32x128xf32>
    %137 = arith.mulf %136, %136 : vector<32x128xf32>
    %cst_71 = arith.constant dense<0.000000e+00> : vector<32xf32>
    %138 = vector.multi_reduction <add>, %137, %cst_71 [1] : vector<32x128xf32> to vector<32xf32>
    %139 = vector.shape_cast %138 : vector<32xf32> to vector<32x1xf32>
    %cst_72 = arith.constant 1.280000e+02 : f32
    %140 = vector.broadcast %cst_72 : f32 to vector<32x1xf32>
    %141 = arith.divf %139, %140 : vector<32x1xf32>
    %142 = vector.broadcast %134 : vector<32x1xf32> to vector<32x128xf32>
    %143 = arith.subf %126, %142 : vector<32x128xf32>
    %cst_73 = arith.constant 9.99999997E-7 : f32
    %144 = vector.broadcast %cst_73 : f32 to vector<32x1xf32>
    %145 = arith.addf %141, %144 : vector<32x1xf32>
    %146 = math.rsqrt %145 : vector<32x1xf32>
    %147 = vector.broadcast %146 : vector<32x1xf32> to vector<32x128xf32>
    %148 = arith.mulf %143, %147 : vector<32x128xf32>
    %149 = vector.broadcast %128 : vector<1x128xf32> to vector<32x128xf32>
    %150 = arith.mulf %148, %149 : vector<32x128xf32>
    %151 = vector.broadcast %130 : vector<1x128xf32> to vector<32x128xf32>
    %152 = arith.addf %150, %151 : vector<32x128xf32>
    %153 = arith.truncf %152 : vector<32x128xf32> to vector<32x128xbf16>
    %154 = vector.shape_cast %153 : vector<32x128xbf16> to vector<2x16x128xbf16>
    %c1_74 = arith.constant 1 : index
    %c0_75 = arith.constant 0 : index
    %c0_76 = arith.constant 0 : index
    %155 = vector.load %arg6[%c1_74, %c0_75, %c0_76] : memref<2x64x16xbf16, #tpu.memory_space<vmem>>, vector<1x64x16xbf16>
    %156 = vector.shape_cast %155 : vector<1x64x16xbf16> to vector<64x16xbf16>
    %157 = vector.shape_cast %156 : vector<64x16xbf16> to vector<1x64x16xbf16>
    %158 = vector.broadcast %157 : vector<1x64x16xbf16> to vector<2x64x16xbf16>
    "tpu.trace_start"() <{level = 10 : i32, message = "bts,bsd->btd"}> : () -> ()
    %cst_77 = arith.constant dense<0.000000e+00> : vector<2x64x128xf32>
    %159 = tpu.matmul %158, %154, %cst_77 {dimension_numbers = #tpu.dot_dimension_numbers<[2], [1], [1], [2], [0, 0, 0, 1, 1, 2], [0], [0]>} : vector<2x64x16xbf16>, vector<2x16x128xbf16>, vector<2x64x128xf32> -> vector<2x64x128xf32>
    "tpu.trace_stop"() : () -> ()
    %c1_78 = arith.constant 1 : index
    %c0_79 = arith.constant 0 : index
    %c0_80 = arith.constant 0 : index
    %160 = vector.load %arg7[%c1_78, %c0_79, %c0_80] : memref<2x64x1xf32, #tpu.memory_space<vmem>>, vector<1x64x1xf32>
    %161 = vector.shape_cast %160 : vector<1x64x1xf32> to vector<64x1xf32>
    %162 = vector.shape_cast %161 : vector<64x1xf32> to vector<1x64x1xf32>
    %163 = vector.broadcast %162 : vector<1x64x1xf32> to vector<2x64x128xf32>
    %164 = arith.addf %159, %163 : vector<2x64x128xf32>
    %cst_81 = arith.constant 5.000000e-01 : f32
    %165 = vector.broadcast %cst_81 : f32 to vector<2x64x128xf32>
    %166 = arith.mulf %165, %164 : vector<2x64x128xf32>
    %cst_82 = arith.constant 4.471500e-02 : f32
    %167 = vector.broadcast %cst_82 : f32 to vector<2x64x128xf32>
    %168 = arith.mulf %167, %164 : vector<2x64x128xf32>
    %169 = arith.mulf %168, %164 : vector<2x64x128xf32>
    %170 = arith.mulf %169, %164 : vector<2x64x128xf32>
    %171 = arith.addf %164, %170 : vector<2x64x128xf32>
    %cst_83 = arith.constant 0.797884583 : f32
    %172 = vector.broadcast %cst_83 : f32 to vector<2x64x128xf32>
    %173 = arith.mulf %172, %171 : vector<2x64x128xf32>
    %174 = math.tanh %173 : vector<2x64x128xf32>
    %cst_84 = arith.constant 1.000000e+00 : f32
    %175 = vector.broadcast %cst_84 : f32 to vector<2x64x128xf32>
    %176 = arith.addf %175, %174 : vector<2x64x128xf32>
    %177 = arith.mulf %166, %176 : vector<2x64x128xf32>
    %178 = arith.truncf %177 : vector<2x64x128xf32> to vector<2x64x128xbf16>
    %c1_85 = arith.constant 1 : index
    %c0_86 = arith.constant 0 : index
    %c0_87 = arith.constant 0 : index
    %179 = vector.load %arg8[%c1_85, %c0_86, %c0_87] : memref<2x16x64xbf16, #tpu.memory_space<vmem>>, vector<1x16x64xbf16>
    %180 = vector.shape_cast %179 : vector<1x16x64xbf16> to vector<16x64xbf16>
    %181 = vector.shape_cast %180 : vector<16x64xbf16> to vector<1x16x64xbf16>
    %182 = vector.broadcast %181 : vector<1x16x64xbf16> to vector<2x16x64xbf16>
    "tpu.trace_start"() <{level = 10 : i32, message = "bst,btd->bsd"}> : () -> ()
    %cst_88 = arith.constant dense<0.000000e+00> : vector<2x16x128xf32>
    %183 = tpu.matmul %182, %178, %cst_88 {dimension_numbers = #tpu.dot_dimension_numbers<[2], [1], [1], [2], [0, 0, 0, 1, 1, 2], [0], [0]>} : vector<2x16x64xbf16>, vector<2x64x128xbf16>, vector<2x16x128xf32> -> vector<2x16x128xf32>
    "tpu.trace_stop"() : () -> ()
    %c1_89 = arith.constant 1 : index
    %c0_90 = arith.constant 0 : index
    %c0_91 = arith.constant 0 : index
    %184 = vector.load %arg9[%c1_89, %c0_90, %c0_91] : memref<2x16x1xf32, #tpu.memory_space<vmem>>, vector<1x16x1xf32>
    %185 = vector.shape_cast %184 : vector<1x16x1xf32> to vector<16x1xf32>
    %186 = vector.shape_cast %185 : vector<16x1xf32> to vector<1x16x1xf32>
    %187 = vector.broadcast %186 : vector<1x16x1xf32> to vector<2x16x128xf32>
    %188 = arith.addf %183, %187 : vector<2x16x128xf32>
    %189 = vector.shape_cast %188 : vector<2x16x128xf32> to vector<32x128xf32>
    %190 = arith.addf %126, %189 : vector<32x128xf32>
    %c1_92 = arith.constant 1 : index
    %c0_93 = arith.constant 0 : index
    %c0_94 = arith.constant 0 : index
    %191 = vector.load %arg10[%c1_92, %c0_93, %c0_94] : memref<2x1x128xf32, #tpu.memory_space<vmem>>, vector<1x1x128xf32>
    %192 = vector.shape_cast %191 : vector<1x1x128xf32> to vector<1x128xf32>
    %c1_95 = arith.constant 1 : index
    %c0_96 = arith.constant 0 : index
    %c0_97 = arith.constant 0 : index
    %193 = vector.load %arg11[%c1_95, %c0_96, %c0_97] : memref<2x1x128xf32, #tpu.memory_space<vmem>>, vector<1x1x128xf32>
    %194 = vector.shape_cast %193 : vector<1x1x128xf32> to vector<1x128xf32>
    %cst_98 = arith.constant dense<0.000000e+00> : vector<32xf32>
    %195 = vector.multi_reduction <add>, %190, %cst_98 [1] : vector<32x128xf32> to vector<32xf32>
    %196 = vector.shape_cast %195 : vector<32xf32> to vector<32x1xf32>
    %cst_99 = arith.constant 1.280000e+02 : f32
    %197 = vector.broadcast %cst_99 : f32 to vector<32x1xf32>
    %198 = arith.divf %196, %197 : vector<32x1xf32>
    %199 = vector.broadcast %198 : vector<32x1xf32> to vector<32x128xf32>
    %200 = arith.subf %190, %199 : vector<32x128xf32>
    %201 = arith.mulf %200, %200 : vector<32x128xf32>
    %cst_100 = arith.constant dense<0.000000e+00> : vector<32xf32>
    %202 = vector.multi_reduction <add>, %201, %cst_100 [1] : vector<32x128xf32> to vector<32xf32>
    %203 = vector.shape_cast %202 : vector<32xf32> to vector<32x1xf32>
    %cst_101 = arith.constant 1.280000e+02 : f32
    %204 = vector.broadcast %cst_101 : f32 to vector<32x1xf32>
    %205 = arith.divf %203, %204 : vector<32x1xf32>
    %206 = vector.broadcast %198 : vector<32x1xf32> to vector<32x128xf32>
    %207 = arith.subf %190, %206 : vector<32x128xf32>
    %cst_102 = arith.constant 9.99999997E-7 : f32
    %208 = vector.broadcast %cst_102 : f32 to vector<32x1xf32>
    %209 = arith.addf %205, %208 : vector<32x1xf32>
    %210 = math.rsqrt %209 : vector<32x1xf32>
    %211 = vector.broadcast %210 : vector<32x1xf32> to vector<32x128xf32>
    %212 = arith.mulf %207, %211 : vector<32x128xf32>
    %213 = vector.broadcast %192 : vector<1x128xf32> to vector<32x128xf32>
    %214 = arith.mulf %212, %213 : vector<32x128xf32>
    %215 = vector.broadcast %194 : vector<1x128xf32> to vector<32x128xf32>
    %216 = arith.addf %214, %215 : vector<32x128xf32>
    %217 = arith.truncf %216 : vector<32x128xf32> to vector<32x128xbf16>
    %c1_103 = arith.constant 1 : index
    %c0_104 = arith.constant 0 : index
    %c0_105 = arith.constant 0 : index
    %218 = vector.load %arg12[%c1_103, %c0_104, %c0_105] : memref<2x128x256xbf16, #tpu.memory_space<vmem>>, vector<1x128x256xbf16>
    %219 = vector.shape_cast %218 : vector<1x128x256xbf16> to vector<128x256xbf16>
    %cst_106 = arith.constant dense<0.000000e+00> : vector<32x256xf32>
    %220 = tpu.matmul %217, %219, %cst_106 {dimension_numbers = #tpu.dot_dimension_numbers<[1], [0], [0], [1], [0, 0, 1, 1], [], []>} : vector<32x128xbf16>, vector<128x256xbf16>, vector<32x256xf32> -> vector<32x256xf32>
    %c1_107 = arith.constant 1 : index
    %c0_108 = arith.constant 0 : index
    %c0_109 = arith.constant 0 : index
    %221 = vector.load %arg13[%c1_107, %c0_108, %c0_109] : memref<2x1x256xf32, #tpu.memory_space<vmem>>, vector<1x1x256xf32>
    %222 = vector.shape_cast %221 : vector<1x1x256xf32> to vector<1x256xf32>
    %223 = vector.broadcast %222 : vector<1x256xf32> to vector<32x256xf32>
    %224 = arith.addf %220, %223 : vector<32x256xf32>
    %cst_110 = arith.constant 5.000000e-01 : f32
    %225 = vector.broadcast %cst_110 : f32 to vector<32x256xf32>
    %226 = arith.mulf %225, %224 : vector<32x256xf32>
    %cst_111 = arith.constant 4.471500e-02 : f32
    %227 = vector.broadcast %cst_111 : f32 to vector<32x256xf32>
    %228 = arith.mulf %227, %224 : vector<32x256xf32>
    %229 = arith.mulf %228, %224 : vector<32x256xf32>
    %230 = arith.mulf %229, %224 : vector<32x256xf32>
    %231 = arith.addf %224, %230 : vector<32x256xf32>
    %cst_112 = arith.constant 0.797884583 : f32
    %232 = vector.broadcast %cst_112 : f32 to vector<32x256xf32>
    %233 = arith.mulf %232, %231 : vector<32x256xf32>
    %234 = math.tanh %233 : vector<32x256xf32>
    %cst_113 = arith.constant 1.000000e+00 : f32
    %235 = vector.broadcast %cst_113 : f32 to vector<32x256xf32>
    %236 = arith.addf %235, %234 : vector<32x256xf32>
    %237 = arith.mulf %226, %236 : vector<32x256xf32>
    %238 = arith.truncf %237 : vector<32x256xf32> to vector<32x256xbf16>
    %c1_114 = arith.constant 1 : index
    %c0_115 = arith.constant 0 : index
    %c0_116 = arith.constant 0 : index
    %239 = vector.load %arg14[%c1_114, %c0_115, %c0_116] : memref<2x256x128xbf16, #tpu.memory_space<vmem>>, vector<1x256x128xbf16>
    %240 = vector.shape_cast %239 : vector<1x256x128xbf16> to vector<256x128xbf16>
    %cst_117 = arith.constant dense<0.000000e+00> : vector<32x128xf32>
    %241 = tpu.matmul %238, %240, %cst_117 {dimension_numbers = #tpu.dot_dimension_numbers<[1], [0], [0], [1], [0, 0, 1, 1], [], []>} : vector<32x256xbf16>, vector<256x128xbf16>, vector<32x128xf32> -> vector<32x128xf32>
    %c1_118 = arith.constant 1 : index
    %c0_119 = arith.constant 0 : index
    %c0_120 = arith.constant 0 : index
    %242 = vector.load %arg15[%c1_118, %c0_119, %c0_120] : memref<2x1x128xf32, #tpu.memory_space<vmem>>, vector<1x1x128xf32>
    %243 = vector.shape_cast %242 : vector<1x1x128xf32> to vector<1x128xf32>
    %244 = vector.broadcast %243 : vector<1x128xf32> to vector<32x128xf32>
    %245 = arith.addf %241, %244 : vector<32x128xf32>
    %246 = arith.addf %190, %245 : vector<32x128xf32>
    %c0_121 = arith.constant 0 : index
    %c0_122 = arith.constant 0 : index
    %247 = vector.load %arg16[%c0_121, %c0_122] : memref<1x128xf32, #tpu.memory_space<vmem>>, vector<1x128xf32>
    %c0_123 = arith.constant 0 : index
    %c0_124 = arith.constant 0 : index
    %248 = vector.load %arg17[%c0_123, %c0_124] : memref<1x128xf32, #tpu.memory_space<vmem>>, vector<1x128xf32>
    %cst_125 = arith.constant dense<0.000000e+00> : vector<32xf32>
    %249 = vector.multi_reduction <add>, %246, %cst_125 [1] : vector<32x128xf32> to vector<32xf32>
    %250 = vector.shape_cast %249 : vector<32xf32> to vector<32x1xf32>
    %cst_126 = arith.constant 1.280000e+02 : f32
    %251 = vector.broadcast %cst_126 : f32 to vector<32x1xf32>
    %252 = arith.divf %250, %251 : vector<32x1xf32>
    %253 = vector.broadcast %252 : vector<32x1xf32> to vector<32x128xf32>
    %254 = arith.subf %246, %253 : vector<32x128xf32>
    %255 = arith.mulf %254, %254 : vector<32x128xf32>
    %cst_127 = arith.constant dense<0.000000e+00> : vector<32xf32>
    %256 = vector.multi_reduction <add>, %255, %cst_127 [1] : vector<32x128xf32> to vector<32xf32>
    %257 = vector.shape_cast %256 : vector<32xf32> to vector<32x1xf32>
    %cst_128 = arith.constant 1.280000e+02 : f32
    %258 = vector.broadcast %cst_128 : f32 to vector<32x1xf32>
    %259 = arith.divf %257, %258 : vector<32x1xf32>
    %260 = vector.broadcast %252 : vector<32x1xf32> to vector<32x128xf32>
    %261 = arith.subf %246, %260 : vector<32x128xf32>
    %cst_129 = arith.constant 9.99999997E-7 : f32
    %262 = vector.broadcast %cst_129 : f32 to vector<32x1xf32>
    %263 = arith.addf %259, %262 : vector<32x1xf32>
    %264 = math.rsqrt %263 : vector<32x1xf32>
    %265 = vector.broadcast %264 : vector<32x1xf32> to vector<32x128xf32>
    %266 = arith.mulf %261, %265 : vector<32x128xf32>
    %267 = vector.broadcast %247 : vector<1x128xf32> to vector<32x128xf32>
    %268 = arith.mulf %266, %267 : vector<32x128xf32>
    %269 = vector.broadcast %248 : vector<1x128xf32> to vector<32x128xf32>
    %270 = arith.addf %268, %269 : vector<32x128xf32>
    %271 = vector.shape_cast %270 : vector<32x128xf32> to vector<2x16x128xf32>
    %cst_130 = arith.constant dense<0.000000e+00> : vector<2x128xf32>
    %272 = vector.multi_reduction <add>, %271, %cst_130 [1] : vector<2x16x128xf32> to vector<2x128xf32>
    %cst_131 = arith.constant 1.600000e+01 : f32
    %273 = vector.broadcast %cst_131 : f32 to vector<2x128xf32>
    %274 = arith.divf %272, %273 : vector<2x128xf32>
    %275 = arith.truncf %274 : vector<2x128xf32> to vector<2x128xbf16>
    %c0_132 = arith.constant 0 : index
    %c0_133 = arith.constant 0 : index
    %276 = vector.load %arg18[%c0_132, %c0_133] : memref<128x1024xbf16, #tpu.memory_space<vmem>>, vector<128x1024xbf16>
    %cst_134 = arith.constant dense<0.000000e+00> : vector<2x1024xf32>
    %277 = tpu.matmul %275, %276, %cst_134 {dimension_numbers = #tpu.dot_dimension_numbers<[1], [0], [0], [1], [0, 0, 1, 1], [], []>} : vector<2x128xbf16>, vector<128x1024xbf16>, vector<2x1024xf32> -> vector<2x1024xf32>
    %c0_135 = arith.constant 0 : index
    %c0_136 = arith.constant 0 : index
    %278 = vector.load %arg19[%c0_135, %c0_136] : memref<1x1024xf32, #tpu.memory_space<vmem>>, vector<1x1024xf32>
    %279 = vector.broadcast %278 : vector<1x1024xf32> to vector<2x1024xf32>
    %280 = arith.addf %277, %279 : vector<2x1024xf32>
    %281 = vector.shape_cast %280 : vector<2x1024xf32> to vector<1x2x1024xf32>
    %c0_137 = arith.constant 0 : index
    %c0_138 = arith.constant 0 : index
    %c0_139 = arith.constant 0 : index
    %282 = vector.load %arg22[%c0_137, %c0_138, %c0_139] : memref<1x2x1024xf32, #tpu.memory_space<vmem>>, vector<1x2x1024xf32>
    tpu.vector_store %arg22[%c0_137, %c0_138, %c0_139], %281 {strides = array<i32>} : memref<1x2x1024xf32, #tpu.memory_space<vmem>>, vector<1x2x1024xf32>,
    %cst_140 = arith.constant 5.000000e-01 : f32
    %283 = vector.broadcast %cst_140 : f32 to vector<2x1024xf32>
    %284 = arith.mulf %283, %280 : vector<2x1024xf32>
    %cst_141 = arith.constant 4.471500e-02 : f32
    %285 = vector.broadcast %cst_141 : f32 to vector<2x1024xf32>
    %286 = arith.mulf %285, %280 : vector<2x1024xf32>
    %287 = arith.mulf %286, %280 : vector<2x1024xf32>
    %288 = arith.mulf %287, %280 : vector<2x1024xf32>
    %289 = arith.addf %280, %288 : vector<2x1024xf32>
    %cst_142 = arith.constant 0.797884583 : f32
    %290 = vector.broadcast %cst_142 : f32 to vector<2x1024xf32>
    %291 = arith.mulf %290, %289 : vector<2x1024xf32>
    %292 = math.tanh %291 : vector<2x1024xf32>
    %cst_143 = arith.constant 1.000000e+00 : f32
    %293 = vector.broadcast %cst_143 : f32 to vector<2x1024xf32>
    %294 = arith.addf %293, %292 : vector<2x1024xf32>
    %295 = arith.mulf %284, %294 : vector<2x1024xf32>
    %296 = arith.truncf %295 : vector<2x1024xf32> to vector<2x1024xbf16>
    %c0_144 = arith.constant 0 : index
    %c0_145 = arith.constant 0 : index
    %297 = vector.load %arg20[%c0_144, %c0_145] : memref<1024x128xbf16, #tpu.memory_space<vmem>>, vector<1024x128xbf16>
    %cst_146 = arith.constant dense<0.000000e+00> : vector<2x128xf32>
    %298 = tpu.matmul %296, %297, %cst_146 {dimension_numbers = #tpu.dot_dimension_numbers<[1], [0], [0], [1], [0, 0, 1, 1], [], []>} : vector<2x1024xbf16>, vector<1024x128xbf16>, vector<2x128xf32> -> vector<2x128xf32>
    %c0_147 = arith.constant 0 : index
    %c0_148 = arith.constant 0 : index
    %299 = vector.load %arg21[%c0_147, %c0_148] : memref<1x128xf32, #tpu.memory_space<vmem>>, vector<1x128xf32>
    %300 = vector.broadcast %299 : vector<1x128xf32> to vector<2x128xf32>
    %301 = arith.addf %298, %300 : vector<2x128xf32>
    %302 = vector.shape_cast %301 : vector<2x128xf32> to vector<1x2x128xf32>
    %c0_149 = arith.constant 0 : index
    %c0_150 = arith.constant 0 : index
    %c0_151 = arith.constant 0 : index
    %303 = vector.load %arg23[%c0_149, %c0_150, %c0_151] : memref<1x2x128xf32, #tpu.memory_space<vmem>>, vector<1x2x128xf32>
    tpu.vector_store %arg23[%c0_149, %c0_150, %c0_151], %302 {strides = array<i32>} : memref<1x2x128xf32, #tpu.memory_space<vmem>>, vector<1x2x128xf32>,
    return
  }
  func.func @transform_0(%arg0: i32) -> (i32, i32, i32) {
    %c0_i32 = arith.constant 0 : i32
    %c0_i32_0 = arith.constant 0 : i32
    %c0_i32_1 = arith.constant 0 : i32
    return %arg0, %c0_i32, %c0_i32_0 : i32, i32, i32
  }
  func.func @transform_1(%arg0: i32) -> (i32, i32) {
    %c0_i32 = arith.constant 0 : i32
    %c0_i32_0 = arith.constant 0 : i32
    %c0_i32_1 = arith.constant 0 : i32
    return %c0_i32, %c0_i32_0 : i32, i32
  }
  func.func @transform_2(%arg0: i32) -> (i32, i32) {
    %c0_i32 = arith.constant 0 : i32
    %c0_i32_0 = arith.constant 0 : i32
    %c0_i32_1 = arith.constant 0 : i32
    return %c0_i32, %c0_i32_0 : i32, i32
  }
  func.func @transform_3(%arg0: i32) -> (i32, i32, i32) {
    %c0_i32 = arith.constant 0 : i32
    %c0_i32_0 = arith.constant 0 : i32
    %c0_i32_1 = arith.constant 0 : i32
    %c0_i32_2 = arith.constant 0 : i32
    return %c0_i32, %c0_i32_0, %c0_i32_1 : i32, i32, i32
  }
  func.func @transform_4(%arg0: i32) -> (i32, i32, i32) {
    %c0_i32 = arith.constant 0 : i32
    %c0_i32_0 = arith.constant 0 : i32
    %c0_i32_1 = arith.constant 0 : i32
    %c0_i32_2 = arith.constant 0 : i32
    return %c0_i32, %c0_i32_0, %c0_i32_1 : i32, i32, i32
  }
  func.func @transform_5(%arg0: i32) -> (i32, i32, i32) {
    %c0_i32 = arith.constant 0 : i32
    %c0_i32_0 = arith.constant 0 : i32
    %c0_i32_1 = arith.constant 0 : i32
    %c0_i32_2 = arith.constant 0 : i32
    return %c0_i32, %c0_i32_0, %c0_i32_1 : i32, i32, i32
  }
  func.func @transform_6(%arg0: i32) -> (i32, i32, i32) {
    %c0_i32 = arith.constant 0 : i32
    %c0_i32_0 = arith.constant 0 : i32
    %c0_i32_1 = arith.constant 0 : i32
    %c0_i32_2 = arith.constant 0 : i32
    return %c0_i32, %c0_i32_0, %c0_i32_1 : i32, i32, i32
  }
  func.func @transform_7(%arg0: i32) -> (i32, i32, i32) {
    %c0_i32 = arith.constant 0 : i32
    %c0_i32_0 = arith.constant 0 : i32
    %c0_i32_1 = arith.constant 0 : i32
    %c0_i32_2 = arith.constant 0 : i32
    return %c0_i32, %c0_i32_0, %c0_i32_1 : i32, i32, i32
  }
  func.func @transform_8(%arg0: i32) -> (i32, i32, i32) {
    %c0_i32 = arith.constant 0 : i32
    %c0_i32_0 = arith.constant 0 : i32
    %c0_i32_1 = arith.constant 0 : i32
    %c0_i32_2 = arith.constant 0 : i32
    return %c0_i32, %c0_i32_0, %c0_i32_1 : i32, i32, i32
  }
  func.func @transform_9(%arg0: i32) -> (i32, i32, i32) {
    %c0_i32 = arith.constant 0 : i32
    %c0_i32_0 = arith.constant 0 : i32
    %c0_i32_1 = arith.constant 0 : i32
    %c0_i32_2 = arith.constant 0 : i32
    return %c0_i32, %c0_i32_0, %c0_i32_1 : i32, i32, i32
  }
  func.func @transform_10(%arg0: i32) -> (i32, i32, i32) {
    %c0_i32 = arith.constant 0 : i32
    %c0_i32_0 = arith.constant 0 : i32
    %c0_i32_1 = arith.constant 0 : i32
    %c0_i32_2 = arith.constant 0 : i32
    return %c0_i32, %c0_i32_0, %c0_i32_1 : i32, i32, i32
  }
  func.func @transform_11(%arg0: i32) -> (i32, i32, i32) {
    %c0_i32 = arith.constant 0 : i32
    %c0_i32_0 = arith.constant 0 : i32
    %c0_i32_1 = arith.constant 0 : i32
    %c0_i32_2 = arith.constant 0 : i32
    return %c0_i32, %c0_i32_0, %c0_i32_1 : i32, i32, i32
  }
  func.func @transform_12(%arg0: i32) -> (i32, i32, i32) {
    %c0_i32 = arith.constant 0 : i32
    %c0_i32_0 = arith.constant 0 : i32
    %c0_i32_1 = arith.constant 0 : i32
    %c0_i32_2 = arith.constant 0 : i32
    return %c0_i32, %c0_i32_0, %c0_i32_1 : i32, i32, i32
  }
  func.func @transform_13(%arg0: i32) -> (i32, i32, i32) {
    %c0_i32 = arith.constant 0 : i32
    %c0_i32_0 = arith.constant 0 : i32
    %c0_i32_1 = arith.constant 0 : i32
    %c0_i32_2 = arith.constant 0 : i32
    return %c0_i32, %c0_i32_0, %c0_i32_1 : i32, i32, i32
  }
  func.func @transform_14(%arg0: i32) -> (i32, i32, i32) {
    %c0_i32 = arith.constant 0 : i32
    %c0_i32_0 = arith.constant 0 : i32
    %c0_i32_1 = arith.constant 0 : i32
    %c0_i32_2 = arith.constant 0 : i32
    return %c0_i32, %c0_i32_0, %c0_i32_1 : i32, i32, i32
  }
  func.func @transform_15(%arg0: i32) -> (i32, i32) {
    %c0_i32 = arith.constant 0 : i32
    %c0_i32_0 = arith.constant 0 : i32
    %c0_i32_1 = arith.constant 0 : i32
    return %c0_i32, %c0_i32_0 : i32, i32
  }
  func.func @transform_16(%arg0: i32) -> (i32, i32) {
    %c0_i32 = arith.constant 0 : i32
    %c0_i32_0 = arith.constant 0 : i32
    %c0_i32_1 = arith.constant 0 : i32
    return %c0_i32, %c0_i32_0 : i32, i32
  }
  func.func @transform_17(%arg0: i32) -> (i32, i32) {
    %c0_i32 = arith.constant 0 : i32
    %c0_i32_0 = arith.constant 0 : i32
    %c0_i32_1 = arith.constant 0 : i32
    return %c0_i32, %c0_i32_0 : i32, i32
  }
  func.func @transform_18(%arg0: i32) -> (i32, i32) {
    %c0_i32 = arith.constant 0 : i32
    %c0_i32_0 = arith.constant 0 : i32
    %c0_i32_1 = arith.constant 0 : i32
    return %c0_i32, %c0_i32_0 : i32, i32
  }
  func.func @transform_19(%arg0: i32) -> (i32, i32) {
    %c0_i32 = arith.constant 0 : i32
    %c0_i32_0 = arith.constant 0 : i32
    %c0_i32_1 = arith.constant 0 : i32
    return %c0_i32, %c0_i32_0 : i32, i32
  }
  func.func @transform_20(%arg0: i32) -> (i32, i32) {
    %c0_i32 = arith.constant 0 : i32
    %c0_i32_0 = arith.constant 0 : i32
    %c0_i32_1 = arith.constant 0 : i32
    return %c0_i32, %c0_i32_0 : i32, i32
  }
  func.func @transform_21(%arg0: i32) -> (i32, i32, i32) {
    %c0_i32 = arith.constant 0 : i32
    %c0_i32_0 = arith.constant 0 : i32
    %c0_i32_1 = arith.constant 0 : i32
    return %arg0, %c0_i32, %c0_i32_0 : i32, i32, i32
  }
  func.func @transform_22(%arg0: i32) -> (i32, i32, i32) {
    %c0_i32 = arith.constant 0 : i32
    %c0_i32_0 = arith.constant 0 : i32
    %c0_i32_1 = arith.constant 0 : i32
    return %arg0, %c0_i32, %c0_i32_0 : i32, i32, i32
  }
}

</mosaic_0001>

<llo_original>
// kernel: mlp_mixer_forward.1
$region0: #{mlp_mixer_forward.1}
  #allocation0 [shape = 'u32[]', space=smem, size = 0x4, offset = 0x4, fixed_abs, tag = 'smem constant byte address 0x4 - core index']
  #allocation1 [shape = 'u32[144,128]{1,0:T(1,128)}', space=vmem, size = 0x12000, scoped, tag = 'internal scratch']
  %s0 = inlined_call_operand.hbm [shape: bf16[2,16,768], index: 0, kind: input, shape index: {}]
  %s1 = inlined_call_operand.hbm [shape: bf16[768,128], index: 1, kind: input, shape index: {}]
  %s2 = inlined_call_operand.hbm [shape: f32[1,128], index: 2, kind: input, shape index: {}]
  %s3 = inlined_call_operand.hbm [shape: f32[2,1,128], index: 3, kind: input, shape index: {}]
  %s4 = inlined_call_operand.hbm [shape: f32[2,1,128], index: 4, kind: input, shape index: {}]
  %s5 = inlined_call_operand.hbm [shape: bf16[2,64,16], index: 5, kind: input, shape index: {}]
  %s6 = inlined_call_operand.hbm [shape: f32[2,64,1], index: 6, kind: input, shape index: {}]
  %s7 = inlined_call_operand.hbm [shape: bf16[2,16,64], index: 7, kind: input, shape index: {}]
  %s8 = inlined_call_operand.hbm [shape: f32[2,16,1], index: 8, kind: input, shape index: {}]
  %s9 = inlined_call_operand.hbm [shape: f32[2,1,128], index: 9, kind: input, shape index: {}]
  %s10 = inlined_call_operand.hbm [shape: f32[2,1,128], index: 10, kind: input, shape index: {}]
  %s11 = inlined_call_operand.hbm [shape: bf16[2,128,256], index: 11, kind: input, shape index: {}]
  %s12 = inlined_call_operand.hbm [shape: f32[2,1,256], index: 12, kind: input, shape index: {}]
  %s13 = inlined_call_operand.hbm [shape: bf16[2,256,128], index: 13, kind: input, shape index: {}]
  %s14 = inlined_call_operand.hbm [shape: f32[2,1,128], index: 14, kind: input, shape index: {}]
  %s15 = inlined_call_operand.hbm [shape: f32[1,128], index: 15, kind: input, shape index: {}]
  %s16 = inlined_call_operand.hbm [shape: f32[1,128], index: 16, kind: input, shape index: {}]
  %s17 = inlined_call_operand.hbm [shape: bf16[128,1024], index: 17, kind: input, shape index: {}]
  %s18 = inlined_call_operand.hbm [shape: f32[1,1024], index: 18, kind: input, shape index: {}]
  %s19 = inlined_call_operand.hbm [shape: bf16[1024,128], index: 19, kind: input, shape index: {}]
  %s20 = inlined_call_operand.hbm [shape: f32[1,128], index: 20, kind: input, shape index: {}]
  %s21 = inlined_call_operand.hbm [shape: f32[1,2,1024], index: 21, kind: output, shape index: {0}]
  %s22 = inlined_call_operand.hbm [shape: f32[1,2,128], index: 22, kind: output, shape index: {1}]
  %23 = xla_tuple %s21, %s22
  %s24 = sld [smem:[#allocation0]]
  $region186: #{mlp_mixer_forward.1} parent=0
    _
  %s26 = ssub.s32 1, %s24
  %s27 = scalar_select 0, %s26, %s24
  $region1: #{mlp_mixer_forward.1} parent=0
    #allocation2 [shape = 'u8[49152]{0}', space=vmem, size = 0xc000, scoped, tag = 'input window, operand 0, single buffered']
    #allocation3 [shape = 's32[1]{0}', space=sflag, size = 0x4, scoped, tag = 'scoped memory for mlp_mixer_forward.1']
    #allocation4 [shape = 's32[1]{0}', space=sflag, size = 0x4, scoped, tag = 'scoped memory for mlp_mixer_forward.1']
    #allocation5 [shape = 'u8[196608]{0}', space=vmem, size = 0x30000, scoped, tag = 'input window, operand 1, single buffered']
    #allocation6 [shape = 's32[1]{0}', space=sflag, size = 0x4, scoped, tag = 'scoped memory for mlp_mixer_forward.1']
    #allocation7 [shape = 'u8[512]{0}', space=vmem, size = 0x400, scoped, tag = 'input window, operand 2, single buffered']
    #allocation8 [shape = 'u8[1024]{0}', space=vmem, size = 0x400, scoped, tag = 'input window, operand 3, single buffered']
    #allocation9 [shape = 's32[1]{0}', space=sflag, size = 0x4, scoped, tag = 'scoped memory for mlp_mixer_forward.1']
    #allocation10 [shape = 'u8[1024]{0}', space=vmem, size = 0x400, scoped, tag = 'input window, operand 4, single buffered']
    #allocation11 [shape = 'u8[32768]{0}', space=vmem, size = 0x8000, scoped, tag = 'input window, operand 5, single buffered']
    #allocation12 [shape = 's32[1]{0}', space=sflag, size = 0x4, scoped, tag = 'scoped memory for mlp_mixer_forward.1']
    #allocation13 [shape = 'u8[65536]{0}', space=vmem, size = 0x10000, scoped, tag = 'input window, operand 6, single buffered']
    #allocation14 [shape = 'u8[8192]{0}', space=vmem, size = 0x2000, scoped, tag = 'input window, operand 7, single buffered']
    #allocation15 [shape = 's32[1]{0}', space=sflag, size = 0x4, scoped, tag = 'scoped memory for mlp_mixer_forward.1']
    #allocation16 [shape = 'u8[16384]{0}', space=vmem, size = 0x4000, scoped, tag = 'input window, operand 8, single buffered']
    #allocation17 [shape = 'u8[1024]{0}', space=vmem, size = 0x400, scoped, tag = 'input window, operand 9, single buffered']
    #allocation18 [shape = 's32[1]{0}', space=sflag, size = 0x4, scoped, tag = 'scoped memory for mlp_mixer_forward.1']
    #allocation19 [shape = 'u8[1024]{0}', space=vmem, size = 0x400, scoped, tag = 'input window, operand 10, single buffered']
    #allocation20 [shape = 'u8[131072]{0}', space=vmem, size = 0x20000, scoped, tag = 'input window, operand 11, single buffered']
    #allocation21 [shape = 's32[1]{0}', space=sflag, size = 0x4, scoped, tag = 'scoped memory for mlp_mixer_forward.1']
    #allocation22 [shape = 'u8[2048]{0}', space=vmem, size = 0x800, scoped, tag = 'input window, operand 12, single buffered']
    #allocation23 [shape = 'u8[131072]{0}', space=vmem, size = 0x20000, scoped, tag = 'input window, operand 13, single buffered']
    #allocation24 [shape = 's32[1]{0}', space=sflag, size = 0x4, scoped, tag = 'scoped memory for mlp_mixer_forward.1']
    #allocation25 [shape = 'u8[1024]{0}', space=vmem, size = 0x400, scoped, tag = 'input window, operand 14, single buffered']
    #allocation26 [shape = 'u8[512]{0}', space=vmem, size = 0x400, scoped, tag = 'input window, operand 15, single buffered']
    #allocation27 [shape = 's32[1]{0}', space=sflag, size = 0x4, scoped, tag = 'scoped memory for mlp_mixer_forward.1']
    #allocation28 [shape = 'u8[512]{0}', space=vmem, size = 0x400, scoped, tag = 'input window, operand 16, single buffered']
    #allocation29 [shape = 'u8[262144]{0}', space=vmem, size = 0x40000, scoped, tag = 'input window, operand 17, single buffered']
    #allocation30 [shape = 's32[1]{0}', space=sflag, size = 0x4, scoped, tag = 'scoped memory for mlp_mixer_forward.1']
    #allocation31 [shape = 'u8[4096]{0}', space=vmem, size = 0x1000, scoped, tag = 'input window, operand 18, single buffered']
    #allocation32 [shape = 'u8[262144]{0}', space=vmem, size = 0x40000, scoped, tag = 'input window, operand 19, single buffered']
    #allocation33 [shape = 's32[1]{0}', space=sflag, size = 0x4, scoped, tag = 'scoped memory for mlp_mixer_forward.1']
    #allocation34 [shape = 'u8[512]{0}', space=vmem, size = 0x400, scoped, tag = 'input window, operand 20, single buffered']
    #allocation35 [shape = 'u8[8192]{0}', space=vmem, size = 0x2000, scoped, tag = 'output window, operand 0, single buffered']
    #allocation36 [shape = 'u8[1024]{0}', space=vmem, size = 0x400, scoped, tag = 'output window, operand 1, single buffered']
    #allocation37 [shape = 's32[1]{0}', space=sflag, size = 0x4, scoped, tag = 'scoped memory for mlp_mixer_forward.1']
    %28 = vsyncpa [#allocation3], 0
    %29 = vsyncpa [#allocation6], 0
    %30 = vsyncpa [#allocation9], 0
    %31 = vsyncpa [#allocation12], 0
    %32 = vsyncpa [#allocation15], 0
    %33 = vsyncpa [#allocation18], 0
    %34 = vsyncpa [#allocation21], 0
    %35 = vsyncpa [#allocation24], 0
    %36 = vsyncpa [#allocation27], 0
    %37 = vsyncpa [#allocation30], 0
    %38 = vsyncpa [#allocation33], 0
    %39 = vsyncpa [#allocation4], 0
    %40 = vsyncpa [#allocation37], 0
    // Predicated region
    $region2: #{mlp_mixer_forward.1} parent=1 // pred_check
      _
    $region3: #{mlp_mixer_forward.1} parent=1 // pred_check_branch
      %42 = sbr.rel (0) target = $region5
    $region4: #{mlp_mixer_forward.1} parent=1 // pred_region
      %s44 = ssub.s32 1536, 1536
      %45 = vsyncadd [#allocation3], %s44
      %s46 = sshll.u32 [#allocation2], 4
      %s47 = int_to_ptr.vmem [resolvable:$true] %s46
      %52 = dma.hbm_to_vmem [thread:$0]  %s0, 1536, %s47, [#allocation3], 384, 384, 24
    $region5: #{mlp_mixer_forward.1} parent=1 // pred_fallthru
      _
    // Predicated region
    $region6: #{mlp_mixer_forward.1} parent=1 // pred_check
      _
    $region7: #{mlp_mixer_forward.1} parent=1 // pred_check_branch
      %54 = sbr.rel (0) target = $region9
    $region8: #{mlp_mixer_forward.1} parent=1 // pred_region
      %s56 = ssub.s32 6144, 6144
      %57 = vsyncadd [#allocation6], %s56
      %s58 = sshll.u32 [#allocation5], 4
      %s59 = int_to_ptr.vmem [resolvable:$true] %s58
      %64 = dma.hbm_to_vmem [thread:$0]  %s1, 6144, %s59, [#allocation6], 64, 64, 4
    $region9: #{mlp_mixer_forward.1} parent=1 // pred_fallthru
      _
    // Predicated region
    $region10: #{mlp_mixer_forward.1} parent=1 // pred_check
      _
    $region11: #{mlp_mixer_forward.1} parent=1 // pred_check_branch
      %66 = sbr.rel (0) target = $region13
    $region12: #{mlp_mixer_forward.1} parent=1 // pred_region
      %s68 = ssub.s32 16, 16
      %69 = vsyncadd [#allocation6], %s68
      %s71 = sshll.u32 [#allocation7], 4
      %s72 = int_to_ptr.vmem [resolvable:$true] %s71
      %74 = dma.hbm_to_vmem [thread:$0]  %s2, 16, %s72, [#allocation6]
    $region13: #{mlp_mixer_forward.1} parent=1 // pred_fallthru
      _
    // Predicated region
    $region14: #{mlp_mixer_forward.1} parent=1 // pred_check
      _
    $region15: #{mlp_mixer_forward.1} parent=1 // pred_check_branch
      %76 = sbr.rel (0) target = $region17
    $region16: #{mlp_mixer_forward.1} parent=1 // pred_region
      %s78 = ssub.s32 32, 32
      %79 = vsyncadd [#allocation9], %s78
      %s80 = sshll.u32 [#allocation8], 4
      %s81 = int_to_ptr.vmem [resolvable:$true] %s80
      %86 = dma.hbm_to_vmem [thread:$0]  %s3, 32, %s81, [#allocation9], 16, 16, 1
    $region17: #{mlp_mixer_forward.1} parent=1 // pred_fallthru
      _
    // Predicated region
    $region18: #{mlp_mixer_forward.1} parent=1 // pred_check
      _
    $region19: #{mlp_mixer_forward.1} parent=1 // pred_check_branch
      %88 = sbr.rel (0) target = $region21
    $region20: #{mlp_mixer_forward.1} parent=1 // pred_region
      %s90 = ssub.s32 32, 32
      %91 = vsyncadd [#allocation9], %s90
      %s92 = sshll.u32 [#allocation10], 4
      %s93 = int_to_ptr.vmem [resolvable:$true] %s92
      %98 = dma.hbm_to_vmem [thread:$0]  %s4, 32, %s93, [#allocation9], 16, 16, 1
    $region21: #{mlp_mixer_forward.1} parent=1 // pred_fallthru
      _
    // Predicated region
    $region22: #{mlp_mixer_forward.1} parent=1 // pred_check
      _
    $region23: #{mlp_mixer_forward.1} parent=1 // pred_check_branch
      %100 = sbr.rel (0) target = $region25
    $region24: #{mlp_mixer_forward.1} parent=1 // pred_region
      %s102 = ssub.s32 1024, 1024
      %103 = vsyncadd [#allocation12], %s102
      %s104 = sshll.u32 [#allocation11], 4
      %s105 = int_to_ptr.vmem [resolvable:$true] %s104
      %110 = dma.hbm_to_vmem [thread:$0]  %s5, 1024, %s105, [#allocation12], 64, 64, 4
    $region25: #{mlp_mixer_forward.1} parent=1 // pred_fallthru
      _
    // Predicated region
    $region26: #{mlp_mixer_forward.1} parent=1 // pred_check
      _
    $region27: #{mlp_mixer_forward.1} parent=1 // pred_check_branch
      %112 = sbr.rel (0) target = $region29
    $region28: #{mlp_mixer_forward.1} parent=1 // pred_region
      %s114 = ssub.s32 2048, 2048
      %115 = vsyncadd [#allocation12], %s114
      %s116 = sshll.u32 [#allocation13], 4
      %s117 = int_to_ptr.vmem [resolvable:$true] %s116
      %122 = dma.hbm_to_vmem [thread:$0]  %s6, 2048, %s117, [#allocation12], 128, 128, 8
    $region29: #{mlp_mixer_forward.1} parent=1 // pred_fallthru
      _
    // Predicated region
    $region30: #{mlp_mixer_forward.1} parent=1 // pred_check
      _
    $region31: #{mlp_mixer_forward.1} parent=1 // pred_check_branch
      %124 = sbr.rel (0) target = $region33
    $region32: #{mlp_mixer_forward.1} parent=1 // pred_region
      %s126 = ssub.s32 256, 256
      %127 = vsyncadd [#allocation15], %s126
      %s128 = sshll.u32 [#allocation14], 4
      %s129 = int_to_ptr.vmem [resolvable:$true] %s128
      %134 = dma.hbm_to_vmem [thread:$0]  %s7, 256, %s129, [#allocation15], 64, 64, 4
    $region33: #{mlp_mixer_forward.1} parent=1 // pred_fallthru
      _
    // Predicated region
    $region34: #{mlp_mixer_forward.1} parent=1 // pred_check
      _
    $region35: #{mlp_mixer_forward.1} parent=1 // pred_check_branch
      %136 = sbr.rel (0) target = $region37
    $region36: #{mlp_mixer_forward.1} parent=1 // pred_region
      %s138 = ssub.s32 512, 512
      %139 = vsyncadd [#allocation15], %s138
      %s140 = sshll.u32 [#allocation16], 4
      %s141 = int_to_ptr.vmem [resolvable:$true] %s140
      %146 = dma.hbm_to_vmem [thread:$0]  %s8, 512, %s141, [#allocation15], 128, 128, 8
    $region37: #{mlp_mixer_forward.1} parent=1 // pred_fallthru
      _
    // Predicated region
    $region38: #{mlp_mixer_forward.1} parent=1 // pred_check
      _
    $region39: #{mlp_mixer_forward.1} parent=1 // pred_check_branch
      %148 = sbr.rel (0) target = $region41
    $region40: #{mlp_mixer_forward.1} parent=1 // pred_region
      %s150 = ssub.s32 32, 32
      %151 = vsyncadd [#allocation18], %s150
      %s152 = sshll.u32 [#allocation17], 4
      %s153 = int_to_ptr.vmem [resolvable:$true] %s152
      %158 = dma.hbm_to_vmem [thread:$0]  %s9, 32, %s153, [#allocation18], 16, 16, 1
    $region41: #{mlp_mixer_forward.1} parent=1 // pred_fallthru
      _
    // Predicated region
    $region42: #{mlp_mixer_forward.1} parent=1 // pred_check
      _
    $region43: #{mlp_mixer_forward.1} parent=1 // pred_check_branch
      %160 = sbr.rel (0) target = $region45
    $region44: #{mlp_mixer_forward.1} parent=1 // pred_region
      %s162 = ssub.s32 32, 32
      %163 = vsyncadd [#allocation18], %s162
      %s164 = sshll.u32 [#allocation19], 4
      %s165 = int_to_ptr.vmem [resolvable:$true] %s164
      %170 = dma.hbm_to_vmem [thread:$0]  %s10, 32, %s165, [#allocation18], 16, 16, 1
    $region45: #{mlp_mixer_forward.1} parent=1 // pred_fallthru
      _
    // Predicated region
    $region46: #{mlp_mixer_forward.1} parent=1 // pred_check
      _
    $region47: #{mlp_mixer_forward.1} parent=1 // pred_check_branch
      %172 = sbr.rel (0) target = $region49
    $region48: #{mlp_mixer_forward.1} parent=1 // pred_region
      %s174 = ssub.s32 4096, 4096
      %175 = vsyncadd [#allocation21], %s174
      %s176 = sshll.u32 [#allocation20], 4
      %s177 = int_to_ptr.vmem [resolvable:$true] %s176
      %182 = dma.hbm_to_vmem [thread:$0]  %s11, 4096, %s177, [#allocation21], 128, 128, 8
    $region49: #{mlp_mixer_forward.1} parent=1 // pred_fallthru
      _
    // Predicated region
    $region50: #{mlp_mixer_forward.1} parent=1 // pred_check
      _
    $region51: #{mlp_mixer_forward.1} parent=1 // pred_check_branch
      %184 = sbr.rel (0) target = $region53
    $region52: #{mlp_mixer_forward.1} parent=1 // pred_region
      %s186 = ssub.s32 64, 64
      %187 = vsyncadd [#allocation21], %s186
      %s188 = sshll.u32 [#allocation22], 4
      %s189 = int_to_ptr.vmem [resolvable:$true] %s188
      %194 = dma.hbm_to_vmem [thread:$0]  %s12, 64, %s189, [#allocation21], 32, 32, 2
    $region53: #{mlp_mixer_forward.1} parent=1 // pred_fallthru
      _
    // Predicated region
    $region54: #{mlp_mixer_forward.1} parent=1 // pred_check
      _
    $region55: #{mlp_mixer_forward.1} parent=1 // pred_check_branch
      %196 = sbr.rel (0) target = $region57
    $region56: #{mlp_mixer_forward.1} parent=1 // pred_region
      %s198 = ssub.s32 4096, 4096
      %199 = vsyncadd [#allocation24], %s198
      %s200 = sshll.u32 [#allocation23], 4
      %s201 = int_to_ptr.vmem [resolvable:$true] %s200
      %206 = dma.hbm_to_vmem [thread:$0]  %s13, 4096, %s201, [#allocation24], 64, 64, 4
    $region57: #{mlp_mixer_forward.1} parent=1 // pred_fallthru
      _
    // Predicated region
    $region58: #{mlp_mixer_forward.1} parent=1 // pred_check
      _
    $region59: #{mlp_mixer_forward.1} parent=1 // pred_check_branch
      %208 = sbr.rel (0) target = $region61
    $region60: #{mlp_mixer_forward.1} parent=1 // pred_region
      %s210 = ssub.s32 32, 32
      %211 = vsyncadd [#allocation24], %s210
      %s212 = sshll.u32 [#allocation25], 4
      %s213 = int_to_ptr.vmem [resolvable:$true] %s212
      %218 = dma.hbm_to_vmem [thread:$0]  %s14, 32, %s213, [#allocation24], 16, 16, 1
    $region61: #{mlp_mixer_forward.1} parent=1 // pred_fallthru
      _
    // Predicated region
    $region62: #{mlp_mixer_forward.1} parent=1 // pred_check
      _
    $region63: #{mlp_mixer_forward.1} parent=1 // pred_check_branch
      %220 = sbr.rel (0) target = $region65
    $region64: #{mlp_mixer_forward.1} parent=1 // pred_region
      %s222 = ssub.s32 16, 16
      %223 = vsyncadd [#allocation27], %s222
      %s225 = sshll.u32 [#allocation26], 4
      %s226 = int_to_ptr.vmem [resolvable:$true] %s225
      %228 = dma.hbm_to_vmem [thread:$0]  %s15, 16, %s226, [#allocation27]
    $region65: #{mlp_mixer_forward.1} parent=1 // pred_fallthru
      _
    // Predicated region
    $region66: #{mlp_mixer_forward.1} parent=1 // pred_check
      _
    $region67: #{mlp_mixer_forward.1} parent=1 // pred_check_branch
      %230 = sbr.rel (0) target = $region69
    $region68: #{mlp_mixer_forward.1} parent=1 // pred_region
      %s232 = ssub.s32 16, 16
      %233 = vsyncadd [#allocation27], %s232
      %s235 = sshll.u32 [#allocation28], 4
      %s236 = int_to_ptr.vmem [resolvable:$true] %s235
      %238 = dma.hbm_to_vmem [thread:$0]  %s16, 16, %s236, [#allocation27]
    $region69: #{mlp_mixer_forward.1} parent=1 // pred_fallthru
      _
    // Predicated region
    $region70: #{mlp_mixer_forward.1} parent=1 // pred_check
      _
    $region71: #{mlp_mixer_forward.1} parent=1 // pred_check_branch
      %240 = sbr.rel (0) target = $region73
    $region72: #{mlp_mixer_forward.1} parent=1 // pred_region
      %s242 = ssub.s32 8192, 8192
      %243 = vsyncadd [#allocation30], %s242
      %s244 = sshll.u32 [#allocation29], 4
      %s245 = int_to_ptr.vmem [resolvable:$true] %s244
      %250 = dma.hbm_to_vmem [thread:$0]  %s17, 8192, %s245, [#allocation30], 512, 512, 32
    $region73: #{mlp_mixer_forward.1} parent=1 // pred_fallthru
      _
    // Predicated region
    $region74: #{mlp_mixer_forward.1} parent=1 // pred_check
      _
    $region75: #{mlp_mixer_forward.1} parent=1 // pred_check_branch
      %252 = sbr.rel (0) target = $region77
    $region76: #{mlp_mixer_forward.1} parent=1 // pred_region
      %s254 = ssub.s32 128, 128
      %255 = vsyncadd [#allocation30], %s254
      %s257 = sshll.u32 [#allocation31], 4
      %s258 = int_to_ptr.vmem [resolvable:$true] %s257
      %260 = dma.hbm_to_vmem [thread:$0]  %s18, 128, %s258, [#allocation30]
    $region77: #{mlp_mixer_forward.1} parent=1 // pred_fallthru
      _
    // Predicated region
    $region78: #{mlp_mixer_forward.1} parent=1 // pred_check
      _
    $region79: #{mlp_mixer_forward.1} parent=1 // pred_check_branch
      %262 = sbr.rel (0) target = $region81
    $region80: #{mlp_mixer_forward.1} parent=1 // pred_region
      %s264 = ssub.s32 8192, 8192
      %265 = vsyncadd [#allocation33], %s264
      %s266 = sshll.u32 [#allocation32], 4
      %s267 = int_to_ptr.vmem [resolvable:$true] %s266
      %272 = dma.hbm_to_vmem [thread:$0]  %s19, 8192, %s267, [#allocation33], 64, 64, 4
    $region81: #{mlp_mixer_forward.1} parent=1 // pred_fallthru
      _
    // Predicated region
    $region82: #{mlp_mixer_forward.1} parent=1 // pred_check
      _
    $region83: #{mlp_mixer_forward.1} parent=1 // pred_check_branch
      %274 = sbr.rel (0) target = $region85
    $region84: #{mlp_mixer_forward.1} parent=1 // pred_region
      %s276 = ssub.s32 16, 16
      %277 = vsyncadd [#allocation33], %s276
      %s279 = sshll.u32 [#allocation34], 4
      %s280 = int_to_ptr.vmem [resolvable:$true] %s279
      %282 = dma.hbm_to_vmem [thread:$0]  %s20, 16, %s280, [#allocation33]
    $region85: #{mlp_mixer_forward.1} parent=1 // pred_fallthru
      _
    // Predicated region
    $region86: #{mlp_mixer_forward.1} parent=1 // pred_check
      _
    $region87: #{mlp_mixer_forward.1} parent=1 // pred_check_branch
      %284 = sbr.rel (0) target = $region89
    $region88: #{mlp_mixer_forward.1} parent=1 // pred_region
      %285 = dma.done [#allocation3], 1536
    $region89: #{mlp_mixer_forward.1} parent=1 // pred_fallthru
      _
    // Predicated region
    $region90: #{mlp_mixer_forward.1} parent=1 // pred_check
      _
    $region91: #{mlp_mixer_forward.1} parent=1 // pred_check_branch
      %287 = sbr.rel (0) target = $region93
    $region92: #{mlp_mixer_forward.1} parent=1 // pred_region
      %288 = dma.done [#allocation6], 6144
    $region93: #{mlp_mixer_forward.1} parent=1 // pred_fallthru
      _
    // Predicated region
    $region94: #{mlp_mixer_forward.1} parent=1 // pred_check
      _
    $region95: #{mlp_mixer_forward.1} parent=1 // pred_check_branch
      %290 = sbr.rel (0) target = $region97
    $region96: #{mlp_mixer_forward.1} parent=1 // pred_region
      %291 = dma.done [#allocation6], 16
    $region97: #{mlp_mixer_forward.1} parent=1 // pred_fallthru
      _
    // Predicated region
    $region98: #{mlp_mixer_forward.1} parent=1 // pred_check
      _
    $region99: #{mlp_mixer_forward.1} parent=1 // pred_check_branch
      %293 = sbr.rel (0) target = $region101
    $region100: #{mlp_mixer_forward.1} parent=1 // pred_region
      %294 = dma.done [#allocation9], 32
    $region101: #{mlp_mixer_forward.1} parent=1 // pred_fallthru
      _
    // Predicated region
    $region102: #{mlp_mixer_forward.1} parent=1 // pred_check
      _
    $region103: #{mlp_mixer_forward.1} parent=1 // pred_check_branch
      %296 = sbr.rel (0) target = $region105
    $region104: #{mlp_mixer_forward.1} parent=1 // pred_region
      %297 = dma.done [#allocation9], 32
    $region105: #{mlp_mixer_forward.1} parent=1 // pred_fallthru
      _
    // Predicated region
    $region106: #{mlp_mixer_forward.1} parent=1 // pred_check
      _
    $region107: #{mlp_mixer_forward.1} parent=1 // pred_check_branch
      %299 = sbr.rel (0) target = $region109
    $region108: #{mlp_mixer_forward.1} parent=1 // pred_region
      %300 = dma.done [#allocation12], 1024
    $region109: #{mlp_mixer_forward.1} parent=1 // pred_fallthru
      _
    // Predicated region
    $region110: #{mlp_mixer_forward.1} parent=1 // pred_check
      _
    $region111: #{mlp_mixer_forward.1} parent=1 // pred_check_branch
      %302 = sbr.rel (0) target = $region113
    $region112: #{mlp_mixer_forward.1} parent=1 // pred_region
      %303 = dma.done [#allocation12], 2048
    $region113: #{mlp_mixer_forward.1} parent=1 // pred_fallthru
      _
    // Predicated region
    $region114: #{mlp_mixer_forward.1} parent=1 // pred_check
      _
    $region115: #{mlp_mixer_forward.1} parent=1 // pred_check_branch
      %305 = sbr.rel (0) target = $region117
    $region116: #{mlp_mixer_forward.1} parent=1 // pred_region
      %306 = dma.done [#allocation15], 256
    $region117: #{mlp_mixer_forward.1} parent=1 // pred_fallthru
      _
    // Predicated region
    $region118: #{mlp_mixer_forward.1} parent=1 // pred_check
      _
    $region119: #{mlp_mixer_forward.1} parent=1 // pred_check_branch
      %308 = sbr.rel (0) target = $region121
    $region120: #{mlp_mixer_forward.1} parent=1 // pred_region
      %309 = dma.done [#allocation15], 512
    $region121: #{mlp_mixer_forward.1} parent=1 // pred_fallthru
      _
    // Predicated region
    $region122: #{mlp_mixer_forward.1} parent=1 // pred_check
      _
    $region123: #{mlp_mixer_forward.1} parent=1 // pred_check_branch
      %311 = sbr.rel (0) target = $region125
    $region124: #{mlp_mixer_forward.1} parent=1 // pred_region
      %312 = dma.done [#allocation18], 32
    $region125: #{mlp_mixer_forward.1} parent=1 // pred_fallthru
      _
    // Predicated region
    $region126: #{mlp_mixer_forward.1} parent=1 // pred_check
      _
    $region127: #{mlp_mixer_forward.1} parent=1 // pred_check_branch
      %314 = sbr.rel (0) target = $region129
    $region128: #{mlp_mixer_forward.1} parent=1 // pred_region
      %315 = dma.done [#allocation18], 32
    $region129: #{mlp_mixer_forward.1} parent=1 // pred_fallthru
      _
    // Predicated region
    $region130: #{mlp_mixer_forward.1} parent=1 // pred_check
      _
    $region131: #{mlp_mixer_forward.1} parent=1 // pred_check_branch
      %317 = sbr.rel (0) target = $region133
    $region132: #{mlp_mixer_forward.1} parent=1 // pred_region
      %318 = dma.done [#allocation21], 4096
    $region133: #{mlp_mixer_forward.1} parent=1 // pred_fallthru
      _
    // Predicated region
    $region134: #{mlp_mixer_forward.1} parent=1 // pred_check
      _
    $region135: #{mlp_mixer_forward.1} parent=1 // pred_check_branch
      %320 = sbr.rel (0) target = $region137
    $region136: #{mlp_mixer_forward.1} parent=1 // pred_region
      %321 = dma.done [#allocation21], 64
    $region137: #{mlp_mixer_forward.1} parent=1 // pred_fallthru
      _
    // Predicated region
    $region138: #{mlp_mixer_forward.1} parent=1 // pred_check
      _
    $region139: #{mlp_mixer_forward.1} parent=1 // pred_check_branch
      %323 = sbr.rel (0) target = $region141
    $region140: #{mlp_mixer_forward.1} parent=1 // pred_region
      %324 = dma.done [#allocation24], 4096
    $region141: #{mlp_mixer_forward.1} parent=1 // pred_fallthru
      _
    // Predicated region
    $region142: #{mlp_mixer_forward.1} parent=1 // pred_check
      _
    $region143: #{mlp_mixer_forward.1} parent=1 // pred_check_branch
      %326 = sbr.rel (0) target = $region145
    $region144: #{mlp_mixer_forward.1} parent=1 // pred_region
      %327 = dma.done [#allocation24], 32
    $region145: #{mlp_mixer_forward.1} parent=1 // pred_fallthru
      _
    // Predicated region
    $region146: #{mlp_mixer_forward.1} parent=1 // pred_check
      _
    $region147: #{mlp_mixer_forward.1} parent=1 // pred_check_branch
      %329 = sbr.rel (0) target = $region149
    $region148: #{mlp_mixer_forward.1} parent=1 // pred_region
      %330 = dma.done [#allocation27], 16
    $region149: #{mlp_mixer_forward.1} parent=1 // pred_fallthru
      _
    // Predicated region
    $region150: #{mlp_mixer_forward.1} parent=1 // pred_check
      _
    $region151: #{mlp_mixer_forward.1} parent=1 // pred_check_branch
      %332 = sbr.rel (0) target = $region153
    $region152: #{mlp_mixer_forward.1} parent=1 // pred_region
      %333 = dma.done [#allocation27], 16
    $region153: #{mlp_mixer_forward.1} parent=1 // pred_fallthru
      _
    // Predicated region
    $region154: #{mlp_mixer_forward.1} parent=1 // pred_check
      _
    $region155: #{mlp_mixer_forward.1} parent=1 // pred_check_branch
      %335 = sbr.rel (0) target = $region157
    $region156: #{mlp_mixer_forward.1} parent=1 // pred_region
      %336 = dma.done [#allocation30], 8192
    $region157: #{mlp_mixer_forward.1} parent=1 // pred_fallthru
      _
    // Predicated region
    $region158: #{mlp_mixer_forward.1} parent=1 // pred_check
      _
    $region159: #{mlp_mixer_forward.1} parent=1 // pred_check_branch
      %338 = sbr.rel (0) target = $region161
    $region160: #{mlp_mixer_forward.1} parent=1 // pred_region
      %339 = dma.done [#allocation30], 128
    $region161: #{mlp_mixer_forward.1} parent=1 // pred_fallthru
      _
    // Predicated region
    $region162: #{mlp_mixer_forward.1} parent=1 // pred_check
      _
    $region163: #{mlp_mixer_forward.1} parent=1 // pred_check_branch
      %341 = sbr.rel (0) target = $region165
    $region164: #{mlp_mixer_forward.1} parent=1 // pred_region
      %342 = dma.done [#allocation33], 8192
    $region165: #{mlp_mixer_forward.1} parent=1 // pred_fallthru
      _
    // Predicated region
    $region166: #{mlp_mixer_forward.1} parent=1 // pred_check
      _
    $region167: #{mlp_mixer_forward.1} parent=1 // pred_check_branch
      %344 = sbr.rel (0) target = $region169
    $region168: #{mlp_mixer_forward.1} parent=1 // pred_region
      %345 = dma.done [#allocation33], 16
    $region169: #{mlp_mixer_forward.1} parent=1 // pred_fallthru
      _
    %v347 = vld [vmem:[#allocation2] sm:$0xff]
    %v348 = vld [vmem:[#allocation2 + $0x8] sm:$0xff]
    %v349 = vld [vmem:[#allocation2 + $0x10] sm:$0xff]
    %v350 = vld [vmem:[#allocation2 + $0x18] sm:$0xff]
    %v351 = vld [vmem:[#allocation2 + $0x20] sm:$0xff]
    %v352 = vld [vmem:[#allocation2 + $0x28] sm:$0xff]
    %v353 = vld [vmem:[#allocation2 + $0x30] sm:$0xff]
    %v354 = vld [vmem:[#allocation2 + $0x38] sm:$0xff]
    %v355 = vld [vmem:[#allocation2 + $0x40] sm:$0xff]
    %v356 = vld [vmem:[#allocation2 + $0x48] sm:$0xff]
    %v357 = vld [vmem:[#allocation2 + $0x50] sm:$0xff]
    %v358 = vld [vmem:[#allocation2 + $0x58] sm:$0xff]
    %v359 = vld [vmem:[#allocation5] sm:$0xf]
    %v360 = vld [vmem:[#allocation5 + $0x4] sm:$0xf]
    %v361 = vld [vmem:[#allocation5 + $0x8] sm:$0xf]
    %v362 = vld [vmem:[#allocation5 + $0xc] sm:$0xf]
    %v363 = vld [vmem:[#allocation5 + $0x10] sm:$0xf]
    %v364 = vld [vmem:[#allocation5 + $0x14] sm:$0xf]
    %v365 = vld [vmem:[#allocation5 + $0x18] sm:$0xf]
    %v366 = vld [vmem:[#allocation5 + $0x1c] sm:$0xf]
    %v367 = vld [vmem:[#allocation5 + $0x20] sm:$0xf]
    %v368 = vld [vmem:[#allocation5 + $0x24] sm:$0xf]
    %v369 = vld [vmem:[#allocation5 + $0x28] sm:$0xf]
    %v370 = vld [vmem:[#allocation5 + $0x2c] sm:$0xf]
    %v371 = vld [vmem:[#allocation5 + $0x30] sm:$0xf]
    %v372 = vld [vmem:[#allocation5 + $0x34] sm:$0xf]
    %v373 = vld [vmem:[#allocation5 + $0x38] sm:$0xf]
    %v374 = vld [vmem:[#allocation5 + $0x3c] sm:$0xf]
    %v375 = vld [vmem:[#allocation5 + $0x40] sm:$0xf]
    %v376 = vld [vmem:[#allocation5 + $0x44] sm:$0xf]
    %v377 = vld [vmem:[#allocation5 + $0x48] sm:$0xf]
    %v378 = vld [vmem:[#allocation5 + $0x4c] sm:$0xf]
    %v379 = vld [vmem:[#allocation5 + $0x50] sm:$0xf]
    %v380 = vld [vmem:[#allocation5 + $0x54] sm:$0xf]
    %v381 = vld [vmem:[#allocation5 + $0x58] sm:$0xf]
    %v382 = vld [vmem:[#allocation5 + $0x5c] sm:$0xf]
    %v383 = vld [vmem:[#allocation5 + $0x60] sm:$0xf]
    %v384 = vld [vmem:[#allocation5 + $0x64] sm:$0xf]
    %v385 = vld [vmem:[#allocation5 + $0x68] sm:$0xf]
    %v386 = vld [vmem:[#allocation5 + $0x6c] sm:$0xf]
    %v387 = vld [vmem:[#allocation5 + $0x70] sm:$0xf]
    %v388 = vld [vmem:[#allocation5 + $0x74] sm:$0xf]
    %v389 = vld [vmem:[#allocation5 + $0x78] sm:$0xf]
    %v390 = vld [vmem:[#allocation5 + $0x7c] sm:$0xf]
    %v391 = vld [vmem:[#allocation5 + $0x80] sm:$0xf]
    %v392 = vld [vmem:[#allocation5 + $0x84] sm:$0xf]
    %v393 = vld [vmem:[#allocation5 + $0x88] sm:$0xf]
    %v394 = vld [vmem:[#allocation5 + $0x8c] sm:$0xf]
    %v395 = vld [vmem:[#allocation5 + $0x90] sm:$0xf]
    %v396 = vld [vmem:[#allocation5 + $0x94] sm:$0xf]
    %v397 = vld [vmem:[#allocation5 + $0x98] sm:$0xf]
    %v398 = vld [vmem:[#allocation5 + $0x9c] sm:$0xf]
    %v399 = vld [vmem:[#allocation5 + $0xa0] sm:$0xf]
    %v400 = vld [vmem:[#allocation5 + $0xa4] sm:$0xf]
    %v401 = vld [vmem:[#allocation5 + $0xa8] sm:$0xf]
    %v402 = vld [vmem:[#allocation5 + $0xac] sm:$0xf]
    %v403 = vld [vmem:[#allocation5 + $0xb0] sm:$0xf]
    %v404 = vld [vmem:[#allocation5 + $0xb4] sm:$0xf]
    %v405 = vld [vmem:[#allocation5 + $0xb8] sm:$0xf]
    %v406 = vld [vmem:[#allocation5 + $0xbc] sm:$0xf]
    %v407 = vld [vmem:[#allocation5 + $0xc0] sm:$0xf]
    %v408 = vld [vmem:[#allocation5 + $0xc4] sm:$0xf]
    %v409 = vld [vmem:[#allocation5 + $0xc8] sm:$0xf]
    %v410 = vld [vmem:[#allocation5 + $0xcc] sm:$0xf]
    %v411 = vld [vmem:[#allocation5 + $0xd0] sm:$0xf]
    %v412 = vld [vmem:[#allocation5 + $0xd4] sm:$0xf]
    %v413 = vld [vmem:[#allocation5 + $0xd8] sm:$0xf]
    %v414 = vld [vmem:[#allocation5 + $0xdc] sm:$0xf]
    %v415 = vld [vmem:[#allocation5 + $0xe0] sm:$0xf]
    %v416 = vld [vmem:[#allocation5 + $0xe4] sm:$0xf]
    %v417 = vld [vmem:[#allocation5 + $0xe8] sm:$0xf]
    %v418 = vld [vmem:[#allocation5 + $0xec] sm:$0xf]
    %v419 = vld [vmem:[#allocation5 + $0xf0] sm:$0xf]
    %v420 = vld [vmem:[#allocation5 + $0xf4] sm:$0xf]
    %v421 = vld [vmem:[#allocation5 + $0xf8] sm:$0xf]
    %v422 = vld [vmem:[#allocation5 + $0xfc] sm:$0xf]
    %v423 = vld [vmem:[#allocation5 + $0x100] sm:$0xf]
    %v424 = vld [vmem:[#allocation5 + $0x104] sm:$0xf]
    %v425 = vld [vmem:[#allocation5 + $0x108] sm:$0xf]
    %v426 = vld [vmem:[#allocation5 + $0x10c] sm:$0xf]
    %v427 = vld [vmem:[#allocation5 + $0x110] sm:$0xf]
    %v428 = vld [vmem:[#allocation5 + $0x114] sm:$0xf]
    %v429 = vld [vmem:[#allocation5 + $0x118] sm:$0xf]
    %v430 = vld [vmem:[#allocation5 + $0x11c] sm:$0xf]
    %v431 = vld [vmem:[#allocation5 + $0x120] sm:$0xf]
    %v432 = vld [vmem:[#allocation5 + $0x124] sm:$0xf]
    %v433 = vld [vmem:[#allocation5 + $0x128] sm:$0xf]
    %v434 = vld [vmem:[#allocation5 + $0x12c] sm:$0xf]
    %v435 = vld [vmem:[#allocation5 + $0x130] sm:$0xf]
    %v436 = vld [vmem:[#allocation5 + $0x134] sm:$0xf]
    %v437 = vld [vmem:[#allocation5 + $0x138] sm:$0xf]
    %v438 = vld [vmem:[#allocation5 + $0x13c] sm:$0xf]
    %v439 = vld [vmem:[#allocation5 + $0x140] sm:$0xf]
    %v440 = vld [vmem:[#allocation5 + $0x144] sm:$0xf]
    %v441 = vld [vmem:[#allocation5 + $0x148] sm:$0xf]
    %v442 = vld [vmem:[#allocation5 + $0x14c] sm:$0xf]
    %v443 = vld [vmem:[#allocation5 + $0x150] sm:$0xf]
    %v444 = vld [vmem:[#allocation5 + $0x154] sm:$0xf]
    %v445 = vld [vmem:[#allocation5 + $0x158] sm:$0xf]
    %v446 = vld [vmem:[#allocation5 + $0x15c] sm:$0xf]
    %v447 = vld [vmem:[#allocation5 + $0x160] sm:$0xf]
    %v448 = vld [vmem:[#allocation5 + $0x164] sm:$0xf]
    %v449 = vld [vmem:[#allocation5 + $0x168] sm:$0xf]
    %v450 = vld [vmem:[#allocation5 + $0x16c] sm:$0xf]
    %v451 = vld [vmem:[#allocation5 + $0x170] sm:$0xf]
    %v452 = vld [vmem:[#allocation5 + $0x174] sm:$0xf]
    %v453 = vld [vmem:[#allocation5 + $0x178] sm:$0xf]
    %v454 = vld [vmem:[#allocation5 + $0x17c] sm:$0xf]
    %v455 = vld [vmem:[#allocation7] sm:$0x1]
    %v457 = vlaneseq
    %v458 = vshrl.u32 %v457, 7
    %v459 = vsub.s32 0, %v458
    %v460 = vrot.slane %v455, %v459
    %v474 = vunpack.c.l.b16 %v347
    %v475 = vunpack.c.h.b16 %v347
    %v476 = vunpack.c.l.b16 %v348
    %v477 = vunpack.c.h.b16 %v348
    %v478 = vunpack.c.l.b16 %v349
    %v479 = vunpack.c.h.b16 %v349
    %v480 = vunpack.c.l.b16 %v350
    %v481 = vunpack.c.h.b16 %v350
    %v482 = vunpack.c.l.b16 %v351
    %v483 = vunpack.c.h.b16 %v351
    %v484 = vunpack.c.l.b16 %v352
    %v485 = vunpack.c.h.b16 %v352
    %v486 = vunpack.c.l.b16 %v353
    %v487 = vunpack.c.h.b16 %v353
    %v488 = vunpack.c.l.b16 %v354
    %v489 = vunpack.c.h.b16 %v354
    %v490 = vunpack.c.l.b16 %v355
    %v491 = vunpack.c.h.b16 %v355
    %v492 = vunpack.c.l.b16 %v356
    %v493 = vunpack.c.h.b16 %v356
    %v494 = vunpack.c.l.b16 %v357
    %v495 = vunpack.c.h.b16 %v357
    %v496 = vunpack.c.l.b16 %v358
    %v497 = vunpack.c.h.b16 %v358
    %v498 = vpack.c.b16 %v480, %v474
    %v499 = vpack.c.b16 %v481, %v475
    %v500 = vpack.c.b16 %v482, %v476
    %v501 = vpack.c.b16 %v483, %v477
    %v502 = vpack.c.b16 %v484, %v478
    %v503 = vpack.c.b16 %v485, %v479
    %v504 = vpack.c.b16 %v492, %v486
    %v505 = vpack.c.b16 %v493, %v487
    %v506 = vpack.c.b16 %v494, %v488
    %v507 = vpack.c.b16 %v495, %v489
    %v508 = vpack.c.b16 %v496, %v490
    %v509 = vpack.c.b16 %v497, %v491
    %v618 = vunpack.c.l.b16 %v359
    %v619 = vunpack.c.l.b16 %v360
    %v620 = vunpack.c.l.b16 %v361
    %v621 = vunpack.c.l.b16 %v362
    %v622 = vunpack.c.l.b16 %v363
    %v623 = vunpack.c.l.b16 %v364
    %v624 = vunpack.c.l.b16 %v365
    %v625 = vunpack.c.l.b16 %v366
    %v626 = vunpack.c.l.b16 %v367
    %v627 = vunpack.c.l.b16 %v368
    %v628 = vunpack.c.l.b16 %v369
    %v629 = vunpack.c.l.b16 %v370
    %v630 = vunpack.c.l.b16 %v371
    %v631 = vunpack.c.l.b16 %v372
    %v632 = vunpack.c.l.b16 %v373
    %v633 = vunpack.c.l.b16 %v374
    %v634 = vunpack.c.l.b16 %v375
    %v635 = vunpack.c.l.b16 %v376
    %v636 = vunpack.c.l.b16 %v377
    %v637 = vunpack.c.l.b16 %v378
    %v638 = vunpack.c.l.b16 %v379
    %v639 = vunpack.c.l.b16 %v380
    %v640 = vunpack.c.l.b16 %v381
    %v641 = vunpack.c.l.b16 %v382
    %v642 = vunpack.c.l.b16 %v383
    %v643 = vunpack.c.l.b16 %v384
    %v644 = vunpack.c.l.b16 %v385
    %v645 = vunpack.c.l.b16 %v386
    %v646 = vunpack.c.l.b16 %v387
    %v647 = vunpack.c.l.b16 %v388
    %v648 = vunpack.c.l.b16 %v389
    %v649 = vunpack.c.l.b16 %v390
    %v650 = vunpack.c.l.b16 %v391
    %v651 = vunpack.c.l.b16 %v392
    %v652 = vunpack.c.l.b16 %v393
    %v653 = vunpack.c.l.b16 %v394
    %v654 = vunpack.c.l.b16 %v395
    %v655 = vunpack.c.l.b16 %v396
    %v656 = vunpack.c.l.b16 %v397
    %v657 = vunpack.c.l.b16 %v398
    %v658 = vunpack.c.l.b16 %v399
    %v659 = vunpack.c.l.b16 %v400
    %v660 = vunpack.c.l.b16 %v401
    %v661 = vunpack.c.l.b16 %v402
    %v662 = vunpack.c.l.b16 %v403
    %v663 = vunpack.c.l.b16 %v404
    %v664 = vunpack.c.l.b16 %v405
    %v665 = vunpack.c.l.b16 %v406
    %v666 = vunpack.c.l.b16 %v407
    %v667 = vunpack.c.l.b16 %v408
    %v668 = vunpack.c.l.b16 %v409
    %v669 = vunpack.c.l.b16 %v410
    %v670 = vunpack.c.l.b16 %v411
    %v671 = vunpack.c.l.b16 %v412
    %v672 = vunpack.c.l.b16 %v413
    %v673 = vunpack.c.l.b16 %v414
    %v674 = vunpack.c.l.b16 %v415
    %v675 = vunpack.c.l.b16 %v416
    %v676 = vunpack.c.l.b16 %v417
    %v677 = vunpack.c.l.b16 %v418
    %v678 = vunpack.c.l.b16 %v419
    %v679 = vunpack.c.l.b16 %v420
    %v680 = vunpack.c.l.b16 %v421
    %v681 = vunpack.c.l.b16 %v422
    %v682 = vunpack.c.l.b16 %v423
    %v683 = vunpack.c.l.b16 %v424
    %v684 = vunpack.c.l.b16 %v425
    %v685 = vunpack.c.l.b16 %v426
    %v686 = vunpack.c.l.b16 %v427
    %v687 = vunpack.c.l.b16 %v428
    %v688 = vunpack.c.l.b16 %v429
    %v689 = vunpack.c.l.b16 %v430
    %v690 = vunpack.c.l.b16 %v431
    %v691 = vunpack.c.l.b16 %v432
    %v692 = vunpack.c.l.b16 %v433
    %v693 = vunpack.c.l.b16 %v434
    %v694 = vunpack.c.l.b16 %v435
    %v695 = vunpack.c.l.b16 %v436
    %v696 = vunpack.c.l.b16 %v437
    %v697 = vunpack.c.l.b16 %v438
    %v698 = vunpack.c.l.b16 %v439
    %v699 = vunpack.c.l.b16 %v440
    %v700 = vunpack.c.l.b16 %v441
    %v701 = vunpack.c.l.b16 %v442
    %v702 = vunpack.c.l.b16 %v443
    %v703 = vunpack.c.l.b16 %v444
    %v704 = vunpack.c.l.b16 %v445
    %v705 = vunpack.c.l.b16 %v446
    %v706 = vunpack.c.l.b16 %v447
    %v707 = vunpack.c.l.b16 %v448
    %v708 = vunpack.c.l.b16 %v449
    %v709 = vunpack.c.l.b16 %v450
    %v710 = vunpack.c.l.b16 %v451
    %v711 = vunpack.c.l.b16 %v452
    %v712 = vunpack.c.l.b16 %v453
    %v713 = vunpack.c.l.b16 %v454
    %v714 = vpack.c.b16 %v619, %v618
    %v715 = vpack.c.b16 %v621, %v620
    %v716 = vpack.c.b16 %v623, %v622
    %v717 = vpack.c.b16 %v625, %v624
    %v718 = vpack.c.b16 %v627, %v626
    %v719 = vpack.c.b16 %v629, %v628
    %v720 = vpack.c.b16 %v631, %v630
    %v721 = vpack.c.b16 %v633, %v632
    %v722 = vpack.c.b16 %v635, %v634
    %v723 = vpack.c.b16 %v637, %v636
    %v724 = vpack.c.b16 %v639, %v638
    %v725 = vpack.c.b16 %v641, %v640
    %v726 = vpack.c.b16 %v643, %v642
    %v727 = vpack.c.b16 %v645, %v644
    %v728 = vpack.c.b16 %v647, %v646
    %v729 = vpack.c.b16 %v649, %v648
    %v730 = vpack.c.b16 %v651, %v650
    %v731 = vpack.c.b16 %v653, %v652
    %v732 = vpack.c.b16 %v655, %v654
    %v733 = vpack.c.b16 %v657, %v656
    %v734 = vpack.c.b16 %v659, %v658
    %v735 = vpack.c.b16 %v661, %v660
    %v736 = vpack.c.b16 %v663, %v662
    %v737 = vpack.c.b16 %v665, %v664
    %v738 = vpack.c.b16 %v667, %v666
    %v739 = vpack.c.b16 %v669, %v668
    %v740 = vpack.c.b16 %v671, %v670
    %v741 = vpack.c.b16 %v673, %v672
    %v742 = vpack.c.b16 %v675, %v674
    %v743 = vpack.c.b16 %v677, %v676
    %v744 = vpack.c.b16 %v679, %v678
    %v745 = vpack.c.b16 %v681, %v680
    %v746 = vpack.c.b16 %v683, %v682
    %v747 = vpack.c.b16 %v685, %v684
    %v748 = vpack.c.b16 %v687, %v686
    %v749 = vpack.c.b16 %v689, %v688
    %v750 = vpack.c.b16 %v691, %v690
    %v751 = vpack.c.b16 %v693, %v692
    %v752 = vpack.c.b16 %v695, %v694
    %v753 = vpack.c.b16 %v697, %v696
    %v754 = vpack.c.b16 %v699, %v698
    %v755 = vpack.c.b16 %v701, %v700
    %v756 = vpack.c.b16 %v703, %v702
    %v757 = vpack.c.b16 %v705, %v704
    %v758 = vpack.c.b16 %v707, %v706
    %v759 = vpack.c.b16 %v709, %v708
    %v760 = vpack.c.b16 %v711, %v710
    %v761 = vpack.c.b16 %v713, %v712
    %810 = vmatprep.subr.bf16.mxu0 0
    %811 = vmatpush1.bf16.msra.mxu0 %v714
    %812 = vmatprep.subr.bf16.mxu0 0
    %813 = vmatpush1.bf16.msra.mxu0 %v715
    %814 = vmatprep.subr.bf16.mxu0 0
    %815 = vmatpush1.bf16.msra.mxu0 %v716
    %816 = vmatprep.subr.bf16.mxu0 0
    %817 = vmatpush1.bf16.msra.mxu0 %v717
    %818 = vmatprep.subr.bf16.mxu0 0
    %819 = vmatpush1.bf16.msra.mxu0 %v718
    %820 = vmatprep.subr.bf16.mxu0 0
    %821 = vmatpush1.bf16.msra.mxu0 %v719
    %822 = vmatprep.subr.bf16.mxu0 0
    %823 = vmatpush1.bf16.msra.mxu0 %v720
    %824 = vmatprep.subr.bf16.mxu0 0
    %825 = vmatpush1.bf16.msra.mxu0 %v721
    %826 = vmatprep.subr.bf16.mxu0 0
    %827 = vmatpush1.bf16.msra.mxu0 %v722
    %828 = vmatprep.subr.bf16.mxu0 0
    %829 = vmatpush1.bf16.msra.mxu0 %v723
    %830 = vmatprep.subr.bf16.mxu0 0
    %831 = vmatpush1.bf16.msra.mxu0 %v724
    %832 = vmatprep.subr.bf16.mxu0 0
    %833 = vmatpush1.bf16.msra.mxu0 %v725
    %834 = vmatprep.subr.bf16.mxu0 0
    %835 = vmatpush1.bf16.msra.mxu0 %v726
    %836 = vmatprep.subr.bf16.mxu0 0
    %837 = vmatpush1.bf16.msra.mxu0 %v727
    %838 = vmatprep.subr.bf16.mxu0 0
    %839 = vmatpush1.bf16.msra.mxu0 %v728
    %840 = vmatprep.subr.bf16.mxu0 0
    %841 = vmatpush1.bf16.msra.mxu0 %v729
    %842 = vmatprep.mubr.bf16.mxu0 %v499
    %843 = vmatmul.mubr.bf16.gmra.mrb[0].mxu0 %v498
    %v844 = vpop.f32.mrb[0].mxu0
    %v845 = vadd.f32 %v460, %v844
    %v846 = vpop.f32.mrb[0].mxu0
    %v847 = vpop.f32.mrb[0].mxu0
    %v848 = vadd.f32 %v460, %v847
    %v849 = vpop.f32.mrb[0].mxu0
    %850 = vmatprep.mubr.bf16.mxu0 %v505
    %851 = vmatmul.mubr.bf16.gmra.mrb[0].mxu0 %v504
    %v852 = vpop.f32.mrb[0].mxu0
    %v853 = vadd.f32 %v460, %v852
    %v854 = vpop.f32.mrb[0].mxu0
    %v855 = vpop.f32.mrb[0].mxu0
    %v856 = vadd.f32 %v460, %v855
    %v857 = vpop.f32.mrb[0].mxu0
    %858 = vdwg.mxu0
    %859 = vmatprep.subr.bf16.mxu0 0
    %860 = vmatpush1.bf16.msra.mxu0 %v730
    %861 = vmatprep.subr.bf16.mxu0 0
    %862 = vmatpush1.bf16.msra.mxu0 %v731
    %863 = vmatprep.subr.bf16.mxu0 0
    %864 = vmatpush1.bf16.msra.mxu0 %v732
    %865 = vmatprep.subr.bf16.mxu0 0
    %866 = vmatpush1.bf16.msra.mxu0 %v733
    %867 = vmatprep.subr.bf16.mxu0 0
    %868 = vmatpush1.bf16.msra.mxu0 %v734
    %869 = vmatprep.subr.bf16.mxu0 0
    %870 = vmatpush1.bf16.msra.mxu0 %v735
    %871 = vmatprep.subr.bf16.mxu0 0
    %872 = vmatpush1.bf16.msra.mxu0 %v736
    %873 = vmatprep.subr.bf16.mxu0 0
    %874 = vmatpush1.bf16.msra.mxu0 %v737
    %875 = vmatprep.subr.bf16.mxu0 0
    %876 = vmatpush1.bf16.msra.mxu0 %v738
    %877 = vmatprep.subr.bf16.mxu0 0
    %878 = vmatpush1.bf16.msra.mxu0 %v739
    %879 = vmatprep.subr.bf16.mxu0 0
    %880 = vmatpush1.bf16.msra.mxu0 %v740
    %881 = vmatprep.subr.bf16.mxu0 0
    %882 = vmatpush1.bf16.msra.mxu0 %v741
    %883 = vmatprep.subr.bf16.mxu0 0
    %884 = vmatpush1.bf16.msra.mxu0 %v742
    %885 = vmatprep.subr.bf16.mxu0 0
    %886 = vmatpush1.bf16.msra.mxu0 %v743
    %887 = vmatprep.subr.bf16.mxu0 0
    %888 = vmatpush1.bf16.msra.mxu0 %v744
    %889 = vmatprep.subr.bf16.mxu0 0
    %890 = vmatpush1.bf16.msra.mxu0 %v745
    %891 = vmatprep.mubr.bf16.mxu0 %v501
    %892 = vmatmul.mubr.bf16.gmra.mrb[0].mxu0 %v500
    %v893 = vpop.f32.mrb[0].mxu0
    %v894 = vadd.f32 %v845, %v893
    %v895 = vpop.f32.mrb[0].mxu0
    %v896 = vpop.f32.mrb[0].mxu0
    %v897 = vadd.f32 %v848, %v896
    %v898 = vpop.f32.mrb[0].mxu0
    %899 = vmatprep.mubr.bf16.mxu0 %v507
    %900 = vmatmul.mubr.bf16.gmra.mrb[0].mxu0 %v506
    %v901 = vpop.f32.mrb[0].mxu0
    %v902 = vadd.f32 %v853, %v901
    %v903 = vpop.f32.mrb[0].mxu0
    %v904 = vpop.f32.mrb[0].mxu0
    %v905 = vadd.f32 %v856, %v904
    %v906 = vpop.f32.mrb[0].mxu0
    %907 = vdwg.mxu0
    %908 = vmatprep.subr.bf16.mxu0 0
    %909 = vmatpush1.bf16.msra.mxu0 %v746
    %910 = vmatprep.subr.bf16.mxu0 0
    %911 = vmatpush1.bf16.msra.mxu0 %v747
    %912 = vmatprep.subr.bf16.mxu0 0
    %913 = vmatpush1.bf16.msra.mxu0 %v748
    %914 = vmatprep.subr.bf16.mxu0 0
    %915 = vmatpush1.bf16.msra.mxu0 %v749
    %916 = vmatprep.subr.bf16.mxu0 0
    %917 = vmatpush1.bf16.msra.mxu0 %v750
    %918 = vmatprep.subr.bf16.mxu0 0
    %919 = vmatpush1.bf16.msra.mxu0 %v751
    %920 = vmatprep.subr.bf16.mxu0 0
    %921 = vmatpush1.bf16.msra.mxu0 %v752
    %922 = vmatprep.subr.bf16.mxu0 0
    %923 = vmatpush1.bf16.msra.mxu0 %v753
    %924 = vmatprep.subr.bf16.mxu0 0
    %925 = vmatpush1.bf16.msra.mxu0 %v754
    %926 = vmatprep.subr.bf16.mxu0 0
    %927 = vmatpush1.bf16.msra.mxu0 %v755
    %928 = vmatprep.subr.bf16.mxu0 0
    %929 = vmatpush1.bf16.msra.mxu0 %v756
    %930 = vmatprep.subr.bf16.mxu0 0
    %931 = vmatpush1.bf16.msra.mxu0 %v757
    %932 = vmatprep.subr.bf16.mxu0 0
    %933 = vmatpush1.bf16.msra.mxu0 %v758
    %934 = vmatprep.subr.bf16.mxu0 0
    %935 = vmatpush1.bf16.msra.mxu0 %v759
    %936 = vmatprep.subr.bf16.mxu0 0
    %937 = vmatpush1.bf16.msra.mxu0 %v760
    %938 = vmatprep.subr.bf16.mxu0 0
    %939 = vmatpush1.bf16.msra.mxu0 %v761
    %940 = vmatprep.mubr.bf16.mxu0 %v503
    %941 = vmatmul.mubr.bf16.gmra.mrb[0].mxu0 %v502
    %v942 = vpop.f32.mrb[0].mxu0
    %v943 = vadd.f32 %v894, %v942
    %v944 = vpop.f32.mrb[0].mxu0
    %v945 = vpop.f32.mrb[0].mxu0
    %v946 = vadd.f32 %v897, %v945
    %v947 = vpop.f32.mrb[0].mxu0
    %948 = vmatprep.mubr.bf16.mxu0 %v509
    %949 = vmatmul.mubr.bf16.gmra.mrb[0].mxu0 %v508
    %v950 = vpop.f32.mrb[0].mxu0
    %v951 = vadd.f32 %v902, %v950
    %v952 = vpop.f32.mrb[0].mxu0
    %v953 = vpop.f32.mrb[0].mxu0
    %v954 = vadd.f32 %v905, %v953
    %v955 = vpop.f32.mrb[0].mxu0
    %956 = vdwg.mxu0
    %v957 = vld [vmem:[#allocation8] sm:$0x1]
    %v958 = vld [vmem:[#allocation10] sm:$0x1]
    %959 = vadd.xlane.f32.xlu0 %v943
    %v960 = vpop.xlane.xlu0 %959
    %961 = vadd.xlane.f32.xlu0 %v946
    %v962 = vpop.xlane.xlu0 %961
    %963 = vadd.xlane.f32.xlu0 %v951
    %v964 = vpop.xlane.xlu0 %963
    %965 = vadd.xlane.f32.xlu0 %v954
    %v966 = vpop.xlane.xlu0 %965
    %v967 = vrcp.pop 128.0
    %v968 = vmul.f32 %v960, %v967
    %v969 = vmul.f32 %v962, %v967
    %v970 = vmul.f32 %v964, %v967
    %v971 = vmul.f32 %v966, %v967
    %v972 = vsub.f32 %v943, %v968
    %v973 = vsub.f32 %v946, %v969
    %v974 = vsub.f32 %v951, %v970
    %v975 = vsub.f32 %v954, %v971
    %v976 = vmul.f32 %v972, %v972
    %v977 = vmul.f32 %v973, %v973
    %v978 = vmul.f32 %v974, %v974
    %v979 = vmul.f32 %v975, %v975
    %980 = vadd.xlane.f32.xlu0 %v976
    %v981 = vpop.xlane.xlu0 %980
    %982 = vadd.xlane.f32.xlu0 %v977
    %v983 = vpop.xlane.xlu0 %982
    %984 = vadd.xlane.f32.xlu0 %v978
    %v985 = vpop.xlane.xlu0 %984
    %986 = vadd.xlane.f32.xlu0 %v979
    %v987 = vpop.xlane.xlu0 %986
    %v988 = vmul.f32 %v981, %v967
    %v989 = vmul.f32 %v983, %v967
    %v990 = vmul.f32 %v985, %v967
    %v991 = vmul.f32 %v987, %v967
    %v992 = vadd.f32 %v988, 1e-06
    %v993 = vadd.f32 %v989, 1e-06
    %v994 = vadd.f32 %v990, 1e-06
    %v995 = vadd.f32 %v991, 1e-06
    %v996 = vrsqrt.pop %v992
    %v997 = vrsqrt.pop %v993
    %v998 = vrsqrt.pop %v994
    %v999 = vrsqrt.pop %v995
    %v1000 = vmul.f32 %v972, %v996
    %v1001 = vmul.f32 %v973, %v997
    %v1002 = vmul.f32 %v974, %v998
    %v1003 = vmul.f32 %v975, %v999
    %v1005 = vlaneseq
    %v1006 = vshrl.u32 %v1005, 7
    %v1007 = vsub.s32 0, %v1006
    %v1008 = vrot.slane %v957, %v1007
    %v1010 = vmul.f32 %v1000, %v1008
    %v1011 = vmul.f32 %v1001, %v1008
    %v1012 = vmul.f32 %v1002, %v1008
    %v1013 = vmul.f32 %v1003, %v1008
    %v1015 = vlaneseq
    %v1016 = vshrl.u32 %v1015, 7
    %v1017 = vsub.s32 0, %v1016
    %v1018 = vrot.slane %v958, %v1017
    %v1020 = vadd.f32 %v1010, %v1018
    %v1021 = vadd.f32 %v1011, %v1018
    %v1022 = vadd.f32 %v1012, %v1018
    %v1023 = vadd.f32 %v1013, %v1018
    %v1024 = vpack.c.bf16 %v1021, %v1020
    %v1025 = vpack.c.bf16 %v1023, %v1022
    %v1026 = vld [vmem:[#allocation11] sm:$0xf]
    %v1027 = vld [vmem:[#allocation11 + $0x4] sm:$0xf]
    %v1028 = vld [vmem:[#allocation11 + $0x8] sm:$0xf]
    %v1029 = vld [vmem:[#allocation11 + $0xc] sm:$0xf]
    %v1030 = vld [vmem:[#allocation11 + $0x10] sm:$0xf]
    %v1031 = vld [vmem:[#allocation11 + $0x14] sm:$0xf]
    %v1032 = vld [vmem:[#allocation11 + $0x18] sm:$0xf]
    %v1033 = vld [vmem:[#allocation11 + $0x1c] sm:$0xf]
    %v1034 = vld [vmem:[#allocation13] sm:$0xff]
    %v1035 = vld [vmem:[#allocation13 + $0x8] sm:$0xff]
    %v1036 = vld [vmem:[#allocation13 + $0x10] sm:$0xff]
    %v1037 = vld [vmem:[#allocation13 + $0x18] sm:$0xff]
    %v1038 = vld [vmem:[#allocation13 + $0x20] sm:$0xff]
    %v1039 = vld [vmem:[#allocation13 + $0x28] sm:$0xff]
    %v1040 = vld [vmem:[#allocation13 + $0x30] sm:$0xff]
    %v1041 = vld [vmem:[#allocation13 + $0x38] sm:$0xff]
    %1043 = vset.pattern.permute.xlu0 0
    %1044 = vperm.xlu0 %1043, %v1034
    %v1045 = vpop.permute.xlu0 %1044
    %1048 = vset.pattern.permute.xlu0 0
    %1049 = vperm.xlu0 %1048, %v1035
    %v1050 = vpop.permute.xlu0 %1049
    %1053 = vset.pattern.permute.xlu0 0
    %1054 = vperm.xlu0 %1053, %v1036
    %v1055 = vpop.permute.xlu0 %1054
    %1058 = vset.pattern.permute.xlu0 0
    %1059 = vperm.xlu0 %1058, %v1037
    %v1060 = vpop.permute.xlu0 %1059
    %1063 = vset.pattern.permute.xlu0 0
    %1064 = vperm.xlu0 %1063, %v1038
    %v1065 = vpop.permute.xlu0 %1064
    %1068 = vset.pattern.permute.xlu0 0
    %1069 = vperm.xlu0 %1068, %v1039
    %v1070 = vpop.permute.xlu0 %1069
    %1073 = vset.pattern.permute.xlu0 0
    %1074 = vperm.xlu0 %1073, %v1040
    %v1075 = vpop.permute.xlu0 %1074
    %1078 = vset.pattern.permute.xlu0 0
    %1079 = vperm.xlu0 %1078, %v1041
    %v1080 = vpop.permute.xlu0 %1079
    %v1090 = vunpack.c.l.b16 %v1026
    %v1091 = vunpack.c.l.b16 %v1027
    %v1092 = vunpack.c.l.b16 %v1028
    %v1093 = vunpack.c.l.b16 %v1029
    %v1094 = vunpack.c.l.b16 %v1030
    %v1095 = vunpack.c.l.b16 %v1031
    %v1096 = vunpack.c.l.b16 %v1032
    %v1097 = vunpack.c.l.b16 %v1033
    %v1098 = vpack.c.b16 %v1091, %v1090
    %v1099 = vpack.c.b16 %v1093, %v1092
    %v1100 = vpack.c.b16 %v1095, %v1094
    %v1101 = vpack.c.b16 %v1097, %v1096
    %vm1102 = vcmask 130048
    %v1104 = vsel %vm1102, %v1098, 0
    %v1107 = vsel %vm1102, %v1099, 0
    %v1110 = vsel %vm1102, %v1100, 0
    %v1113 = vsel %vm1102, %v1101, 0
    %1115 = vmatprep.subr.bf16.mxu0 0
    %1116 = vmatpush1.bf16.msra.mxu0 %v1024
    %1117 = vmatprep.subr.bf16.mxu0 0
    %1118 = vmatpush1.bf16.msra.mxu0 0
    %1119 = vmatprep.subr.bf16.mxu0 0
    %1120 = vmatpush1.bf16.msra.mxu0 0
    %1121 = vmatprep.subr.bf16.mxu0 0
    %1122 = vmatpush1.bf16.msra.mxu0 0
    %1123 = vmatprep.subr.bf16.mxu0 0
    %1124 = vmatpush1.bf16.msra.mxu0 0
    %1125 = vmatprep.subr.bf16.mxu0 0
    %1126 = vmatpush1.bf16.msra.mxu0 0
    %1127 = vmatprep.subr.bf16.mxu0 0
    %1128 = vmatpush1.bf16.msra.mxu0 0
    %1129 = vmatprep.subr.bf16.mxu0 0
    %1130 = vmatpush1.bf16.msra.mxu0 0
    %1131 = vmatprep.subr.bf16.mxu0 0
    %1132 = vmatpush1.bf16.msra.mxu0 0
    %1133 = vmatprep.subr.bf16.mxu0 0
    %1134 = vmatpush1.bf16.msra.mxu0 0
    %1135 = vmatprep.subr.bf16.mxu0 0
    %1136 = vmatpush1.bf16.msra.mxu0 0
    %1137 = vmatprep.subr.bf16.mxu0 0
    %1138 = vmatpush1.bf16.msra.mxu0 0
    %1139 = vmatprep.subr.bf16.mxu0 0
    %1140 = vmatpush1.bf16.msra.mxu0 0
    %1141 = vmatprep.subr.bf16.mxu0 0
    %1142 = vmatpush1.bf16.msra.mxu0 0
    %1143 = vmatprep.subr.bf16.mxu0 0
    %1144 = vmatpush1.bf16.msra.mxu0 0
    %1145 = vmatprep.subr.bf16.mxu0 0
    %1146 = vmatpush1.bf16.msra.mxu0 0
    %1147 = vmatprep.mubr.bf16.mxu0 0
    %1148 = vmatmul.mubr.bf16.gmra.mrb[0].mxu0 %v1104
    %v1149 = vpop.f32.mrb[0].mxu0
    %v1150 = vadd.f32 %v1045, %v1149
    %v1151 = vpop.f32.mrb[0].mxu0
    %v1152 = vpop.f32.mrb[0].mxu0
    %v1153 = vadd.f32 %v1050, %v1152
    %v1154 = vpop.f32.mrb[0].mxu0
    %1155 = vmatprep.mubr.bf16.mxu0 0
    %1156 = vmatmul.mubr.bf16.gmra.mrb[0].mxu0 %v1107
    %v1157 = vpop.f32.mrb[0].mxu0
    %v1158 = vadd.f32 %v1055, %v1157
    %v1159 = vpop.f32.mrb[0].mxu0
    %v1160 = vpop.f32.mrb[0].mxu0
    %v1161 = vadd.f32 %v1060, %v1160
    %v1162 = vpop.f32.mrb[0].mxu0
    %1163 = vmatprep.mubr.bf16.mxu0 0
    %1164 = vmatmul.mubr.bf16.gmra.mrb[0].mxu0 %v1110
    %v1165 = vpop.f32.mrb[0].mxu0
    %v1166 = vadd.f32 %v1065, %v1165
    %v1167 = vpop.f32.mrb[0].mxu0
    %v1168 = vpop.f32.mrb[0].mxu0
    %v1169 = vadd.f32 %v1070, %v1168
    %v1170 = vpop.f32.mrb[0].mxu0
    %1171 = vmatprep.mubr.bf16.mxu0 0
    %1172 = vmatmul.mubr.bf16.gmra.mrb[0].mxu0 %v1113
    %v1173 = vpop.f32.mrb[0].mxu0
    %v1174 = vadd.f32 %v1075, %v1173
    %v1175 = vpop.f32.mrb[0].mxu0
    %v1176 = vpop.f32.mrb[0].mxu0
    %v1177 = vadd.f32 %v1080, %v1176
    %v1178 = vpop.f32.mrb[0].mxu0
    %1179 = vdwg.mxu0
    %1180 = vmatprep.subr.bf16.mxu0 0
    %1181 = vmatpush1.bf16.msra.mxu0 %v1025
    %1182 = vmatprep.subr.bf16.mxu0 0
    %1183 = vmatpush1.bf16.msra.mxu0 0
    %1184 = vmatprep.subr.bf16.mxu0 0
    %1185 = vmatpush1.bf16.msra.mxu0 0
    %1186 = vmatprep.subr.bf16.mxu0 0
    %1187 = vmatpush1.bf16.msra.mxu0 0
    %1188 = vmatprep.subr.bf16.mxu0 0
    %1189 = vmatpush1.bf16.msra.mxu0 0
    %1190 = vmatprep.subr.bf16.mxu0 0
    %1191 = vmatpush1.bf16.msra.mxu0 0
    %1192 = vmatprep.subr.bf16.mxu0 0
    %1193 = vmatpush1.bf16.msra.mxu0 0
    %1194 = vmatprep.subr.bf16.mxu0 0
    %1195 = vmatpush1.bf16.msra.mxu0 0
    %1196 = vmatprep.subr.bf16.mxu0 0
    %1197 = vmatpush1.bf16.msra.mxu0 0
    %1198 = vmatprep.subr.bf16.mxu0 0
    %1199 = vmatpush1.bf16.msra.mxu0 0
    %1200 = vmatprep.subr.bf16.mxu0 0
    %1201 = vmatpush1.bf16.msra.mxu0 0
    %1202 = vmatprep.subr.bf16.mxu0 0
    %1203 = vmatpush1.bf16.msra.mxu0 0
    %1204 = vmatprep.subr.bf16.mxu0 0
    %1205 = vmatpush1.bf16.msra.mxu0 0
    %1206 = vmatprep.subr.bf16.mxu0 0
    %1207 = vmatpush1.bf16.msra.mxu0 0
    %1208 = vmatprep.subr.bf16.mxu0 0
    %1209 = vmatpush1.bf16.msra.mxu0 0
    %1210 = vmatprep.subr.bf16.mxu0 0
    %1211 = vmatpush1.bf16.msra.mxu0 0
    %1212 = vmatprep.mubr.bf16.mxu0 0
    %1213 = vmatmul.mubr.bf16.gmra.mrb[0].mxu0 %v1104
    %v1214 = vpop.f32.mrb[0].mxu0
    %v1215 = vadd.f32 %v1045, %v1214
    %v1216 = vpop.f32.mrb[0].mxu0
    %v1217 = vpop.f32.mrb[0].mxu0
    %v1218 = vadd.f32 %v1050, %v1217
    %v1219 = vpop.f32.mrb[0].mxu0
    %1220 = vmatprep.mubr.bf16.mxu0 0
    %1221 = vmatmul.mubr.bf16.gmra.mrb[0].mxu0 %v1107
    %v1222 = vpop.f32.mrb[0].mxu0
    %v1223 = vadd.f32 %v1055, %v1222
    %v1224 = vpop.f32.mrb[0].mxu0
    %v1225 = vpop.f32.mrb[0].mxu0
    %v1226 = vadd.f32 %v1060, %v1225
    %v1227 = vpop.f32.mrb[0].mxu0
    %1228 = vmatprep.mubr.bf16.mxu0 0
    %1229 = vmatmul.mubr.bf16.gmra.mrb[0].mxu0 %v1110
    %v1230 = vpop.f32.mrb[0].mxu0
    %v1231 = vadd.f32 %v1065, %v1230
    %v1232 = vpop.f32.mrb[0].mxu0
    %v1233 = vpop.f32.mrb[0].mxu0
    %v1234 = vadd.f32 %v1070, %v1233
    %v1235 = vpop.f32.mrb[0].mxu0
    %1236 = vmatprep.mubr.bf16.mxu0 0
    %1237 = vmatmul.mubr.bf16.gmra.mrb[0].mxu0 %v1113
    %v1238 = vpop.f32.mrb[0].mxu0
    %v1239 = vadd.f32 %v1075, %v1238
    %v1240 = vpop.f32.mrb[0].mxu0
    %v1241 = vpop.f32.mrb[0].mxu0
    %v1242 = vadd.f32 %v1080, %v1241
    %v1243 = vpop.f32.mrb[0].mxu0
    %1244 = vdwg.mxu0
    %v1245 = vmul.f32 %v1150, 0.5
    %v1246 = vmul.f32 %v1153, 0.5
    %v1247 = vmul.f32 %v1158, 0.5
    %v1248 = vmul.f32 %v1161, 0.5
    %v1249 = vmul.f32 %v1166, 0.5
    %v1250 = vmul.f32 %v1169, 0.5
    %v1251 = vmul.f32 %v1174, 0.5
    %v1252 = vmul.f32 %v1177, 0.5
    %v1253 = vmul.f32 %v1215, 0.5
    %v1254 = vmul.f32 %v1218, 0.5
    %v1255 = vmul.f32 %v1223, 0.5
    %v1256 = vmul.f32 %v1226, 0.5
    %v1257 = vmul.f32 %v1231, 0.5
    %v1258 = vmul.f32 %v1234, 0.5
    %v1259 = vmul.f32 %v1239, 0.5
    %v1260 = vmul.f32 %v1242, 0.5
    %v1261 = vmul.f32 %v1150, 0.044715
    %v1262 = vmul.f32 %v1153, 0.044715
    %v1263 = vmul.f32 %v1158, 0.044715
    %v1264 = vmul.f32 %v1161, 0.044715
    %v1265 = vmul.f32 %v1166, 0.044715
    %v1266 = vmul.f32 %v1169, 0.044715
    %v1267 = vmul.f32 %v1174, 0.044715
    %v1268 = vmul.f32 %v1177, 0.044715
    %v1269 = vmul.f32 %v1215, 0.044715
    %v1270 = vmul.f32 %v1218, 0.044715
    %v1271 = vmul.f32 %v1223, 0.044715
    %v1272 = vmul.f32 %v1226, 0.044715
    %v1273 = vmul.f32 %v1231, 0.044715
    %v1274 = vmul.f32 %v1234, 0.044715
    %v1275 = vmul.f32 %v1239, 0.044715
    %v1276 = vmul.f32 %v1242, 0.044715
    %v1277 = vmul.f32 %v1261, %v1150
    %v1278 = vmul.f32 %v1262, %v1153
    %v1279 = vmul.f32 %v1263, %v1158
    %v1280 = vmul.f32 %v1264, %v1161
    %v1281 = vmul.f32 %v1265, %v1166
    %v1282 = vmul.f32 %v1266, %v1169
    %v1283 = vmul.f32 %v1267, %v1174
    %v1284 = vmul.f32 %v1268, %v1177
    %v1285 = vmul.f32 %v1269, %v1215
    %v1286 = vmul.f32 %v1270, %v1218
    %v1287 = vmul.f32 %v1271, %v1223
    %v1288 = vmul.f32 %v1272, %v1226
    %v1289 = vmul.f32 %v1273, %v1231
    %v1290 = vmul.f32 %v1274, %v1234
    %v1291 = vmul.f32 %v1275, %v1239
    %v1292 = vmul.f32 %v1276, %v1242
    %v1293 = vmul.f32 %v1277, %v1150
    %v1294 = vmul.f32 %v1278, %v1153
    %v1295 = vmul.f32 %v1279, %v1158
    %v1296 = vmul.f32 %v1280, %v1161
    %v1297 = vmul.f32 %v1281, %v1166
    %v1298 = vmul.f32 %v1282, %v1169
    %v1299 = vmul.f32 %v1283, %v1174
    %v1300 = vmul.f32 %v1284, %v1177
    %v1301 = vmul.f32 %v1285, %v1215
    %v1302 = vmul.f32 %v1286, %v1218
    %v1303 = vmul.f32 %v1287, %v1223
    %v1304 = vmul.f32 %v1288, %v1226
    %v1305 = vmul.f32 %v1289, %v1231
    %v1306 = vmul.f32 %v1290, %v1234
    %v1307 = vmul.f32 %v1291, %v1239
    %v1308 = vmul.f32 %v1292, %v1242
    %v1309 = vadd.f32 %v1150, %v1293
    %v1310 = vadd.f32 %v1153, %v1294
    %v1311 = vadd.f32 %v1158, %v1295
    %v1312 = vadd.f32 %v1161, %v1296
    %v1313 = vadd.f32 %v1166, %v1297
    %v1314 = vadd.f32 %v1169, %v1298
    %v1315 = vadd.f32 %v1174, %v1299
    %v1316 = vadd.f32 %v1177, %v1300
    %v1317 = vadd.f32 %v1215, %v1301
    %v1318 = vadd.f32 %v1218, %v1302
    %v1319 = vadd.f32 %v1223, %v1303
    %v1320 = vadd.f32 %v1226, %v1304
    %v1321 = vadd.f32 %v1231, %v1305
    %v1322 = vadd.f32 %v1234, %v1306
    %v1323 = vadd.f32 %v1239, %v1307
    %v1324 = vadd.f32 %v1242, %v1308
    %v1325 = vmul.f32 %v1309, 0.7978846
    %v1326 = vmul.f32 %v1310, 0.7978846
    %v1327 = vmul.f32 %v1311, 0.7978846
    %v1328 = vmul.f32 %v1312, 0.7978846
    %v1329 = vmul.f32 %v1313, 0.7978846
    %v1330 = vmul.f32 %v1314, 0.7978846
    %v1331 = vmul.f32 %v1315, 0.7978846
    %v1332 = vmul.f32 %v1316, 0.7978846
    %v1333 = vmul.f32 %v1317, 0.7978846
    %v1334 = vmul.f32 %v1318, 0.7978846
    %v1335 = vmul.f32 %v1319, 0.7978846
    %v1336 = vmul.f32 %v1320, 0.7978846
    %v1337 = vmul.f32 %v1321, 0.7978846
    %v1338 = vmul.f32 %v1322, 0.7978846
    %v1339 = vmul.f32 %v1323, 0.7978846
    %v1340 = vmul.f32 %v1324, 0.7978846
    %v1341 = vtanh.pop %v1325
    %v1342 = vtanh.pop %v1326
    %v1343 = vtanh.pop %v1327
    %v1344 = vtanh.pop %v1328
    %v1345 = vtanh.pop %v1329
    %v1346 = vtanh.pop %v1330
    %v1347 = vtanh.pop %v1331
    %v1348 = vtanh.pop %v1332
    %v1349 = vtanh.pop %v1333
    %v1350 = vtanh.pop %v1334
    %v1351 = vtanh.pop %v1335
    %v1352 = vtanh.pop %v1336
    %v1353 = vtanh.pop %v1337
    %v1354 = vtanh.pop %v1338
    %v1355 = vtanh.pop %v1339
    %v1356 = vtanh.pop %v1340
    %v1357 = vadd.f32 %v1341, 1.0
    %v1358 = vadd.f32 %v1342, 1.0
    %v1359 = vadd.f32 %v1343, 1.0
    %v1360 = vadd.f32 %v1344, 1.0
    %v1361 = vadd.f32 %v1345, 1.0
    %v1362 = vadd.f32 %v1346, 1.0
    %v1363 = vadd.f32 %v1347, 1.0
    %v1364 = vadd.f32 %v1348, 1.0
    %v1365 = vadd.f32 %v1349, 1.0
    %v1366 = vadd.f32 %v1350, 1.0
    %v1367 = vadd.f32 %v1351, 1.0
    %v1368 = vadd.f32 %v1352, 1.0
    %v1369 = vadd.f32 %v1353, 1.0
    %v1370 = vadd.f32 %v1354, 1.0
    %v1371 = vadd.f32 %v1355, 1.0
    %v1372 = vadd.f32 %v1356, 1.0
    %v1373 = vmul.f32 %v1245, %v1357
    %v1374 = vmul.f32 %v1246, %v1358
    %v1375 = vmul.f32 %v1247, %v1359
    %v1376 = vmul.f32 %v1248, %v1360
    %v1377 = vmul.f32 %v1249, %v1361
    %v1378 = vmul.f32 %v1250, %v1362
    %v1379 = vmul.f32 %v1251, %v1363
    %v1380 = vmul.f32 %v1252, %v1364
    %v1381 = vmul.f32 %v1253, %v1365
    %v1382 = vmul.f32 %v1254, %v1366
    %v1383 = vmul.f32 %v1255, %v1367
    %v1384 = vmul.f32 %v1256, %v1368
    %v1385 = vmul.f32 %v1257, %v1369
    %v1386 = vmul.f32 %v1258, %v1370
    %v1387 = vmul.f32 %v1259, %v1371
    %v1388 = vmul.f32 %v1260, %v1372
    %v1389 = vpack.c.bf16 %v1374, %v1373
    %v1390 = vpack.c.bf16 %v1376, %v1375
    %v1391 = vpack.c.bf16 %v1378, %v1377
    %v1392 = vpack.c.bf16 %v1380, %v1379
    %v1393 = vpack.c.bf16 %v1382, %v1381
    %v1394 = vpack.c.bf16 %v1384, %v1383
    %v1395 = vpack.c.bf16 %v1386, %v1385
    %v1396 = vpack.c.bf16 %v1388, %v1387
    %v1397 = vld [vmem:[#allocation14] sm:$0xf]
    %v1398 = vld [vmem:[#allocation14 + $0x4] sm:$0xf]
    %v1399 = vld [vmem:[#allocation16] sm:$0xff]
    %v1400 = vld [vmem:[#allocation16 + $0x8] sm:$0xff]
    %1402 = vset.pattern.permute.xlu0 0
    %1403 = vperm.xlu0 %1402, %v1399
    %v1404 = vpop.permute.xlu0 %1403
    %1407 = vset.pattern.permute.xlu0 0
    %1408 = vperm.xlu0 %1407, %v1400
    %v1409 = vpop.permute.xlu0 %1408
    %v1413 = vunpack.c.l.b16 %v1397
    %v1414 = vunpack.c.l.b16 %v1398
    %v1415 = vpack.c.b16 %v1414, %v1413
    %vm1416 = vcmask 523264
    %v1418 = vsel %vm1416, %v1415, 0
    %1420 = vmatprep.subr.bf16.mxu0 0
    %1421 = vmatpush1.bf16.msra.mxu0 %v1389
    %1422 = vmatprep.subr.bf16.mxu0 0
    %1423 = vmatpush1.bf16.msra.mxu0 %v1390
    %1424 = vmatprep.subr.bf16.mxu0 0
    %1425 = vmatpush1.bf16.msra.mxu0 %v1391
    %1426 = vmatprep.subr.bf16.mxu0 0
    %1427 = vmatpush1.bf16.msra.mxu0 %v1392
    %1428 = vmatprep.subr.bf16.mxu0 0
    %1429 = vmatpush1.bf16.msra.mxu0 0
    %1430 = vmatprep.subr.bf16.mxu0 0
    %1431 = vmatpush1.bf16.msra.mxu0 0
    %1432 = vmatprep.subr.bf16.mxu0 0
    %1433 = vmatpush1.bf16.msra.mxu0 0
    %1434 = vmatprep.subr.bf16.mxu0 0
    %1435 = vmatpush1.bf16.msra.mxu0 0
    %1436 = vmatprep.subr.bf16.mxu0 0
    %1437 = vmatpush1.bf16.msra.mxu0 0
    %1438 = vmatprep.subr.bf16.mxu0 0
    %1439 = vmatpush1.bf16.msra.mxu0 0
    %1440 = vmatprep.subr.bf16.mxu0 0
    %1441 = vmatpush1.bf16.msra.mxu0 0
    %1442 = vmatprep.subr.bf16.mxu0 0
    %1443 = vmatpush1.bf16.msra.mxu0 0
    %1444 = vmatprep.subr.bf16.mxu0 0
    %1445 = vmatpush1.bf16.msra.mxu0 0
    %1446 = vmatprep.subr.bf16.mxu0 0
    %1447 = vmatpush1.bf16.msra.mxu0 0
    %1448 = vmatprep.subr.bf16.mxu0 0
    %1449 = vmatpush1.bf16.msra.mxu0 0
    %1450 = vmatprep.subr.bf16.mxu0 0
    %1451 = vmatpush1.bf16.msra.mxu0 0
    %1452 = vmatprep.mubr.bf16.mxu0 0
    %1453 = vmatmul.mubr.bf16.gmra.mrb[0].mxu0 %v1418
    %v1454 = vpop.f32.mrb[0].mxu0
    %v1455 = vadd.f32 %v1404, %v1454
    %v1456 = vpop.f32.mrb[0].mxu0
    %v1457 = vpop.f32.mrb[0].mxu0
    %v1458 = vadd.f32 %v1409, %v1457
    %v1459 = vpop.f32.mrb[0].mxu0
    %1460 = vdwg.mxu0
    %1461 = vmatprep.subr.bf16.mxu0 0
    %1462 = vmatpush1.bf16.msra.mxu0 %v1393
    %1463 = vmatprep.subr.bf16.mxu0 0
    %1464 = vmatpush1.bf16.msra.mxu0 %v1394
    %1465 = vmatprep.subr.bf16.mxu0 0
    %1466 = vmatpush1.bf16.msra.mxu0 %v1395
    %1467 = vmatprep.subr.bf16.mxu0 0
    %1468 = vmatpush1.bf16.msra.mxu0 %v1396
    %1469 = vmatprep.subr.bf16.mxu0 0
    %1470 = vmatpush1.bf16.msra.mxu0 0
    %1471 = vmatprep.subr.bf16.mxu0 0
    %1472 = vmatpush1.bf16.msra.mxu0 0
    %1473 = vmatprep.subr.bf16.mxu0 0
    %1474 = vmatpush1.bf16.msra.mxu0 0
    %1475 = vmatprep.subr.bf16.mxu0 0
    %1476 = vmatpush1.bf16.msra.mxu0 0
    %1477 = vmatprep.subr.bf16.mxu0 0
    %1478 = vmatpush1.bf16.msra.mxu0 0
    %1479 = vmatprep.subr.bf16.mxu0 0
    %1480 = vmatpush1.bf16.msra.mxu0 0
    %1481 = vmatprep.subr.bf16.mxu0 0
    %1482 = vmatpush1.bf16.msra.mxu0 0
    %1483 = vmatprep.subr.bf16.mxu0 0
    %1484 = vmatpush1.bf16.msra.mxu0 0
    %1485 = vmatprep.subr.bf16.mxu0 0
    %1486 = vmatpush1.bf16.msra.mxu0 0
    %1487 = vmatprep.subr.bf16.mxu0 0
    %1488 = vmatpush1.bf16.msra.mxu0 0
    %1489 = vmatprep.subr.bf16.mxu0 0
    %1490 = vmatpush1.bf16.msra.mxu0 0
    %1491 = vmatprep.subr.bf16.mxu0 0
    %1492 = vmatpush1.bf16.msra.mxu0 0
    %1493 = vmatprep.mubr.bf16.mxu0 0
    %1494 = vmatmul.mubr.bf16.gmra.mrb[0].mxu0 %v1418
    %v1495 = vpop.f32.mrb[0].mxu0
    %v1496 = vadd.f32 %v1404, %v1495
    %v1497 = vpop.f32.mrb[0].mxu0
    %v1498 = vpop.f32.mrb[0].mxu0
    %v1499 = vadd.f32 %v1409, %v1498
    %v1500 = vpop.f32.mrb[0].mxu0
    %1501 = vdwg.mxu0
    %v1502 = vadd.f32 %v943, %v1455
    %v1503 = vadd.f32 %v946, %v1458
    %v1504 = vadd.f32 %v951, %v1496
    %v1505 = vadd.f32 %v954, %v1499
    %v1506 = vld [vmem:[#allocation17] sm:$0x1]
    %v1507 = vld [vmem:[#allocation19] sm:$0x1]
    %1508 = vadd.xlane.f32.xlu0 %v1502
    %v1509 = vpop.xlane.xlu0 %1508
    %1510 = vadd.xlane.f32.xlu0 %v1503
    %v1511 = vpop.xlane.xlu0 %1510
    %1512 = vadd.xlane.f32.xlu0 %v1504
    %v1513 = vpop.xlane.xlu0 %1512
    %1514 = vadd.xlane.f32.xlu0 %v1505
    %v1515 = vpop.xlane.xlu0 %1514
    %v1516 = vmul.f32 %v1509, %v967
    %v1517 = vmul.f32 %v1511, %v967
    %v1518 = vmul.f32 %v1513, %v967
    %v1519 = vmul.f32 %v1515, %v967
    %v1520 = vsub.f32 %v1502, %v1516
    %v1521 = vsub.f32 %v1503, %v1517
    %v1522 = vsub.f32 %v1504, %v1518
    %v1523 = vsub.f32 %v1505, %v1519
    %v1524 = vmul.f32 %v1520, %v1520
    %v1525 = vmul.f32 %v1521, %v1521
    %v1526 = vmul.f32 %v1522, %v1522
    %v1527 = vmul.f32 %v1523, %v1523
    %1528 = vadd.xlane.f32.xlu0 %v1524
    %v1529 = vpop.xlane.xlu0 %1528
    %1530 = vadd.xlane.f32.xlu0 %v1525
    %v1531 = vpop.xlane.xlu0 %1530
    %1532 = vadd.xlane.f32.xlu0 %v1526
    %v1533 = vpop.xlane.xlu0 %1532
    %1534 = vadd.xlane.f32.xlu0 %v1527
    %v1535 = vpop.xlane.xlu0 %1534
    %v1536 = vmul.f32 %v1529, %v967
    %v1537 = vmul.f32 %v1531, %v967
    %v1538 = vmul.f32 %v1533, %v967
    %v1539 = vmul.f32 %v1535, %v967
    %v1540 = vadd.f32 %v1536, 1e-06
    %v1541 = vadd.f32 %v1537, 1e-06
    %v1542 = vadd.f32 %v1538, 1e-06
    %v1543 = vadd.f32 %v1539, 1e-06
    %v1544 = vrsqrt.pop %v1540
    %v1545 = vrsqrt.pop %v1541
    %v1546 = vrsqrt.pop %v1542
    %v1547 = vrsqrt.pop %v1543
    %v1548 = vmul.f32 %v1520, %v1544
    %v1549 = vmul.f32 %v1521, %v1545
    %v1550 = vmul.f32 %v1522, %v1546
    %v1551 = vmul.f32 %v1523, %v1547
    %v1553 = vlaneseq
    %v1554 = vshrl.u32 %v1553, 7
    %v1555 = vsub.s32 0, %v1554
    %v1556 = vrot.slane %v1506, %v1555
    %v1558 = vmul.f32 %v1548, %v1556
    %v1559 = vmul.f32 %v1549, %v1556
    %v1560 = vmul.f32 %v1550, %v1556
    %v1561 = vmul.f32 %v1551, %v1556
    %v1563 = vlaneseq
    %v1564 = vshrl.u32 %v1563, 7
    %v1565 = vsub.s32 0, %v1564
    %v1566 = vrot.slane %v1507, %v1565
    %v1568 = vadd.f32 %v1558, %v1566
    %v1569 = vadd.f32 %v1559, %v1566
    %v1570 = vadd.f32 %v1560, %v1566
    %v1571 = vadd.f32 %v1561, %v1566
    %v1572 = vpack.c.bf16 %v1569, %v1568
    %v1573 = vpack.c.bf16 %v1571, %v1570
    %v1574 = vld [vmem:[#allocation20] sm:$0xff]
    %v1575 = vld [vmem:[#allocation20 + $0x8] sm:$0xff]
    %v1576 = vld [vmem:[#allocation20 + $0x10] sm:$0xff]
    %v1577 = vld [vmem:[#allocation20 + $0x18] sm:$0xff]
    %v1578 = vld [vmem:[#allocation20 + $0x20] sm:$0xff]
    %v1579 = vld [vmem:[#allocation20 + $0x28] sm:$0xff]
    %v1580 = vld [vmem:[#allocation20 + $0x30] sm:$0xff]
    %v1581 = vld [vmem:[#allocation20 + $0x38] sm:$0xff]
    %v1582 = vld [vmem:[#allocation20 + $0x40] sm:$0xff]
    %v1583 = vld [vmem:[#allocation20 + $0x48] sm:$0xff]
    %v1584 = vld [vmem:[#allocation20 + $0x50] sm:$0xff]
    %v1585 = vld [vmem:[#allocation20 + $0x58] sm:$0xff]
    %v1586 = vld [vmem:[#allocation20 + $0x60] sm:$0xff]
    %v1587 = vld [vmem:[#allocation20 + $0x68] sm:$0xff]
    %v1588 = vld [vmem:[#allocation20 + $0x70] sm:$0xff]
    %v1589 = vld [vmem:[#allocation20 + $0x78] sm:$0xff]
    %v1590 = vld [vmem:[#allocation22] sm:$0x3]
    %v1592 = vlaneseq
    %v1593 = vshrl.u32 %v1592, 7
    %v1594 = vsub.s32 0, %v1593
    %v1595 = vrot.slane %v1590, %v1594
    %v1596 = vlaneseq
    %v1597 = vshrl.u32 %v1596, 7
    %v1598 = vsub.s32 1, %v1597
    %v1599 = vrot.slane %v1590, %v1598
    %v1618 = vunpack.c.l.b16 %v1574
    %v1619 = vunpack.c.h.b16 %v1574
    %v1620 = vunpack.c.l.b16 %v1575
    %v1621 = vunpack.c.h.b16 %v1575
    %v1622 = vunpack.c.l.b16 %v1576
    %v1623 = vunpack.c.h.b16 %v1576
    %v1624 = vunpack.c.l.b16 %v1577
    %v1625 = vunpack.c.h.b16 %v1577
    %v1626 = vunpack.c.l.b16 %v1578
    %v1627 = vunpack.c.h.b16 %v1578
    %v1628 = vunpack.c.l.b16 %v1579
    %v1629 = vunpack.c.h.b16 %v1579
    %v1630 = vunpack.c.l.b16 %v1580
    %v1631 = vunpack.c.h.b16 %v1580
    %v1632 = vunpack.c.l.b16 %v1581
    %v1633 = vunpack.c.h.b16 %v1581
    %v1634 = vunpack.c.l.b16 %v1582
    %v1635 = vunpack.c.h.b16 %v1582
    %v1636 = vunpack.c.l.b16 %v1583
    %v1637 = vunpack.c.h.b16 %v1583
    %v1638 = vunpack.c.l.b16 %v1584
    %v1639 = vunpack.c.h.b16 %v1584
    %v1640 = vunpack.c.l.b16 %v1585
    %v1641 = vunpack.c.h.b16 %v1585
    %v1642 = vunpack.c.l.b16 %v1586
    %v1643 = vunpack.c.h.b16 %v1586
    %v1644 = vunpack.c.l.b16 %v1587
    %v1645 = vunpack.c.h.b16 %v1587
    %v1646 = vunpack.c.l.b16 %v1588
    %v1647 = vunpack.c.h.b16 %v1588
    %v1648 = vunpack.c.l.b16 %v1589
    %v1649 = vunpack.c.h.b16 %v1589
    %v1650 = vpack.c.b16 %v1620, %v1618
    %v1651 = vpack.c.b16 %v1621, %v1619
    %v1652 = vpack.c.b16 %v1624, %v1622
    %v1653 = vpack.c.b16 %v1625, %v1623
    %v1654 = vpack.c.b16 %v1628, %v1626
    %v1655 = vpack.c.b16 %v1629, %v1627
    %v1656 = vpack.c.b16 %v1632, %v1630
    %v1657 = vpack.c.b16 %v1633, %v1631
    %v1658 = vpack.c.b16 %v1636, %v1634
    %v1659 = vpack.c.b16 %v1637, %v1635
    %v1660 = vpack.c.b16 %v1640, %v1638
    %v1661 = vpack.c.b16 %v1641, %v1639
    %v1662 = vpack.c.b16 %v1644, %v1642
    %v1663 = vpack.c.b16 %v1645, %v1643
    %v1664 = vpack.c.b16 %v1648, %v1646
    %v1665 = vpack.c.b16 %v1649, %v1647
    %1682 = vmatprep.subr.bf16.mxu0 %v1651
    %1683 = vmatpush1.bf16.msra.mxu0 %v1650
    %1684 = vmatprep.subr.bf16.mxu0 %v1653
    %1685 = vmatpush1.bf16.msra.mxu0 %v1652
    %1686 = vmatprep.subr.bf16.mxu0 %v1655
    %1687 = vmatpush1.bf16.msra.mxu0 %v1654
    %1688 = vmatprep.subr.bf16.mxu0 %v1657
    %1689 = vmatpush1.bf16.msra.mxu0 %v1656
    %1690 = vmatprep.subr.bf16.mxu0 %v1659
    %1691 = vmatpush1.bf16.msra.mxu0 %v1658
    %1692 = vmatprep.subr.bf16.mxu0 %v1661
    %1693 = vmatpush1.bf16.msra.mxu0 %v1660
    %1694 = vmatprep.subr.bf16.mxu0 %v1663
    %1695 = vmatpush1.bf16.msra.mxu0 %v1662
    %1696 = vmatprep.subr.bf16.mxu0 %v1665
    %1697 = vmatpush1.bf16.msra.mxu0 %v1664
    %1698 = vmatprep.subr.bf16.mxu0 0
    %1699 = vmatpush1.bf16.msra.mxu0 0
    %1700 = vmatprep.subr.bf16.mxu0 0
    %1701 = vmatpush1.bf16.msra.mxu0 0
    %1702 = vmatprep.subr.bf16.mxu0 0
    %1703 = vmatpush1.bf16.msra.mxu0 0
    %1704 = vmatprep.subr.bf16.mxu0 0
    %1705 = vmatpush1.bf16.msra.mxu0 0
    %1706 = vmatprep.subr.bf16.mxu0 0
    %1707 = vmatpush1.bf16.msra.mxu0 0
    %1708 = vmatprep.subr.bf16.mxu0 0
    %1709 = vmatpush1.bf16.msra.mxu0 0
    %1710 = vmatprep.subr.bf16.mxu0 0
    %1711 = vmatpush1.bf16.msra.mxu0 0
    %1712 = vmatprep.subr.bf16.mxu0 0
    %1713 = vmatpush1.bf16.msra.mxu0 0
    %1714 = vmatprep.mubr.bf16.mxu0 0
    %1715 = vmatmul.mubr.bf16.gmra.mrb[0].mxu0 %v1572
    %v1716 = vpop.f32.mrb[0].mxu0
    %v1717 = vadd.f32 %v1595, %v1716
    %v1718 = vpop.f32.mrb[0].mxu0
    %v1719 = vadd.f32 %v1599, %v1718
    %v1720 = vpop.f32.mrb[0].mxu0
    %v1721 = vadd.f32 %v1595, %v1720
    %v1722 = vpop.f32.mrb[0].mxu0
    %v1723 = vadd.f32 %v1599, %v1722
    %1724 = vmatprep.mubr.bf16.mxu0 0
    %1725 = vmatmul.mubr.bf16.gmra.mrb[0].mxu0 %v1573
    %v1726 = vpop.f32.mrb[0].mxu0
    %v1727 = vadd.f32 %v1595, %v1726
    %v1728 = vpop.f32.mrb[0].mxu0
    %v1729 = vadd.f32 %v1599, %v1728
    %v1730 = vpop.f32.mrb[0].mxu0
    %v1731 = vadd.f32 %v1595, %v1730
    %v1732 = vpop.f32.mrb[0].mxu0
    %v1733 = vadd.f32 %v1599, %v1732
    %1734 = vdwg.mxu0
    %v1735 = vmul.f32 %v1717, 0.5
    %v1736 = vmul.f32 %v1719, 0.5
    %v1737 = vmul.f32 %v1721, 0.5
    %v1738 = vmul.f32 %v1723, 0.5
    %v1739 = vmul.f32 %v1727, 0.5
    %v1740 = vmul.f32 %v1729, 0.5
    %v1741 = vmul.f32 %v1731, 0.5
    %v1742 = vmul.f32 %v1733, 0.5
    %v1743 = vmul.f32 %v1717, 0.044715
    %v1744 = vmul.f32 %v1719, 0.044715
    %v1745 = vmul.f32 %v1721, 0.044715
    %v1746 = vmul.f32 %v1723, 0.044715
    %v1747 = vmul.f32 %v1727, 0.044715
    %v1748 = vmul.f32 %v1729, 0.044715
    %v1749 = vmul.f32 %v1731, 0.044715
    %v1750 = vmul.f32 %v1733, 0.044715
    %v1751 = vmul.f32 %v1743, %v1717
    %v1752 = vmul.f32 %v1744, %v1719
    %v1753 = vmul.f32 %v1745, %v1721
    %v1754 = vmul.f32 %v1746, %v1723
    %v1755 = vmul.f32 %v1747, %v1727
    %v1756 = vmul.f32 %v1748, %v1729
    %v1757 = vmul.f32 %v1749, %v1731
    %v1758 = vmul.f32 %v1750, %v1733
    %v1759 = vmul.f32 %v1751, %v1717
    %v1760 = vmul.f32 %v1752, %v1719
    %v1761 = vmul.f32 %v1753, %v1721
    %v1762 = vmul.f32 %v1754, %v1723
    %v1763 = vmul.f32 %v1755, %v1727
    %v1764 = vmul.f32 %v1756, %v1729
    %v1765 = vmul.f32 %v1757, %v1731
    %v1766 = vmul.f32 %v1758, %v1733
    %v1767 = vadd.f32 %v1717, %v1759
    %v1768 = vadd.f32 %v1719, %v1760
    %v1769 = vadd.f32 %v1721, %v1761
    %v1770 = vadd.f32 %v1723, %v1762
    %v1771 = vadd.f32 %v1727, %v1763
    %v1772 = vadd.f32 %v1729, %v1764
    %v1773 = vadd.f32 %v1731, %v1765
    %v1774 = vadd.f32 %v1733, %v1766
    %v1775 = vmul.f32 %v1767, 0.7978846
    %v1776 = vmul.f32 %v1768, 0.7978846
    %v1777 = vmul.f32 %v1769, 0.7978846
    %v1778 = vmul.f32 %v1770, 0.7978846
    %v1779 = vmul.f32 %v1771, 0.7978846
    %v1780 = vmul.f32 %v1772, 0.7978846
    %v1781 = vmul.f32 %v1773, 0.7978846
    %v1782 = vmul.f32 %v1774, 0.7978846
    %v1783 = vtanh.pop %v1775
    %v1784 = vtanh.pop %v1776
    %v1785 = vtanh.pop %v1777
    %v1786 = vtanh.pop %v1778
    %v1787 = vtanh.pop %v1779
    %v1788 = vtanh.pop %v1780
    %v1789 = vtanh.pop %v1781
    %v1790 = vtanh.pop %v1782
    %v1791 = vadd.f32 %v1783, 1.0
    %v1792 = vadd.f32 %v1784, 1.0
    %v1793 = vadd.f32 %v1785, 1.0
    %v1794 = vadd.f32 %v1786, 1.0
    %v1795 = vadd.f32 %v1787, 1.0
    %v1796 = vadd.f32 %v1788, 1.0
    %v1797 = vadd.f32 %v1789, 1.0
    %v1798 = vadd.f32 %v1790, 1.0
    %v1799 = vmul.f32 %v1735, %v1791
    %v1800 = vmul.f32 %v1736, %v1792
    %v1801 = vmul.f32 %v1737, %v1793
    %v1802 = vmul.f32 %v1738, %v1794
    %v1803 = vmul.f32 %v1739, %v1795
    %v1804 = vmul.f32 %v1740, %v1796
    %v1805 = vmul.f32 %v1741, %v1797
    %v1806 = vmul.f32 %v1742, %v1798
    %v1807 = vpack.c.bf16 %v1801, %v1799
    %v1808 = vpack.c.bf16 %v1802, %v1800
    %v1809 = vpack.c.bf16 %v1805, %v1803
    %v1810 = vpack.c.bf16 %v1806, %v1804
    %v1811 = vld [vmem:[#allocation23] sm:$0xf]
    %v1812 = vld [vmem:[#allocation23 + $0x4] sm:$0xf]
    %v1813 = vld [vmem:[#allocation23 + $0x8] sm:$0xf]
    %v1814 = vld [vmem:[#allocation23 + $0xc] sm:$0xf]
    %v1815 = vld [vmem:[#allocation23 + $0x10] sm:$0xf]
    %v1816 = vld [vmem:[#allocation23 + $0x14] sm:$0xf]
    %v1817 = vld [vmem:[#allocation23 + $0x18] sm:$0xf]
    %v1818 = vld [vmem:[#allocation23 + $0x1c] sm:$0xf]
    %v1819 = vld [vmem:[#allocation23 + $0x20] sm:$0xf]
    %v1820 = vld [vmem:[#allocation23 + $0x24] sm:$0xf]
    %v1821 = vld [vmem:[#allocation23 + $0x28] sm:$0xf]
    %v1822 = vld [vmem:[#allocation23 + $0x2c] sm:$0xf]
    %v1823 = vld [vmem:[#allocation23 + $0x30] sm:$0xf]
    %v1824 = vld [vmem:[#allocation23 + $0x34] sm:$0xf]
    %v1825 = vld [vmem:[#allocation23 + $0x38] sm:$0xf]
    %v1826 = vld [vmem:[#allocation23 + $0x3c] sm:$0xf]
    %v1827 = vld [vmem:[#allocation23 + $0x40] sm:$0xf]
    %v1828 = vld [vmem:[#allocation23 + $0x44] sm:$0xf]
    %v1829 = vld [vmem:[#allocation23 + $0x48] sm:$0xf]
    %v1830 = vld [vmem:[#allocation23 + $0x4c] sm:$0xf]
    %v1831 = vld [vmem:[#allocation23 + $0x50] sm:$0xf]
    %v1832 = vld [vmem:[#allocation23 + $0x54] sm:$0xf]
    %v1833 = vld [vmem:[#allocation23 + $0x58] sm:$0xf]
    %v1834 = vld [vmem:[#allocation23 + $0x5c] sm:$0xf]
    %v1835 = vld [vmem:[#allocation23 + $0x60] sm:$0xf]
    %v1836 = vld [vmem:[#allocation23 + $0x64] sm:$0xf]
    %v1837 = vld [vmem:[#allocation23 + $0x68] sm:$0xf]
    %v1838 = vld [vmem:[#allocation23 + $0x6c] sm:$0xf]
    %v1839 = vld [vmem:[#allocation23 + $0x70] sm:$0xf]
    %v1840 = vld [vmem:[#allocation23 + $0x74] sm:$0xf]
    %v1841 = vld [vmem:[#allocation23 + $0x78] sm:$0xf]
    %v1842 = vld [vmem:[#allocation23 + $0x7c] sm:$0xf]
    %v1843 = vld [vmem:[#allocation25] sm:$0x1]
    %v1845 = vlaneseq
    %v1846 = vshrl.u32 %v1845, 7
    %v1847 = vsub.s32 0, %v1846
    %v1848 = vrot.slane %v1843, %v1847
    %v1882 = vunpack.c.l.b16 %v1811
    %v1883 = vunpack.c.l.b16 %v1812
    %v1884 = vunpack.c.l.b16 %v1813
    %v1885 = vunpack.c.l.b16 %v1814
    %v1886 = vunpack.c.l.b16 %v1815
    %v1887 = vunpack.c.l.b16 %v1816
    %v1888 = vunpack.c.l.b16 %v1817
    %v1889 = vunpack.c.l.b16 %v1818
    %v1890 = vunpack.c.l.b16 %v1819
    %v1891 = vunpack.c.l.b16 %v1820
    %v1892 = vunpack.c.l.b16 %v1821
    %v1893 = vunpack.c.l.b16 %v1822
    %v1894 = vunpack.c.l.b16 %v1823
    %v1895 = vunpack.c.l.b16 %v1824
    %v1896 = vunpack.c.l.b16 %v1825
    %v1897 = vunpack.c.l.b16 %v1826
    %v1898 = vunpack.c.l.b16 %v1827
    %v1899 = vunpack.c.l.b16 %v1828
    %v1900 = vunpack.c.l.b16 %v1829
    %v1901 = vunpack.c.l.b16 %v1830
    %v1902 = vunpack.c.l.b16 %v1831
    %v1903 = vunpack.c.l.b16 %v1832
    %v1904 = vunpack.c.l.b16 %v1833
    %v1905 = vunpack.c.l.b16 %v1834
    %v1906 = vunpack.c.l.b16 %v1835
    %v1907 = vunpack.c.l.b16 %v1836
    %v1908 = vunpack.c.l.b16 %v1837
    %v1909 = vunpack.c.l.b16 %v1838
    %v1910 = vunpack.c.l.b16 %v1839
    %v1911 = vunpack.c.l.b16 %v1840
    %v1912 = vunpack.c.l.b16 %v1841
    %v1913 = vunpack.c.l.b16 %v1842
    %v1914 = vpack.c.b16 %v1883, %v1882
    %v1915 = vpack.c.b16 %v1885, %v1884
    %v1916 = vpack.c.b16 %v1887, %v1886
    %v1917 = vpack.c.b16 %v1889, %v1888
    %v1918 = vpack.c.b16 %v1891, %v1890
    %v1919 = vpack.c.b16 %v1893, %v1892
    %v1920 = vpack.c.b16 %v1895, %v1894
    %v1921 = vpack.c.b16 %v1897, %v1896
    %v1922 = vpack.c.b16 %v1899, %v1898
    %v1923 = vpack.c.b16 %v1901, %v1900
    %v1924 = vpack.c.b16 %v1903, %v1902
    %v1925 = vpack.c.b16 %v1905, %v1904
    %v1926 = vpack.c.b16 %v1907, %v1906
    %v1927 = vpack.c.b16 %v1909, %v1908
    %v1928 = vpack.c.b16 %v1911, %v1910
    %v1929 = vpack.c.b16 %v1913, %v1912
    %1946 = vmatprep.subr.bf16.mxu0 0
    %1947 = vmatpush1.bf16.msra.mxu0 %v1914
    %1948 = vmatprep.subr.bf16.mxu0 0
    %1949 = vmatpush1.bf16.msra.mxu0 %v1915
    %1950 = vmatprep.subr.bf16.mxu0 0
    %1951 = vmatpush1.bf16.msra.mxu0 %v1916
    %1952 = vmatprep.subr.bf16.mxu0 0
    %1953 = vmatpush1.bf16.msra.mxu0 %v1917
    %1954 = vmatprep.subr.bf16.mxu0 0
    %1955 = vmatpush1.bf16.msra.mxu0 %v1918
    %1956 = vmatprep.subr.bf16.mxu0 0
    %1957 = vmatpush1.bf16.msra.mxu0 %v1919
    %1958 = vmatprep.subr.bf16.mxu0 0
    %1959 = vmatpush1.bf16.msra.mxu0 %v1920
    %1960 = vmatprep.subr.bf16.mxu0 0
    %1961 = vmatpush1.bf16.msra.mxu0 %v1921
    %1962 = vmatprep.subr.bf16.mxu0 0
    %1963 = vmatpush1.bf16.msra.mxu0 %v1922
    %1964 = vmatprep.subr.bf16.mxu0 0
    %1965 = vmatpush1.bf16.msra.mxu0 %v1923
    %1966 = vmatprep.subr.bf16.mxu0 0
    %1967 = vmatpush1.bf16.msra.mxu0 %v1924
    %1968 = vmatprep.subr.bf16.mxu0 0
    %1969 = vmatpush1.bf16.msra.mxu0 %v1925
    %1970 = vmatprep.subr.bf16.mxu0 0
    %1971 = vmatpush1.bf16.msra.mxu0 %v1926
    %1972 = vmatprep.subr.bf16.mxu0 0
    %1973 = vmatpush1.bf16.msra.mxu0 %v1927
    %1974 = vmatprep.subr.bf16.mxu0 0
    %1975 = vmatpush1.bf16.msra.mxu0 %v1928
    %1976 = vmatprep.subr.bf16.mxu0 0
    %1977 = vmatpush1.bf16.msra.mxu0 %v1929
    %1978 = vmatprep.mubr.bf16.mxu0 %v1808
    %1979 = vmatmul.mubr.bf16.gmra.mrb[0].mxu0 %v1807
    %v1980 = vpop.f32.mrb[0].mxu0
    %v1981 = vadd.f32 %v1848, %v1980
    %v1982 = vpop.f32.mrb[0].mxu0
    %v1983 = vpop.f32.mrb[0].mxu0
    %v1984 = vadd.f32 %v1848, %v1983
    %v1985 = vpop.f32.mrb[0].mxu0
    %1986 = vmatprep.mubr.bf16.mxu0 %v1810
    %1987 = vmatmul.mubr.bf16.gmra.mrb[0].mxu0 %v1809
    %v1988 = vpop.f32.mrb[0].mxu0
    %v1989 = vadd.f32 %v1848, %v1988
    %v1990 = vpop.f32.mrb[0].mxu0
    %v1991 = vpop.f32.mrb[0].mxu0
    %v1992 = vadd.f32 %v1848, %v1991
    %v1993 = vpop.f32.mrb[0].mxu0
    %1994 = vdwg.mxu0
    %v1995 = vadd.f32 %v1502, %v1981
    %v1996 = vadd.f32 %v1503, %v1984
    %v1997 = vadd.f32 %v1504, %v1989
    %v1998 = vadd.f32 %v1505, %v1992
    %s1999 = scalar_lea.vmem [#allocation8], 1
    %v2000 = vld [vmem:[%s1999] sm:$0x1]
    %s2001 = scalar_lea.vmem [#allocation10], 1
    %v2002 = vld [vmem:[%s2001] sm:$0x1]
    %2003 = vadd.xlane.f32.xlu0 %v1995
    %v2004 = vpop.xlane.xlu0 %2003
    %2005 = vadd.xlane.f32.xlu0 %v1996
    %v2006 = vpop.xlane.xlu0 %2005
    %2007 = vadd.xlane.f32.xlu0 %v1997
    %v2008 = vpop.xlane.xlu0 %2007
    %2009 = vadd.xlane.f32.xlu0 %v1998
    %v2010 = vpop.xlane.xlu0 %2009
    %v2011 = vmul.f32 %v2004, %v967
    %v2012 = vmul.f32 %v2006, %v967
    %v2013 = vmul.f32 %v2008, %v967
    %v2014 = vmul.f32 %v2010, %v967
    %v2015 = vsub.f32 %v1995, %v2011
    %v2016 = vsub.f32 %v1996, %v2012
    %v2017 = vsub.f32 %v1997, %v2013
    %v2018 = vsub.f32 %v1998, %v2014
    %v2019 = vmul.f32 %v2015, %v2015
    %v2020 = vmul.f32 %v2016, %v2016
    %v2021 = vmul.f32 %v2017, %v2017
    %v2022 = vmul.f32 %v2018, %v2018
    %2023 = vadd.xlane.f32.xlu0 %v2019
    %v2024 = vpop.xlane.xlu0 %2023
    %2025 = vadd.xlane.f32.xlu0 %v2020
    %v2026 = vpop.xlane.xlu0 %2025
    %2027 = vadd.xlane.f32.xlu0 %v2021
    %v2028 = vpop.xlane.xlu0 %2027
    %2029 = vadd.xlane.f32.xlu0 %v2022
    %v2030 = vpop.xlane.xlu0 %2029
    %v2031 = vmul.f32 %v2024, %v967
    %v2032 = vmul.f32 %v2026, %v967
    %v2033 = vmul.f32 %v2028, %v967
    %v2034 = vmul.f32 %v2030, %v967
    %v2035 = vadd.f32 %v2031, 1e-06
    %v2036 = vadd.f32 %v2032, 1e-06
    %v2037 = vadd.f32 %v2033, 1e-06
    %v2038 = vadd.f32 %v2034, 1e-06
    %v2039 = vrsqrt.pop %v2035
    %v2040 = vrsqrt.pop %v2036
    %v2041 = vrsqrt.pop %v2037
    %v2042 = vrsqrt.pop %v2038
    %v2043 = vmul.f32 %v2015, %v2039
    %v2044 = vmul.f32 %v2016, %v2040
    %v2045 = vmul.f32 %v2017, %v2041
    %v2046 = vmul.f32 %v2018, %v2042
    %v2048 = vlaneseq
    %v2049 = vshrl.u32 %v2048, 7
    %v2050 = vsub.s32 0, %v2049
    %v2051 = vrot.slane %v2000, %v2050
    %v2053 = vmul.f32 %v2043, %v2051
    %v2054 = vmul.f32 %v2044, %v2051
    %v2055 = vmul.f32 %v2045, %v2051
    %v2056 = vmul.f32 %v2046, %v2051
    %v2058 = vlaneseq
    %v2059 = vshrl.u32 %v2058, 7
    %v2060 = vsub.s32 0, %v2059
    %v2061 = vrot.slane %v2002, %v2060
    %v2063 = vadd.f32 %v2053, %v2061
    %v2064 = vadd.f32 %v2054, %v2061
    %v2065 = vadd.f32 %v2055, %v2061
    %v2066 = vadd.f32 %v2056, %v2061
    %v2067 = vpack.c.bf16 %v2064, %v2063
    %v2068 = vpack.c.bf16 %v2066, %v2065
    %s2069 = scalar_lea.vmem [#allocation11], 32
    %v2070 = vld [vmem:[%s2069] sm:$0xf]
    %v2071 = vld [vmem:[%s2069 + $0x4] sm:$0xf]
    %v2072 = vld [vmem:[%s2069 + $0x8] sm:$0xf]
    %v2073 = vld [vmem:[%s2069 + $0xc] sm:$0xf]
    %v2074 = vld [vmem:[%s2069 + $0x10] sm:$0xf]
    %v2075 = vld [vmem:[%s2069 + $0x14] sm:$0xf]
    %v2076 = vld [vmem:[%s2069 + $0x18] sm:$0xf]
    %v2077 = vld [vmem:[%s2069 + $0x1c] sm:$0xf]
    %s2078 = scalar_lea.vmem [#allocation13], 64
    %v2079 = vld [vmem:[%s2078] sm:$0xff]
    %v2080 = vld [vmem:[%s2078 + $0x8] sm:$0xff]
    %v2081 = vld [vmem:[%s2078 + $0x10] sm:$0xff]
    %v2082 = vld [vmem:[%s2078 + $0x18] sm:$0xff]
    %v2083 = vld [vmem:[%s2078 + $0x20] sm:$0xff]
    %v2084 = vld [vmem:[%s2078 + $0x28] sm:$0xff]
    %v2085 = vld [vmem:[%s2078 + $0x30] sm:$0xff]
    %v2086 = vld [vmem:[%s2078 + $0x38] sm:$0xff]
    %2088 = vset.pattern.permute.xlu0 0
    %2089 = vperm.xlu0 %2088, %v2079
    %v2090 = vpop.permute.xlu0 %2089
    %2093 = vset.pattern.permute.xlu0 0
    %2094 = vperm.xlu0 %2093, %v2080
    %v2095 = vpop.permute.xlu0 %2094
    %2098 = vset.pattern.permute.xlu0 0
    %2099 = vperm.xlu0 %2098, %v2081
    %v2100 = vpop.permute.xlu0 %2099
    %2103 = vset.pattern.permute.xlu0 0
    %2104 = vperm.xlu0 %2103, %v2082
    %v2105 = vpop.permute.xlu0 %2104
    %2108 = vset.pattern.permute.xlu0 0
    %2109 = vperm.xlu0 %2108, %v2083
    %v2110 = vpop.permute.xlu0 %2109
    %2113 = vset.pattern.permute.xlu0 0
    %2114 = vperm.xlu0 %2113, %v2084
    %v2115 = vpop.permute.xlu0 %2114
    %2118 = vset.pattern.permute.xlu0 0
    %2119 = vperm.xlu0 %2118, %v2085
    %v2120 = vpop.permute.xlu0 %2119
    %2123 = vset.pattern.permute.xlu0 0
    %2124 = vperm.xlu0 %2123, %v2086
    %v2125 = vpop.permute.xlu0 %2124
    %v2135 = vunpack.c.l.b16 %v2070
    %v2136 = vunpack.c.l.b16 %v2071
    %v2137 = vunpack.c.l.b16 %v2072
    %v2138 = vunpack.c.l.b16 %v2073
    %v2139 = vunpack.c.l.b16 %v2074
    %v2140 = vunpack.c.l.b16 %v2075
    %v2141 = vunpack.c.l.b16 %v2076
    %v2142 = vunpack.c.l.b16 %v2077
    %v2143 = vpack.c.b16 %v2136, %v2135
    %v2144 = vpack.c.b16 %v2138, %v2137
    %v2145 = vpack.c.b16 %v2140, %v2139
    %v2146 = vpack.c.b16 %v2142, %v2141
    %v2148 = vsel %vm1102, %v2143, 0
    %v2151 = vsel %vm1102, %v2144, 0
    %v2154 = vsel %vm1102, %v2145, 0
    %v2157 = vsel %vm1102, %v2146, 0
    %2159 = vmatprep.subr.bf16.mxu0 0
    %2160 = vmatpush1.bf16.msra.mxu0 %v2067
    %2161 = vmatprep.subr.bf16.mxu0 0
    %2162 = vmatpush1.bf16.msra.mxu0 0
    %2163 = vmatprep.subr.bf16.mxu0 0
    %2164 = vmatpush1.bf16.msra.mxu0 0
    %2165 = vmatprep.subr.bf16.mxu0 0
    %2166 = vmatpush1.bf16.msra.mxu0 0
    %2167 = vmatprep.subr.bf16.mxu0 0
    %2168 = vmatpush1.bf16.msra.mxu0 0
    %2169 = vmatprep.subr.bf16.mxu0 0
    %2170 = vmatpush1.bf16.msra.mxu0 0
    %2171 = vmatprep.subr.bf16.mxu0 0
    %2172 = vmatpush1.bf16.msra.mxu0 0
    %2173 = vmatprep.subr.bf16.mxu0 0
    %2174 = vmatpush1.bf16.msra.mxu0 0
    %2175 = vmatprep.subr.bf16.mxu0 0
    %2176 = vmatpush1.bf16.msra.mxu0 0
    %2177 = vmatprep.subr.bf16.mxu0 0
    %2178 = vmatpush1.bf16.msra.mxu0 0
    %2179 = vmatprep.subr.bf16.mxu0 0
    %2180 = vmatpush1.bf16.msra.mxu0 0
    %2181 = vmatprep.subr.bf16.mxu0 0
    %2182 = vmatpush1.bf16.msra.mxu0 0
    %2183 = vmatprep.subr.bf16.mxu0 0
    %2184 = vmatpush1.bf16.msra.mxu0 0
    %2185 = vmatprep.subr.bf16.mxu0 0
    %2186 = vmatpush1.bf16.msra.mxu0 0
    %2187 = vmatprep.subr.bf16.mxu0 0
    %2188 = vmatpush1.bf16.msra.mxu0 0
    %2189 = vmatprep.subr.bf16.mxu0 0
    %2190 = vmatpush1.bf16.msra.mxu0 0
    %2191 = vmatprep.mubr.bf16.mxu0 0
    %2192 = vmatmul.mubr.bf16.gmra.mrb[0].mxu0 %v2148
    %v2193 = vpop.f32.mrb[0].mxu0
    %v2194 = vadd.f32 %v2090, %v2193
    %v2195 = vpop.f32.mrb[0].mxu0
    %v2196 = vpop.f32.mrb[0].mxu0
    %v2197 = vadd.f32 %v2095, %v2196
    %v2198 = vpop.f32.mrb[0].mxu0
    %2199 = vmatprep.mubr.bf16.mxu0 0
    %2200 = vmatmul.mubr.bf16.gmra.mrb[0].mxu0 %v2151
    %v2201 = vpop.f32.mrb[0].mxu0
    %v2202 = vadd.f32 %v2100, %v2201
    %v2203 = vpop.f32.mrb[0].mxu0
    %v2204 = vpop.f32.mrb[0].mxu0
    %v2205 = vadd.f32 %v2105, %v2204
    %v2206 = vpop.f32.mrb[0].mxu0
    %2207 = vmatprep.mubr.bf16.mxu0 0
    %2208 = vmatmul.mubr.bf16.gmra.mrb[0].mxu0 %v2154
    %v2209 = vpop.f32.mrb[0].mxu0
    %v2210 = vadd.f32 %v2110, %v2209
    %v2211 = vpop.f32.mrb[0].mxu0
    %v2212 = vpop.f32.mrb[0].mxu0
    %v2213 = vadd.f32 %v2115, %v2212
    %v2214 = vpop.f32.mrb[0].mxu0
    %2215 = vmatprep.mubr.bf16.mxu0 0
    %2216 = vmatmul.mubr.bf16.gmra.mrb[0].mxu0 %v2157
    %v2217 = vpop.f32.mrb[0].mxu0
    %v2218 = vadd.f32 %v2120, %v2217
    %v2219 = vpop.f32.mrb[0].mxu0
    %v2220 = vpop.f32.mrb[0].mxu0
    %v2221 = vadd.f32 %v2125, %v2220
    %v2222 = vpop.f32.mrb[0].mxu0
    %2223 = vdwg.mxu0
    %2224 = vmatprep.subr.bf16.mxu0 0
    %2225 = vmatpush1.bf16.msra.mxu0 %v2068
    %2226 = vmatprep.subr.bf16.mxu0 0
    %2227 = vmatpush1.bf16.msra.mxu0 0
    %2228 = vmatprep.subr.bf16.mxu0 0
    %2229 = vmatpush1.bf16.msra.mxu0 0
    %2230 = vmatprep.subr.bf16.mxu0 0
    %2231 = vmatpush1.bf16.msra.mxu0 0
    %2232 = vmatprep.subr.bf16.mxu0 0
    %2233 = vmatpush1.bf16.msra.mxu0 0
    %2234 = vmatprep.subr.bf16.mxu0 0
    %2235 = vmatpush1.bf16.msra.mxu0 0
    %2236 = vmatprep.subr.bf16.mxu0 0
    %2237 = vmatpush1.bf16.msra.mxu0 0
    %2238 = vmatprep.subr.bf16.mxu0 0
    %2239 = vmatpush1.bf16.msra.mxu0 0
    %2240 = vmatprep.subr.bf16.mxu0 0
    %2241 = vmatpush1.bf16.msra.mxu0 0
    %2242 = vmatprep.subr.bf16.mxu0 0
    %2243 = vmatpush1.bf16.msra.mxu0 0
    %2244 = vmatprep.subr.bf16.mxu0 0
    %2245 = vmatpush1.bf16.msra.mxu0 0
    %2246 = vmatprep.subr.bf16.mxu0 0
    %2247 = vmatpush1.bf16.msra.mxu0 0
    %2248 = vmatprep.subr.bf16.mxu0 0
    %2249 = vmatpush1.bf16.msra.mxu0 0
    %2250 = vmatprep.subr.bf16.mxu0 0
    %2251 = vmatpush1.bf16.msra.mxu0 0
    %2252 = vmatprep.subr.bf16.mxu0 0
    %2253 = vmatpush1.bf16.msra.mxu0 0
    %2254 = vmatprep.subr.bf16.mxu0 0
    %2255 = vmatpush1.bf16.msra.mxu0 0
    %2256 = vmatprep.mubr.bf16.mxu0 0
    %2257 = vmatmul.mubr.bf16.gmra.mrb[0].mxu0 %v2148
    %v2258 = vpop.f32.mrb[0].mxu0
    %v2259 = vadd.f32 %v2090, %v2258
    %v2260 = vpop.f32.mrb[0].mxu0
    %v2261 = vpop.f32.mrb[0].mxu0
    %v2262 = vadd.f32 %v2095, %v2261
    %v2263 = vpop.f32.mrb[0].mxu0
    %2264 = vmatprep.mubr.bf16.mxu0 0
    %2265 = vmatmul.mubr.bf16.gmra.mrb[0].mxu0 %v2151
    %v2266 = vpop.f32.mrb[0].mxu0
    %v2267 = vadd.f32 %v2100, %v2266
    %v2268 = vpop.f32.mrb[0].mxu0
    %v2269 = vpop.f32.mrb[0].mxu0
    %v2270 = vadd.f32 %v2105, %v2269
    %v2271 = vpop.f32.mrb[0].mxu0
    %2272 = vmatprep.mubr.bf16.mxu0 0
    %2273 = vmatmul.mubr.bf16.gmra.mrb[0].mxu0 %v2154
    %v2274 = vpop.f32.mrb[0].mxu0
    %v2275 = vadd.f32 %v2110, %v2274
    %v2276 = vpop.f32.mrb[0].mxu0
    %v2277 = vpop.f32.mrb[0].mxu0
    %v2278 = vadd.f32 %v2115, %v2277
    %v2279 = vpop.f32.mrb[0].mxu0
    %2280 = vmatprep.mubr.bf16.mxu0 0
    %2281 = vmatmul.mubr.bf16.gmra.mrb[0].mxu0 %v2157
    %v2282 = vpop.f32.mrb[0].mxu0
    %v2283 = vadd.f32 %v2120, %v2282
    %v2284 = vpop.f32.mrb[0].mxu0
    %v2285 = vpop.f32.mrb[0].mxu0
    %v2286 = vadd.f32 %v2125, %v2285
    %v2287 = vpop.f32.mrb[0].mxu0
    %2288 = vdwg.mxu0
    %v2289 = vmul.f32 %v2194, 0.5
    %v2290 = vmul.f32 %v2197, 0.5
    %v2291 = vmul.f32 %v2202, 0.5
    %v2292 = vmul.f32 %v2205, 0.5
    %v2293 = vmul.f32 %v2210, 0.5
    %v2294 = vmul.f32 %v2213, 0.5
    %v2295 = vmul.f32 %v2218, 0.5
    %v2296 = vmul.f32 %v2221, 0.5
    %v2297 = vmul.f32 %v2259, 0.5
    %v2298 = vmul.f32 %v2262, 0.5
    %v2299 = vmul.f32 %v2267, 0.5
    %v2300 = vmul.f32 %v2270, 0.5
    %v2301 = vmul.f32 %v2275, 0.5
    %v2302 = vmul.f32 %v2278, 0.5
    %v2303 = vmul.f32 %v2283, 0.5
    %v2304 = vmul.f32 %v2286, 0.5
    %v2305 = vmul.f32 %v2194, 0.044715
    %v2306 = vmul.f32 %v2197, 0.044715
    %v2307 = vmul.f32 %v2202, 0.044715
    %v2308 = vmul.f32 %v2205, 0.044715
    %v2309 = vmul.f32 %v2210, 0.044715
    %v2310 = vmul.f32 %v2213, 0.044715
    %v2311 = vmul.f32 %v2218, 0.044715
    %v2312 = vmul.f32 %v2221, 0.044715
    %v2313 = vmul.f32 %v2259, 0.044715
    %v2314 = vmul.f32 %v2262, 0.044715
    %v2315 = vmul.f32 %v2267, 0.044715
    %v2316 = vmul.f32 %v2270, 0.044715
    %v2317 = vmul.f32 %v2275, 0.044715
    %v2318 = vmul.f32 %v2278, 0.044715
    %v2319 = vmul.f32 %v2283, 0.044715
    %v2320 = vmul.f32 %v2286, 0.044715
    %v2321 = vmul.f32 %v2305, %v2194
    %v2322 = vmul.f32 %v2306, %v2197
    %v2323 = vmul.f32 %v2307, %v2202
    %v2324 = vmul.f32 %v2308, %v2205
    %v2325 = vmul.f32 %v2309, %v2210
    %v2326 = vmul.f32 %v2310, %v2213
    %v2327 = vmul.f32 %v2311, %v2218
    %v2328 = vmul.f32 %v2312, %v2221
    %v2329 = vmul.f32 %v2313, %v2259
    %v2330 = vmul.f32 %v2314, %v2262
    %v2331 = vmul.f32 %v2315, %v2267
    %v2332 = vmul.f32 %v2316, %v2270
    %v2333 = vmul.f32 %v2317, %v2275
    %v2334 = vmul.f32 %v2318, %v2278
    %v2335 = vmul.f32 %v2319, %v2283
    %v2336 = vmul.f32 %v2320, %v2286
    %v2337 = vmul.f32 %v2321, %v2194
    %v2338 = vmul.f32 %v2322, %v2197
    %v2339 = vmul.f32 %v2323, %v2202
    %v2340 = vmul.f32 %v2324, %v2205
    %v2341 = vmul.f32 %v2325, %v2210
    %v2342 = vmul.f32 %v2326, %v2213
    %v2343 = vmul.f32 %v2327, %v2218
    %v2344 = vmul.f32 %v2328, %v2221
    %v2345 = vmul.f32 %v2329, %v2259
    %v2346 = vmul.f32 %v2330, %v2262
    %v2347 = vmul.f32 %v2331, %v2267
    %v2348 = vmul.f32 %v2332, %v2270
    %v2349 = vmul.f32 %v2333, %v2275
    %v2350 = vmul.f32 %v2334, %v2278
    %v2351 = vmul.f32 %v2335, %v2283
    %v2352 = vmul.f32 %v2336, %v2286
    %v2353 = vadd.f32 %v2194, %v2337
    %v2354 = vadd.f32 %v2197, %v2338
    %v2355 = vadd.f32 %v2202, %v2339
    %v2356 = vadd.f32 %v2205, %v2340
    %v2357 = vadd.f32 %v2210, %v2341
    %v2358 = vadd.f32 %v2213, %v2342
    %v2359 = vadd.f32 %v2218, %v2343
    %v2360 = vadd.f32 %v2221, %v2344
    %v2361 = vadd.f32 %v2259, %v2345
    %v2362 = vadd.f32 %v2262, %v2346
    %v2363 = vadd.f32 %v2267, %v2347
    %v2364 = vadd.f32 %v2270, %v2348
    %v2365 = vadd.f32 %v2275, %v2349
    %v2366 = vadd.f32 %v2278, %v2350
    %v2367 = vadd.f32 %v2283, %v2351
    %v2368 = vadd.f32 %v2286, %v2352
    %v2369 = vmul.f32 %v2353, 0.7978846
    %v2370 = vmul.f32 %v2354, 0.7978846
    %v2371 = vmul.f32 %v2355, 0.7978846
    %v2372 = vmul.f32 %v2356, 0.7978846
    %v2373 = vmul.f32 %v2357, 0.7978846
    %v2374 = vmul.f32 %v2358, 0.7978846
    %v2375 = vmul.f32 %v2359, 0.7978846
    %v2376 = vmul.f32 %v2360, 0.7978846
    %v2377 = vmul.f32 %v2361, 0.7978846
    %v2378 = vmul.f32 %v2362, 0.7978846
    %v2379 = vmul.f32 %v2363, 0.7978846
    %v2380 = vmul.f32 %v2364, 0.7978846
    %v2381 = vmul.f32 %v2365, 0.7978846
    %v2382 = vmul.f32 %v2366, 0.7978846
    %v2383 = vmul.f32 %v2367, 0.7978846
    %v2384 = vmul.f32 %v2368, 0.7978846
    %v2385 = vtanh.pop %v2369
    %v2386 = vtanh.pop %v2370
    %v2387 = vtanh.pop %v2371
    %v2388 = vtanh.pop %v2372
    %v2389 = vtanh.pop %v2373
    %v2390 = vtanh.pop %v2374
    %v2391 = vtanh.pop %v2375
    %v2392 = vtanh.pop %v2376
    %v2393 = vtanh.pop %v2377
    %v2394 = vtanh.pop %v2378
    %v2395 = vtanh.pop %v2379
    %v2396 = vtanh.pop %v2380
    %v2397 = vtanh.pop %v2381
    %v2398 = vtanh.pop %v2382
    %v2399 = vtanh.pop %v2383
    %v2400 = vtanh.pop %v2384
    %v2401 = vadd.f32 %v2385, 1.0
    %v2402 = vadd.f32 %v2386, 1.0
    %v2403 = vadd.f32 %v2387, 1.0
    %v2404 = vadd.f32 %v2388, 1.0
    %v2405 = vadd.f32 %v2389, 1.0
    %v2406 = vadd.f32 %v2390, 1.0
    %v2407 = vadd.f32 %v2391, 1.0
    %v2408 = vadd.f32 %v2392, 1.0
    %v2409 = vadd.f32 %v2393, 1.0
    %v2410 = vadd.f32 %v2394, 1.0
    %v2411 = vadd.f32 %v2395, 1.0
    %v2412 = vadd.f32 %v2396, 1.0
    %v2413 = vadd.f32 %v2397, 1.0
    %v2414 = vadd.f32 %v2398, 1.0
    %v2415 = vadd.f32 %v2399, 1.0
    %v2416 = vadd.f32 %v2400, 1.0
    %v2417 = vmul.f32 %v2289, %v2401
    %v2418 = vmul.f32 %v2290, %v2402
    %v2419 = vmul.f32 %v2291, %v2403
    %v2420 = vmul.f32 %v2292, %v2404
    %v2421 = vmul.f32 %v2293, %v2405
    %v2422 = vmul.f32 %v2294, %v2406
    %v2423 = vmul.f32 %v2295, %v2407
    %v2424 = vmul.f32 %v2296, %v2408
    %v2425 = vmul.f32 %v2297, %v2409
    %v2426 = vmul.f32 %v2298, %v2410
    %v2427 = vmul.f32 %v2299, %v2411
    %v2428 = vmul.f32 %v2300, %v2412
    %v2429 = vmul.f32 %v2301, %v2413
    %v2430 = vmul.f32 %v2302, %v2414
    %v2431 = vmul.f32 %v2303, %v2415
    %v2432 = vmul.f32 %v2304, %v2416
    %v2433 = vpack.c.bf16 %v2418, %v2417
    %v2434 = vpack.c.bf16 %v2420, %v2419
    %v2435 = vpack.c.bf16 %v2422, %v2421
    %v2436 = vpack.c.bf16 %v2424, %v2423
    %v2437 = vpack.c.bf16 %v2426, %v2425
    %v2438 = vpack.c.bf16 %v2428, %v2427
    %v2439 = vpack.c.bf16 %v2430, %v2429
    %v2440 = vpack.c.bf16 %v2432, %v2431
    %s2441 = scalar_lea.vmem [#allocation14], 8
    %v2442 = vld [vmem:[%s2441] sm:$0xf]
    %v2443 = vld [vmem:[%s2441 + $0x4] sm:$0xf]
    %s2444 = scalar_lea.vmem [#allocation16], 16
    %v2445 = vld [vmem:[%s2444] sm:$0xff]
    %v2446 = vld [vmem:[%s2444 + $0x8] sm:$0xff]
    %2448 = vset.pattern.permute.xlu0 0
    %2449 = vperm.xlu0 %2448, %v2445
    %v2450 = vpop.permute.xlu0 %2449
    %2453 = vset.pattern.permute.xlu0 0
    %2454 = vperm.xlu0 %2453, %v2446
    %v2455 = vpop.permute.xlu0 %2454
    %v2459 = vunpack.c.l.b16 %v2442
    %v2460 = vunpack.c.l.b16 %v2443
    %v2461 = vpack.c.b16 %v2460, %v2459
    %v2463 = vsel %vm1416, %v2461, 0
    %2465 = vmatprep.subr.bf16.mxu0 0
    %2466 = vmatpush1.bf16.msra.mxu0 %v2433
    %2467 = vmatprep.subr.bf16.mxu0 0
    %2468 = vmatpush1.bf16.msra.mxu0 %v2434
    %2469 = vmatprep.subr.bf16.mxu0 0
    %2470 = vmatpush1.bf16.msra.mxu0 %v2435
    %2471 = vmatprep.subr.bf16.mxu0 0
    %2472 = vmatpush1.bf16.msra.mxu0 %v2436
    %2473 = vmatprep.subr.bf16.mxu0 0
    %2474 = vmatpush1.bf16.msra.mxu0 0
    %2475 = vmatprep.subr.bf16.mxu0 0
    %2476 = vmatpush1.bf16.msra.mxu0 0
    %2477 = vmatprep.subr.bf16.mxu0 0
    %2478 = vmatpush1.bf16.msra.mxu0 0
    %2479 = vmatprep.subr.bf16.mxu0 0
    %2480 = vmatpush1.bf16.msra.mxu0 0
    %2481 = vmatprep.subr.bf16.mxu0 0
    %2482 = vmatpush1.bf16.msra.mxu0 0
    %2483 = vmatprep.subr.bf16.mxu0 0
    %2484 = vmatpush1.bf16.msra.mxu0 0
    %2485 = vmatprep.subr.bf16.mxu0 0
    %2486 = vmatpush1.bf16.msra.mxu0 0
    %2487 = vmatprep.subr.bf16.mxu0 0
    %2488 = vmatpush1.bf16.msra.mxu0 0
    %2489 = vmatprep.subr.bf16.mxu0 0
    %2490 = vmatpush1.bf16.msra.mxu0 0
    %2491 = vmatprep.subr.bf16.mxu0 0
    %2492 = vmatpush1.bf16.msra.mxu0 0
    %2493 = vmatprep.subr.bf16.mxu0 0
    %2494 = vmatpush1.bf16.msra.mxu0 0
    %2495 = vmatprep.subr.bf16.mxu0 0
    %2496 = vmatpush1.bf16.msra.mxu0 0
    %2497 = vmatprep.mubr.bf16.mxu0 0
    %2498 = vmatmul.mubr.bf16.gmra.mrb[0].mxu0 %v2463
    %v2499 = vpop.f32.mrb[0].mxu0
    %v2500 = vadd.f32 %v2450, %v2499
    %v2501 = vpop.f32.mrb[0].mxu0
    %v2502 = vpop.f32.mrb[0].mxu0
    %v2503 = vadd.f32 %v2455, %v2502
    %v2504 = vpop.f32.mrb[0].mxu0
    %2505 = vdwg.mxu0
    %2506 = vmatprep.subr.bf16.mxu0 0
    %2507 = vmatpush1.bf16.msra.mxu0 %v2437
    %2508 = vmatprep.subr.bf16.mxu0 0
    %2509 = vmatpush1.bf16.msra.mxu0 %v2438
    %2510 = vmatprep.subr.bf16.mxu0 0
    %2511 = vmatpush1.bf16.msra.mxu0 %v2439
    %2512 = vmatprep.subr.bf16.mxu0 0
    %2513 = vmatpush1.bf16.msra.mxu0 %v2440
    %2514 = vmatprep.subr.bf16.mxu0 0
    %2515 = vmatpush1.bf16.msra.mxu0 0
    %2516 = vmatprep.subr.bf16.mxu0 0
    %2517 = vmatpush1.bf16.msra.mxu0 0
    %2518 = vmatprep.subr.bf16.mxu0 0
    %2519 = vmatpush1.bf16.msra.mxu0 0
    %2520 = vmatprep.subr.bf16.mxu0 0
    %2521 = vmatpush1.bf16.msra.mxu0 0
    %2522 = vmatprep.subr.bf16.mxu0 0
    %2523 = vmatpush1.bf16.msra.mxu0 0
    %2524 = vmatprep.subr.bf16.mxu0 0
    %2525 = vmatpush1.bf16.msra.mxu0 0
    %2526 = vmatprep.subr.bf16.mxu0 0
    %2527 = vmatpush1.bf16.msra.mxu0 0
    %2528 = vmatprep.subr.bf16.mxu0 0
    %2529 = vmatpush1.bf16.msra.mxu0 0
    %2530 = vmatprep.subr.bf16.mxu0 0
    %2531 = vmatpush1.bf16.msra.mxu0 0
    %2532 = vmatprep.subr.bf16.mxu0 0
    %2533 = vmatpush1.bf16.msra.mxu0 0
    %2534 = vmatprep.subr.bf16.mxu0 0
    %2535 = vmatpush1.bf16.msra.mxu0 0
    %2536 = vmatprep.subr.bf16.mxu0 0
    %2537 = vmatpush1.bf16.msra.mxu0 0
    %2538 = vmatprep.mubr.bf16.mxu0 0
    %2539 = vmatmul.mubr.bf16.gmra.mrb[0].mxu0 %v2463
    %v2540 = vpop.f32.mrb[0].mxu0
    %v2541 = vadd.f32 %v2450, %v2540
    %v2542 = vpop.f32.mrb[0].mxu0
    %v2543 = vpop.f32.mrb[0].mxu0
    %v2544 = vadd.f32 %v2455, %v2543
    %v2545 = vpop.f32.mrb[0].mxu0
    %2546 = vdwg.mxu0
    %v2547 = vadd.f32 %v1995, %v2500
    %v2548 = vadd.f32 %v1996, %v2503
    %v2549 = vadd.f32 %v1997, %v2541
    %v2550 = vadd.f32 %v1998, %v2544
    %s2551 = scalar_lea.vmem [#allocation17], 1
    %v2552 = vld [vmem:[%s2551] sm:$0x1]
    %s2553 = scalar_lea.vmem [#allocation19], 1
    %v2554 = vld [vmem:[%s2553] sm:$0x1]
    %2555 = vadd.xlane.f32.xlu0 %v2547
    %v2556 = vpop.xlane.xlu0 %2555
    %2557 = vadd.xlane.f32.xlu0 %v2548
    %v2558 = vpop.xlane.xlu0 %2557
    %2559 = vadd.xlane.f32.xlu0 %v2549
    %v2560 = vpop.xlane.xlu0 %2559
    %2561 = vadd.xlane.f32.xlu0 %v2550
    %v2562 = vpop.xlane.xlu0 %2561
    %v2563 = vmul.f32 %v2556, %v967
    %v2564 = vmul.f32 %v2558, %v967
    %v2565 = vmul.f32 %v2560, %v967
    %v2566 = vmul.f32 %v2562, %v967
    %v2567 = vsub.f32 %v2547, %v2563
    %v2568 = vsub.f32 %v2548, %v2564
    %v2569 = vsub.f32 %v2549, %v2565
    %v2570 = vsub.f32 %v2550, %v2566
    %v2571 = vmul.f32 %v2567, %v2567
    %v2572 = vmul.f32 %v2568, %v2568
    %v2573 = vmul.f32 %v2569, %v2569
    %v2574 = vmul.f32 %v2570, %v2570
    %2575 = vadd.xlane.f32.xlu0 %v2571
    %v2576 = vpop.xlane.xlu0 %2575
    %2577 = vadd.xlane.f32.xlu0 %v2572
    %v2578 = vpop.xlane.xlu0 %2577
    %2579 = vadd.xlane.f32.xlu0 %v2573
    %v2580 = vpop.xlane.xlu0 %2579
    %2581 = vadd.xlane.f32.xlu0 %v2574
    %v2582 = vpop.xlane.xlu0 %2581
    %v2583 = vmul.f32 %v2576, %v967
    %v2584 = vmul.f32 %v2578, %v967
    %v2585 = vmul.f32 %v2580, %v967
    %v2586 = vmul.f32 %v2582, %v967
    %v2587 = vadd.f32 %v2583, 1e-06
    %v2588 = vadd.f32 %v2584, 1e-06
    %v2589 = vadd.f32 %v2585, 1e-06
    %v2590 = vadd.f32 %v2586, 1e-06
    %v2591 = vrsqrt.pop %v2587
    %v2592 = vrsqrt.pop %v2588
    %v2593 = vrsqrt.pop %v2589
    %v2594 = vrsqrt.pop %v2590
    %v2595 = vmul.f32 %v2567, %v2591
    %v2596 = vmul.f32 %v2568, %v2592
    %v2597 = vmul.f32 %v2569, %v2593
    %v2598 = vmul.f32 %v2570, %v2594
    %v2600 = vlaneseq
    %v2601 = vshrl.u32 %v2600, 7
    %v2602 = vsub.s32 0, %v2601
    %v2603 = vrot.slane %v2552, %v2602
    %v2605 = vmul.f32 %v2595, %v2603
    %v2606 = vmul.f32 %v2596, %v2603
    %v2607 = vmul.f32 %v2597, %v2603
    %v2608 = vmul.f32 %v2598, %v2603
    %v2610 = vlaneseq
    %v2611 = vshrl.u32 %v2610, 7
    %v2612 = vsub.s32 0, %v2611
    %v2613 = vrot.slane %v2554, %v2612
    %v2615 = vadd.f32 %v2605, %v2613
    %v2616 = vadd.f32 %v2606, %v2613
    %v2617 = vadd.f32 %v2607, %v2613
    %v2618 = vadd.f32 %v2608, %v2613
    %v2619 = vpack.c.bf16 %v2616, %v2615
    %v2620 = vpack.c.bf16 %v2618, %v2617
    %s2621 = scalar_lea.vmem [#allocation20], 128
    %v2622 = vld [vmem:[%s2621] sm:$0xff]
    %v2623 = vld [vmem:[%s2621 + $0x8] sm:$0xff]
    %v2624 = vld [vmem:[%s2621 + $0x10] sm:$0xff]
    %v2625 = vld [vmem:[%s2621 + $0x18] sm:$0xff]
    %v2626 = vld [vmem:[%s2621 + $0x20] sm:$0xff]
    %v2627 = vld [vmem:[%s2621 + $0x28] sm:$0xff]
    %v2628 = vld [vmem:[%s2621 + $0x30] sm:$0xff]
    %v2629 = vld [vmem:[%s2621 + $0x38] sm:$0xff]
    %v2630 = vld [vmem:[%s2621 + $0x40] sm:$0xff]
    %v2631 = vld [vmem:[%s2621 + $0x48] sm:$0xff]
    %v2632 = vld [vmem:[%s2621 + $0x50] sm:$0xff]
    %v2633 = vld [vmem:[%s2621 + $0x58] sm:$0xff]
    %v2634 = vld [vmem:[%s2621 + $0x60] sm:$0xff]
    %v2635 = vld [vmem:[%s2621 + $0x68] sm:$0xff]
    %v2636 = vld [vmem:[%s2621 + $0x70] sm:$0xff]
    %v2637 = vld [vmem:[%s2621 + $0x78] sm:$0xff]
    %s2638 = scalar_lea.vmem [#allocation22], 2
    %v2639 = vld [vmem:[%s2638] sm:$0x3]
    %v2641 = vlaneseq
    %v2642 = vshrl.u32 %v2641, 7
    %v2643 = vsub.s32 0, %v2642
    %v2644 = vrot.slane %v2639, %v2643
    %v2645 = vlaneseq
    %v2646 = vshrl.u32 %v2645, 7
    %v2647 = vsub.s32 1, %v2646
    %v2648 = vrot.slane %v2639, %v2647
    %v2667 = vunpack.c.l.b16 %v2622
    %v2668 = vunpack.c.h.b16 %v2622
    %v2669 = vunpack.c.l.b16 %v2623
    %v2670 = vunpack.c.h.b16 %v2623
    %v2671 = vunpack.c.l.b16 %v2624
    %v2672 = vunpack.c.h.b16 %v2624
    %v2673 = vunpack.c.l.b16 %v2625
    %v2674 = vunpack.c.h.b16 %v2625
    %v2675 = vunpack.c.l.b16 %v2626
    %v2676 = vunpack.c.h.b16 %v2626
    %v2677 = vunpack.c.l.b16 %v2627
    %v2678 = vunpack.c.h.b16 %v2627
    %v2679 = vunpack.c.l.b16 %v2628
    %v2680 = vunpack.c.h.b16 %v2628
    %v2681 = vunpack.c.l.b16 %v2629
    %v2682 = vunpack.c.h.b16 %v2629
    %v2683 = vunpack.c.l.b16 %v2630
    %v2684 = vunpack.c.h.b16 %v2630
    %v2685 = vunpack.c.l.b16 %v2631
    %v2686 = vunpack.c.h.b16 %v2631
    %v2687 = vunpack.c.l.b16 %v2632
    %v2688 = vunpack.c.h.b16 %v2632
    %v2689 = vunpack.c.l.b16 %v2633
    %v2690 = vunpack.c.h.b16 %v2633
    %v2691 = vunpack.c.l.b16 %v2634
    %v2692 = vunpack.c.h.b16 %v2634
    %v2693 = vunpack.c.l.b16 %v2635
    %v2694 = vunpack.c.h.b16 %v2635
    %v2695 = vunpack.c.l.b16 %v2636
    %v2696 = vunpack.c.h.b16 %v2636
    %v2697 = vunpack.c.l.b16 %v2637
    %v2698 = vunpack.c.h.b16 %v2637
    %v2699 = vpack.c.b16 %v2669, %v2667
    %v2700 = vpack.c.b16 %v2670, %v2668
    %v2701 = vpack.c.b16 %v2673, %v2671
    %v2702 = vpack.c.b16 %v2674, %v2672
    %v2703 = vpack.c.b16 %v2677, %v2675
    %v2704 = vpack.c.b16 %v2678, %v2676
    %v2705 = vpack.c.b16 %v2681, %v2679
    %v2706 = vpack.c.b16 %v2682, %v2680
    %v2707 = vpack.c.b16 %v2685, %v2683
    %v2708 = vpack.c.b16 %v2686, %v2684
    %v2709 = vpack.c.b16 %v2689, %v2687
    %v2710 = vpack.c.b16 %v2690, %v2688
    %v2711 = vpack.c.b16 %v2693, %v2691
    %v2712 = vpack.c.b16 %v2694, %v2692
    %v2713 = vpack.c.b16 %v2697, %v2695
    %v2714 = vpack.c.b16 %v2698, %v2696
    %2731 = vmatprep.subr.bf16.mxu0 %v2700
    %2732 = vmatpush1.bf16.msra.mxu0 %v2699
    %2733 = vmatprep.subr.bf16.mxu0 %v2702
    %2734 = vmatpush1.bf16.msra.mxu0 %v2701
    %2735 = vmatprep.subr.bf16.mxu0 %v2704
    %2736 = vmatpush1.bf16.msra.mxu0 %v2703
    %2737 = vmatprep.subr.bf16.mxu0 %v2706
    %2738 = vmatpush1.bf16.msra.mxu0 %v2705
    %2739 = vmatprep.subr.bf16.mxu0 %v2708
    %2740 = vmatpush1.bf16.msra.mxu0 %v2707
    %2741 = vmatprep.subr.bf16.mxu0 %v2710
    %2742 = vmatpush1.bf16.msra.mxu0 %v2709
    %2743 = vmatprep.subr.bf16.mxu0 %v2712
    %2744 = vmatpush1.bf16.msra.mxu0 %v2711
    %2745 = vmatprep.subr.bf16.mxu0 %v2714
    %2746 = vmatpush1.bf16.msra.mxu0 %v2713
    %2747 = vmatprep.subr.bf16.mxu0 0
    %2748 = vmatpush1.bf16.msra.mxu0 0
    %2749 = vmatprep.subr.bf16.mxu0 0
    %2750 = vmatpush1.bf16.msra.mxu0 0
    %2751 = vmatprep.subr.bf16.mxu0 0
    %2752 = vmatpush1.bf16.msra.mxu0 0
    %2753 = vmatprep.subr.bf16.mxu0 0
    %2754 = vmatpush1.bf16.msra.mxu0 0
    %2755 = vmatprep.subr.bf16.mxu0 0
    %2756 = vmatpush1.bf16.msra.mxu0 0
    %2757 = vmatprep.subr.bf16.mxu0 0
    %2758 = vmatpush1.bf16.msra.mxu0 0
    %2759 = vmatprep.subr.bf16.mxu0 0
    %2760 = vmatpush1.bf16.msra.mxu0 0
    %2761 = vmatprep.subr.bf16.mxu0 0
    %2762 = vmatpush1.bf16.msra.mxu0 0
    %2763 = vmatprep.mubr.bf16.mxu0 0
    %2764 = vmatmul.mubr.bf16.gmra.mrb[0].mxu0 %v2619
    %v2765 = vpop.f32.mrb[0].mxu0
    %v2766 = vadd.f32 %v2644, %v2765
    %v2767 = vpop.f32.mrb[0].mxu0
    %v2768 = vadd.f32 %v2648, %v2767
    %v2769 = vpop.f32.mrb[0].mxu0
    %v2770 = vadd.f32 %v2644, %v2769
    %v2771 = vpop.f32.mrb[0].mxu0
    %v2772 = vadd.f32 %v2648, %v2771
    %2773 = vmatprep.mubr.bf16.mxu0 0
    %2774 = vmatmul.mubr.bf16.gmra.mrb[0].mxu0 %v2620
    %v2775 = vpop.f32.mrb[0].mxu0
    %v2776 = vadd.f32 %v2644, %v2775
    %v2777 = vpop.f32.mrb[0].mxu0
    %v2778 = vadd.f32 %v2648, %v2777
    %v2779 = vpop.f32.mrb[0].mxu0
    %v2780 = vadd.f32 %v2644, %v2779
    %v2781 = vpop.f32.mrb[0].mxu0
    %v2782 = vadd.f32 %v2648, %v2781
    %2783 = vdwg.mxu0
    %v2784 = vmul.f32 %v2766, 0.5
    %v2785 = vmul.f32 %v2768, 0.5
    %v2786 = vmul.f32 %v2770, 0.5
    %v2787 = vmul.f32 %v2772, 0.5
    %v2788 = vmul.f32 %v2776, 0.5
    %v2789 = vmul.f32 %v2778, 0.5
    %v2790 = vmul.f32 %v2780, 0.5
    %v2791 = vmul.f32 %v2782, 0.5
    %v2792 = vmul.f32 %v2766, 0.044715
    %v2793 = vmul.f32 %v2768, 0.044715
    %v2794 = vmul.f32 %v2770, 0.044715
    %v2795 = vmul.f32 %v2772, 0.044715
    %v2796 = vmul.f32 %v2776, 0.044715
    %v2797 = vmul.f32 %v2778, 0.044715
    %v2798 = vmul.f32 %v2780, 0.044715
    %v2799 = vmul.f32 %v2782, 0.044715
    %v2800 = vmul.f32 %v2792, %v2766
    %v2801 = vmul.f32 %v2793, %v2768
    %v2802 = vmul.f32 %v2794, %v2770
    %v2803 = vmul.f32 %v2795, %v2772
    %v2804 = vmul.f32 %v2796, %v2776
    %v2805 = vmul.f32 %v2797, %v2778
    %v2806 = vmul.f32 %v2798, %v2780
    %v2807 = vmul.f32 %v2799, %v2782
    %v2808 = vmul.f32 %v2800, %v2766
    %v2809 = vmul.f32 %v2801, %v2768
    %v2810 = vmul.f32 %v2802, %v2770
    %v2811 = vmul.f32 %v2803, %v2772
    %v2812 = vmul.f32 %v2804, %v2776
    %v2813 = vmul.f32 %v2805, %v2778
    %v2814 = vmul.f32 %v2806, %v2780
    %v2815 = vmul.f32 %v2807, %v2782
    %v2816 = vadd.f32 %v2766, %v2808
    %v2817 = vadd.f32 %v2768, %v2809
    %v2818 = vadd.f32 %v2770, %v2810
    %v2819 = vadd.f32 %v2772, %v2811
    %v2820 = vadd.f32 %v2776, %v2812
    %v2821 = vadd.f32 %v2778, %v2813
    %v2822 = vadd.f32 %v2780, %v2814
    %v2823 = vadd.f32 %v2782, %v2815
    %v2824 = vmul.f32 %v2816, 0.7978846
    %v2825 = vmul.f32 %v2817, 0.7978846
    %v2826 = vmul.f32 %v2818, 0.7978846
    %v2827 = vmul.f32 %v2819, 0.7978846
    %v2828 = vmul.f32 %v2820, 0.7978846
    %v2829 = vmul.f32 %v2821, 0.7978846
    %v2830 = vmul.f32 %v2822, 0.7978846
    %v2831 = vmul.f32 %v2823, 0.7978846
    %v2832 = vtanh.pop %v2824
    %v2833 = vtanh.pop %v2825
    %v2834 = vtanh.pop %v2826
    %v2835 = vtanh.pop %v2827
    %v2836 = vtanh.pop %v2828
    %v2837 = vtanh.pop %v2829
    %v2838 = vtanh.pop %v2830
    %v2839 = vtanh.pop %v2831
    %v2840 = vadd.f32 %v2832, 1.0
    %v2841 = vadd.f32 %v2833, 1.0
    %v2842 = vadd.f32 %v2834, 1.0
    %v2843 = vadd.f32 %v2835, 1.0
    %v2844 = vadd.f32 %v2836, 1.0
    %v2845 = vadd.f32 %v2837, 1.0
    %v2846 = vadd.f32 %v2838, 1.0
    %v2847 = vadd.f32 %v2839, 1.0
    %v2848 = vmul.f32 %v2784, %v2840
    %v2849 = vmul.f32 %v2785, %v2841
    %v2850 = vmul.f32 %v2786, %v2842
    %v2851 = vmul.f32 %v2787, %v2843
    %v2852 = vmul.f32 %v2788, %v2844
    %v2853 = vmul.f32 %v2789, %v2845
    %v2854 = vmul.f32 %v2790, %v2846
    %v2855 = vmul.f32 %v2791, %v2847
    %v2856 = vpack.c.bf16 %v2850, %v2848
    %v2857 = vpack.c.bf16 %v2851, %v2849
    %v2858 = vpack.c.bf16 %v2854, %v2852
    %v2859 = vpack.c.bf16 %v2855, %v2853
    %s2860 = scalar_lea.vmem [#allocation23], 128
    %v2861 = vld [vmem:[%s2860] sm:$0xf]
    %v2862 = vld [vmem:[%s2860 + $0x4] sm:$0xf]
    %v2863 = vld [vmem:[%s2860 + $0x8] sm:$0xf]
    %v2864 = vld [vmem:[%s2860 + $0xc] sm:$0xf]
    %v2865 = vld [vmem:[%s2860 + $0x10] sm:$0xf]
    %v2866 = vld [vmem:[%s2860 + $0x14] sm:$0xf]
    %v2867 = vld [vmem:[%s2860 + $0x18] sm:$0xf]
    %v2868 = vld [vmem:[%s2860 + $0x1c] sm:$0xf]
    %v2869 = vld [vmem:[%s2860 + $0x20] sm:$0xf]
    %v2870 = vld [vmem:[%s2860 + $0x24] sm:$0xf]
    %v2871 = vld [vmem:[%s2860 + $0x28] sm:$0xf]
    %v2872 = vld [vmem:[%s2860 + $0x2c] sm:$0xf]
    %v2873 = vld [vmem:[%s2860 + $0x30] sm:$0xf]
    %v2874 = vld [vmem:[%s2860 + $0x34] sm:$0xf]
    %v2875 = vld [vmem:[%s2860 + $0x38] sm:$0xf]
    %v2876 = vld [vmem:[%s2860 + $0x3c] sm:$0xf]
    %v2877 = vld [vmem:[%s2860 + $0x40] sm:$0xf]
    %v2878 = vld [vmem:[%s2860 + $0x44] sm:$0xf]
    %v2879 = vld [vmem:[%s2860 + $0x48] sm:$0xf]
    %v2880 = vld [vmem:[%s2860 + $0x4c] sm:$0xf]
    %v2881 = vld [vmem:[%s2860 + $0x50] sm:$0xf]
    %v2882 = vld [vmem:[%s2860 + $0x54] sm:$0xf]
    %v2883 = vld [vmem:[%s2860 + $0x58] sm:$0xf]
    %v2884 = vld [vmem:[%s2860 + $0x5c] sm:$0xf]
    %v2885 = vld [vmem:[%s2860 + $0x60] sm:$0xf]
    %v2886 = vld [vmem:[%s2860 + $0x64] sm:$0xf]
    %v2887 = vld [vmem:[%s2860 + $0x68] sm:$0xf]
    %v2888 = vld [vmem:[%s2860 + $0x6c] sm:$0xf]
    %v2889 = vld [vmem:[%s2860 + $0x70] sm:$0xf]
    %v2890 = vld [vmem:[%s2860 + $0x74] sm:$0xf]
    %v2891 = vld [vmem:[%s2860 + $0x78] sm:$0xf]
    %v2892 = vld [vmem:[%s2860 + $0x7c] sm:$0xf]
    %s2893 = scalar_lea.vmem [#allocation25], 1
    %v2894 = vld [vmem:[%s2893] sm:$0x1]
    %v2896 = vlaneseq
    %v2897 = vshrl.u32 %v2896, 7
    %v2898 = vsub.s32 0, %v2897
    %v2899 = vrot.slane %v2894, %v2898
    %v2933 = vunpack.c.l.b16 %v2861
    %v2934 = vunpack.c.l.b16 %v2862
    %v2935 = vunpack.c.l.b16 %v2863
    %v2936 = vunpack.c.l.b16 %v2864
    %v2937 = vunpack.c.l.b16 %v2865
    %v2938 = vunpack.c.l.b16 %v2866
    %v2939 = vunpack.c.l.b16 %v2867
    %v2940 = vunpack.c.l.b16 %v2868
    %v2941 = vunpack.c.l.b16 %v2869
    %v2942 = vunpack.c.l.b16 %v2870
    %v2943 = vunpack.c.l.b16 %v2871
    %v2944 = vunpack.c.l.b16 %v2872
    %v2945 = vunpack.c.l.b16 %v2873
    %v2946 = vunpack.c.l.b16 %v2874
    %v2947 = vunpack.c.l.b16 %v2875
    %v2948 = vunpack.c.l.b16 %v2876
    %v2949 = vunpack.c.l.b16 %v2877
    %v2950 = vunpack.c.l.b16 %v2878
    %v2951 = vunpack.c.l.b16 %v2879
    %v2952 = vunpack.c.l.b16 %v2880
    %v2953 = vunpack.c.l.b16 %v2881
    %v2954 = vunpack.c.l.b16 %v2882
    %v2955 = vunpack.c.l.b16 %v2883
    %v2956 = vunpack.c.l.b16 %v2884
    %v2957 = vunpack.c.l.b16 %v2885
    %v2958 = vunpack.c.l.b16 %v2886
    %v2959 = vunpack.c.l.b16 %v2887
    %v2960 = vunpack.c.l.b16 %v2888
    %v2961 = vunpack.c.l.b16 %v2889
    %v2962 = vunpack.c.l.b16 %v2890
    %v2963 = vunpack.c.l.b16 %v2891
    %v2964 = vunpack.c.l.b16 %v2892
    %v2965 = vpack.c.b16 %v2934, %v2933
    %v2966 = vpack.c.b16 %v2936, %v2935
    %v2967 = vpack.c.b16 %v2938, %v2937
    %v2968 = vpack.c.b16 %v2940, %v2939
    %v2969 = vpack.c.b16 %v2942, %v2941
    %v2970 = vpack.c.b16 %v2944, %v2943
    %v2971 = vpack.c.b16 %v2946, %v2945
    %v2972 = vpack.c.b16 %v2948, %v2947
    %v2973 = vpack.c.b16 %v2950, %v2949
    %v2974 = vpack.c.b16 %v2952, %v2951
    %v2975 = vpack.c.b16 %v2954, %v2953
    %v2976 = vpack.c.b16 %v2956, %v2955
    %v2977 = vpack.c.b16 %v2958, %v2957
    %v2978 = vpack.c.b16 %v2960, %v2959
    %v2979 = vpack.c.b16 %v2962, %v2961
    %v2980 = vpack.c.b16 %v2964, %v2963
    %2997 = vmatprep.subr.bf16.mxu0 0
    %2998 = vmatpush1.bf16.msra.mxu0 %v2965
    %2999 = vmatprep.subr.bf16.mxu0 0
    %3000 = vmatpush1.bf16.msra.mxu0 %v2966
    %3001 = vmatprep.subr.bf16.mxu0 0
    %3002 = vmatpush1.bf16.msra.mxu0 %v2967
    %3003 = vmatprep.subr.bf16.mxu0 0
    %3004 = vmatpush1.bf16.msra.mxu0 %v2968
    %3005 = vmatprep.subr.bf16.mxu0 0
    %3006 = vmatpush1.bf16.msra.mxu0 %v2969
    %3007 = vmatprep.subr.bf16.mxu0 0
    %3008 = vmatpush1.bf16.msra.mxu0 %v2970
    %3009 = vmatprep.subr.bf16.mxu0 0
    %3010 = vmatpush1.bf16.msra.mxu0 %v2971
    %3011 = vmatprep.subr.bf16.mxu0 0
    %3012 = vmatpush1.bf16.msra.mxu0 %v2972
    %3013 = vmatprep.subr.bf16.mxu0 0
    %3014 = vmatpush1.bf16.msra.mxu0 %v2973
    %3015 = vmatprep.subr.bf16.mxu0 0
    %3016 = vmatpush1.bf16.msra.mxu0 %v2974
    %3017 = vmatprep.subr.bf16.mxu0 0
    %3018 = vmatpush1.bf16.msra.mxu0 %v2975
    %3019 = vmatprep.subr.bf16.mxu0 0
    %3020 = vmatpush1.bf16.msra.mxu0 %v2976
    %3021 = vmatprep.subr.bf16.mxu0 0
    %3022 = vmatpush1.bf16.msra.mxu0 %v2977
    %3023 = vmatprep.subr.bf16.mxu0 0
    %3024 = vmatpush1.bf16.msra.mxu0 %v2978
    %3025 = vmatprep.subr.bf16.mxu0 0
    %3026 = vmatpush1.bf16.msra.mxu0 %v2979
    %3027 = vmatprep.subr.bf16.mxu0 0
    %3028 = vmatpush1.bf16.msra.mxu0 %v2980
    %3029 = vmatprep.mubr.bf16.mxu0 %v2857
    %3030 = vmatmul.mubr.bf16.gmra.mrb[0].mxu0 %v2856
    %v3031 = vpop.f32.mrb[0].mxu0
    %v3032 = vadd.f32 %v2899, %v3031
    %v3033 = vpop.f32.mrb[0].mxu0
    %v3034 = vpop.f32.mrb[0].mxu0
    %v3035 = vadd.f32 %v2899, %v3034
    %v3036 = vpop.f32.mrb[0].mxu0
    %3037 = vmatprep.mubr.bf16.mxu0 %v2859
    %3038 = vmatmul.mubr.bf16.gmra.mrb[0].mxu0 %v2858
    %v3039 = vpop.f32.mrb[0].mxu0
    %v3040 = vadd.f32 %v2899, %v3039
    %v3041 = vpop.f32.mrb[0].mxu0
    %v3042 = vpop.f32.mrb[0].mxu0
    %v3043 = vadd.f32 %v2899, %v3042
    %v3044 = vpop.f32.mrb[0].mxu0
    %3045 = vdwg.mxu0
    %v3046 = vadd.f32 %v2547, %v3032
    %v3047 = vadd.f32 %v2548, %v3035
    %v3048 = vadd.f32 %v2549, %v3040
    %v3049 = vadd.f32 %v2550, %v3043
    %v3050 = vld [vmem:[#allocation26] sm:$0x1]
    %v3051 = vld [vmem:[#allocation28] sm:$0x1]
    %3052 = vadd.xlane.f32.xlu0 %v3046
    %v3053 = vpop.xlane.xlu0 %3052
    %3054 = vadd.xlane.f32.xlu0 %v3047
    %v3055 = vpop.xlane.xlu0 %3054
    %3056 = vadd.xlane.f32.xlu0 %v3048
    %v3057 = vpop.xlane.xlu0 %3056
    %3058 = vadd.xlane.f32.xlu0 %v3049
    %v3059 = vpop.xlane.xlu0 %3058
    %v3060 = vmul.f32 %v3053, %v967
    %v3061 = vmul.f32 %v3055, %v967
    %v3062 = vmul.f32 %v3057, %v967
    %v3063 = vmul.f32 %v3059, %v967
    %v3064 = vsub.f32 %v3046, %v3060
    %v3065 = vsub.f32 %v3047, %v3061
    %v3066 = vsub.f32 %v3048, %v3062
    %v3067 = vsub.f32 %v3049, %v3063
    %v3068 = vmul.f32 %v3064, %v3064
    %v3069 = vmul.f32 %v3065, %v3065
    %v3070 = vmul.f32 %v3066, %v3066
    %v3071 = vmul.f32 %v3067, %v3067
    %3072 = vadd.xlane.f32.xlu0 %v3068
    %v3073 = vpop.xlane.xlu0 %3072
    %3074 = vadd.xlane.f32.xlu0 %v3069
    %v3075 = vpop.xlane.xlu0 %3074
    %3076 = vadd.xlane.f32.xlu0 %v3070
    %v3077 = vpop.xlane.xlu0 %3076
    %3078 = vadd.xlane.f32.xlu0 %v3071
    %v3079 = vpop.xlane.xlu0 %3078
    %v3080 = vmul.f32 %v3073, %v967
    %v3081 = vmul.f32 %v3075, %v967
    %v3082 = vmul.f32 %v3077, %v967
    %v3083 = vmul.f32 %v3079, %v967
    %v3084 = vadd.f32 %v3080, 1e-06
    %v3085 = vadd.f32 %v3081, 1e-06
    %v3086 = vadd.f32 %v3082, 1e-06
    %v3087 = vadd.f32 %v3083, 1e-06
    %v3088 = vrsqrt.pop %v3084
    %v3089 = vrsqrt.pop %v3085
    %v3090 = vrsqrt.pop %v3086
    %v3091 = vrsqrt.pop %v3087
    %v3092 = vmul.f32 %v3064, %v3088
    %v3093 = vmul.f32 %v3065, %v3089
    %v3094 = vmul.f32 %v3066, %v3090
    %v3095 = vmul.f32 %v3067, %v3091
    %v3097 = vlaneseq
    %v3098 = vshrl.u32 %v3097, 7
    %v3099 = vsub.s32 0, %v3098
    %v3100 = vrot.slane %v3050, %v3099
    %v3102 = vmul.f32 %v3092, %v3100
    %v3103 = vmul.f32 %v3093, %v3100
    %v3104 = vmul.f32 %v3094, %v3100
    %v3105 = vmul.f32 %v3095, %v3100
    %v3107 = vlaneseq
    %v3108 = vshrl.u32 %v3107, 7
    %v3109 = vsub.s32 0, %v3108
    %v3110 = vrot.slane %v3051, %v3109
    %v3112 = vadd.f32 %v3102, %v3110
    %v3113 = vadd.f32 %v3103, %v3110
    %v3114 = vadd.f32 %v3104, %v3110
    %v3115 = vadd.f32 %v3105, %v3110
    %v3116 = vadd.f32 %v3112, %v3113
    %v3117 = vrot.slane %v3116, 4
    %v3118 = vadd.f32 %v3116, %v3117
    %v3119 = vrot.slane %v3118, 2
    %v3120 = vadd.f32 %v3118, %v3119
    %v3121 = vrot.slane %v3120, 1
    %v3122 = vadd.f32 %v3120, %v3121
    %v3123 = vadd.f32 %v3114, %v3115
    %v3124 = vrot.slane %v3123, 4
    %v3125 = vadd.f32 %v3123, %v3124
    %v3126 = vrot.slane %v3125, 2
    %v3127 = vadd.f32 %v3125, %v3126
    %v3128 = vrot.slane %v3127, 1
    %v3129 = vadd.f32 %v3127, %v3128
    %v3130 = vrcp.pop 16.0
    %v3131 = vmul.f32 %v3122, %v3130
    %v3132 = vmul.f32 %v3129, %v3130
    %v3133 = vpack.c.bf16 %v3131, %v3131
    %v3134 = vpack.c.bf16 %v3132, %v3132
    %v3135 = vld [vmem:[#allocation29] sm:$0xff]
    %v3136 = vld [vmem:[#allocation29 + $0x8] sm:$0xff]
    %v3137 = vld [vmem:[#allocation29 + $0x10] sm:$0xff]
    %v3138 = vld [vmem:[#allocation29 + $0x18] sm:$0xff]
    %v3139 = vld [vmem:[#allocation29 + $0x20] sm:$0xff]
    %v3140 = vld [vmem:[#allocation29 + $0x28] sm:$0xff]
    %v3141 = vld [vmem:[#allocation29 + $0x30] sm:$0xff]
    %v3142 = vld [vmem:[#allocation29 + $0x38] sm:$0xff]
    %v3143 = vld [vmem:[#allocation29 + $0x40] sm:$0xff]
    %v3144 = vld [vmem:[#allocation29 + $0x48] sm:$0xff]
    %v3145 = vld [vmem:[#allocation29 + $0x50] sm:$0xff]
    %v3146 = vld [vmem:[#allocation29 + $0x58] sm:$0xff]
    %v3147 = vld [vmem:[#allocation29 + $0x60] sm:$0xff]
    %v3148 = vld [vmem:[#allocation29 + $0x68] sm:$0xff]
    %v3149 = vld [vmem:[#allocation29 + $0x70] sm:$0xff]
    %v3150 = vld [vmem:[#allocation29 + $0x78] sm:$0xff]
    %v3151 = vld [vmem:[#allocation29 + $0x80] sm:$0xff]
    %v3152 = vld [vmem:[#allocation29 + $0x88] sm:$0xff]
    %v3153 = vld [vmem:[#allocation29 + $0x90] sm:$0xff]
    %v3154 = vld [vmem:[#allocation29 + $0x98] sm:$0xff]
    %v3155 = vld [vmem:[#allocation29 + $0xa0] sm:$0xff]
    %v3156 = vld [vmem:[#allocation29 + $0xa8] sm:$0xff]
    %v3157 = vld [vmem:[#allocation29 + $0xb0] sm:$0xff]
    %v3158 = vld [vmem:[#allocation29 + $0xb8] sm:$0xff]
    %v3159 = vld [vmem:[#allocation29 + $0xc0] sm:$0xff]
    %v3160 = vld [vmem:[#allocation29 + $0xc8] sm:$0xff]
    %v3161 = vld [vmem:[#allocation29 + $0xd0] sm:$0xff]
    %v3162 = vld [vmem:[#allocation29 + $0xd8] sm:$0xff]
    %v3163 = vld [vmem:[#allocation29 + $0xe0] sm:$0xff]
    %v3164 = vld [vmem:[#allocation29 + $0xe8] sm:$0xff]
    %v3165 = vld [vmem:[#allocation29 + $0xf0] sm:$0xff]
    %v3166 = vld [vmem:[#allocation29 + $0xf8] sm:$0xff]
    %v3167 = vld [vmem:[#allocation29 + $0x100] sm:$0xff]
    %v3168 = vld [vmem:[#allocation29 + $0x108] sm:$0xff]
    %v3169 = vld [vmem:[#allocation29 + $0x110] sm:$0xff]
    %v3170 = vld [vmem:[#allocation29 + $0x118] sm:$0xff]
    %v3171 = vld [vmem:[#allocation29 + $0x120] sm:$0xff]
    %v3172 = vld [vmem:[#allocation29 + $0x128] sm:$0xff]
    %v3173 = vld [vmem:[#allocation29 + $0x130] sm:$0xff]
    %v3174 = vld [vmem:[#allocation29 + $0x138] sm:$0xff]
    %v3175 = vld [vmem:[#allocation29 + $0x140] sm:$0xff]
    %v3176 = vld [vmem:[#allocation29 + $0x148] sm:$0xff]
    %v3177 = vld [vmem:[#allocation29 + $0x150] sm:$0xff]
    %v3178 = vld [vmem:[#allocation29 + $0x158] sm:$0xff]
    %v3179 = vld [vmem:[#allocation29 + $0x160] sm:$0xff]
    %v3180 = vld [vmem:[#allocation29 + $0x168] sm:$0xff]
    %v3181 = vld [vmem:[#allocation29 + $0x170] sm:$0xff]
    %v3182 = vld [vmem:[#allocation29 + $0x178] sm:$0xff]
    %v3183 = vld [vmem:[#allocation29 + $0x180] sm:$0xff]
    %v3184 = vld [vmem:[#allocation29 + $0x188] sm:$0xff]
    %v3185 = vld [vmem:[#allocation29 + $0x190] sm:$0xff]
    %v3186 = vld [vmem:[#allocation29 + $0x198] sm:$0xff]
    %v3187 = vld [vmem:[#allocation29 + $0x1a0] sm:$0xff]
    %v3188 = vld [vmem:[#allocation29 + $0x1a8] sm:$0xff]
    %v3189 = vld [vmem:[#allocation29 + $0x1b0] sm:$0xff]
    %v3190 = vld [vmem:[#allocation29 + $0x1b8] sm:$0xff]
    %v3191 = vld [vmem:[#allocation29 + $0x1c0] sm:$0xff]
    %v3192 = vld [vmem:[#allocation29 + $0x1c8] sm:$0xff]
    %v3193 = vld [vmem:[#allocation29 + $0x1d0] sm:$0xff]
    %v3194 = vld [vmem:[#allocation29 + $0x1d8] sm:$0xff]
    %v3195 = vld [vmem:[#allocation29 + $0x1e0] sm:$0xff]
    %v3196 = vld [vmem:[#allocation29 + $0x1e8] sm:$0xff]
    %v3197 = vld [vmem:[#allocation29 + $0x1f0] sm:$0xff]
    %v3198 = vld [vmem:[#allocation29 + $0x1f8] sm:$0xff]
    %v3199 = vld [vmem:[#allocation31] sm:$0xff]
    %v3201 = vlaneseq
    %v3202 = vshrl.u32 %v3201, 7
    %v3203 = vsub.s32 0, %v3202
    %v3204 = vrot.slane %v3199, %v3203
    %v3205 = vlaneseq
    %v3206 = vshrl.u32 %v3205, 7
    %v3207 = vsub.s32 1, %v3206
    %v3208 = vrot.slane %v3199, %v3207
    %v3209 = vlaneseq
    %v3210 = vshrl.u32 %v3209, 7
    %v3211 = vsub.s32 2, %v3210
    %v3212 = vrot.slane %v3199, %v3211
    %v3213 = vlaneseq
    %v3214 = vshrl.u32 %v3213, 7
    %v3215 = vsub.s32 3, %v3214
    %v3216 = vrot.slane %v3199, %v3215
    %v3217 = vlaneseq
    %v3218 = vshrl.u32 %v3217, 7
    %v3219 = vsub.s32 4, %v3218
    %v3220 = vrot.slane %v3199, %v3219
    %v3221 = vlaneseq
    %v3222 = vshrl.u32 %v3221, 7
    %v3223 = vsub.s32 5, %v3222
    %v3224 = vrot.slane %v3199, %v3223
    %v3225 = vlaneseq
    %v3226 = vshrl.u32 %v3225, 7
    %v3227 = vsub.s32 6, %v3226
    %v3228 = vrot.slane %v3199, %v3227
    %v3229 = vlaneseq
    %v3230 = vshrl.u32 %v3229, 7
    %v3231 = vsub.s32 7, %v3230
    %v3232 = vrot.slane %v3199, %v3231
    %v3243 = vunpack.c.l.b16 %v3133
    %v3244 = vunpack.c.l.b16 %v3134
    %vm3245 = vcmask 1041409
    %v3246 = vsel %vm3245, %v3244, %v3243
    %v3247 = vpack.c.b16 %v3246, %v3246
    %v3313 = vunpack.c.l.b16 %v3135
    %v3314 = vunpack.c.h.b16 %v3135
    %v3315 = vunpack.c.l.b16 %v3136
    %v3316 = vunpack.c.h.b16 %v3136
    %v3317 = vunpack.c.l.b16 %v3137
    %v3318 = vunpack.c.h.b16 %v3137
    %v3319 = vunpack.c.l.b16 %v3138
    %v3320 = vunpack.c.h.b16 %v3138
    %v3321 = vunpack.c.l.b16 %v3139
    %v3322 = vunpack.c.h.b16 %v3139
    %v3323 = vunpack.c.l.b16 %v3140
    %v3324 = vunpack.c.h.b16 %v3140
    %v3325 = vunpack.c.l.b16 %v3141
    %v3326 = vunpack.c.h.b16 %v3141
    %v3327 = vunpack.c.l.b16 %v3142
    %v3328 = vunpack.c.h.b16 %v3142
    %v3329 = vunpack.c.l.b16 %v3143
    %v3330 = vunpack.c.h.b16 %v3143
    %v3331 = vunpack.c.l.b16 %v3144
    %v3332 = vunpack.c.h.b16 %v3144
    %v3333 = vunpack.c.l.b16 %v3145
    %v3334 = vunpack.c.h.b16 %v3145
    %v3335 = vunpack.c.l.b16 %v3146
    %v3336 = vunpack.c.h.b16 %v3146
    %v3337 = vunpack.c.l.b16 %v3147
    %v3338 = vunpack.c.h.b16 %v3147
    %v3339 = vunpack.c.l.b16 %v3148
    %v3340 = vunpack.c.h.b16 %v3148
    %v3341 = vunpack.c.l.b16 %v3149
    %v3342 = vunpack.c.h.b16 %v3149
    %v3343 = vunpack.c.l.b16 %v3150
    %v3344 = vunpack.c.h.b16 %v3150
    %v3345 = vunpack.c.l.b16 %v3151
    %v3346 = vunpack.c.h.b16 %v3151
    %v3347 = vunpack.c.l.b16 %v3152
    %v3348 = vunpack.c.h.b16 %v3152
    %v3349 = vunpack.c.l.b16 %v3153
    %v3350 = vunpack.c.h.b16 %v3153
    %v3351 = vunpack.c.l.b16 %v3154
    %v3352 = vunpack.c.h.b16 %v3154
    %v3353 = vunpack.c.l.b16 %v3155
    %v3354 = vunpack.c.h.b16 %v3155
    %v3355 = vunpack.c.l.b16 %v3156
    %v3356 = vunpack.c.h.b16 %v3156
    %v3357 = vunpack.c.l.b16 %v3157
    %v3358 = vunpack.c.h.b16 %v3157
    %v3359 = vunpack.c.l.b16 %v3158
    %v3360 = vunpack.c.h.b16 %v3158
    %v3361 = vunpack.c.l.b16 %v3159
    %v3362 = vunpack.c.h.b16 %v3159
    %v3363 = vunpack.c.l.b16 %v3160
    %v3364 = vunpack.c.h.b16 %v3160
    %v3365 = vunpack.c.l.b16 %v3161
    %v3366 = vunpack.c.h.b16 %v3161
    %v3367 = vunpack.c.l.b16 %v3162
    %v3368 = vunpack.c.h.b16 %v3162
    %v3369 = vunpack.c.l.b16 %v3163
    %v3370 = vunpack.c.h.b16 %v3163
    %v3371 = vunpack.c.l.b16 %v3164
    %v3372 = vunpack.c.h.b16 %v3164
    %v3373 = vunpack.c.l.b16 %v3165
    %v3374 = vunpack.c.h.b16 %v3165
    %v3375 = vunpack.c.l.b16 %v3166
    %v3376 = vunpack.c.h.b16 %v3166
    %v3377 = vunpack.c.l.b16 %v3167
    %v3378 = vunpack.c.h.b16 %v3167
    %v3379 = vunpack.c.l.b16 %v3168
    %v3380 = vunpack.c.h.b16 %v3168
    %v3381 = vunpack.c.l.b16 %v3169
    %v3382 = vunpack.c.h.b16 %v3169
    %v3383 = vunpack.c.l.b16 %v3170
    %v3384 = vunpack.c.h.b16 %v3170
    %v3385 = vunpack.c.l.b16 %v3171
    %v3386 = vunpack.c.h.b16 %v3171
    %v3387 = vunpack.c.l.b16 %v3172
    %v3388 = vunpack.c.h.b16 %v3172
    %v3389 = vunpack.c.l.b16 %v3173
    %v3390 = vunpack.c.h.b16 %v3173
    %v3391 = vunpack.c.l.b16 %v3174
    %v3392 = vunpack.c.h.b16 %v3174
    %v3393 = vunpack.c.l.b16 %v3175
    %v3394 = vunpack.c.h.b16 %v3175
    %v3395 = vunpack.c.l.b16 %v3176
    %v3396 = vunpack.c.h.b16 %v3176
    %v3397 = vunpack.c.l.b16 %v3177
    %v3398 = vunpack.c.h.b16 %v3177
    %v3399 = vunpack.c.l.b16 %v3178
    %v3400 = vunpack.c.h.b16 %v3178
    %v3401 = vunpack.c.l.b16 %v3179
    %v3402 = vunpack.c.h.b16 %v3179
    %v3403 = vunpack.c.l.b16 %v3180
    %v3404 = vunpack.c.h.b16 %v3180
    %v3405 = vunpack.c.l.b16 %v3181
    %v3406 = vunpack.c.h.b16 %v3181
    %v3407 = vunpack.c.l.b16 %v3182
    %v3408 = vunpack.c.h.b16 %v3182
    %v3409 = vunpack.c.l.b16 %v3183
    %v3410 = vunpack.c.h.b16 %v3183
    %v3411 = vunpack.c.l.b16 %v3184
    %v3412 = vunpack.c.h.b16 %v3184
    %v3413 = vunpack.c.l.b16 %v3185
    %v3414 = vunpack.c.h.b16 %v3185
    %v3415 = vunpack.c.l.b16 %v3186
    %v3416 = vunpack.c.h.b16 %v3186
    %v3417 = vunpack.c.l.b16 %v3187
    %v3418 = vunpack.c.h.b16 %v3187
    %v3419 = vunpack.c.l.b16 %v3188
    %v3420 = vunpack.c.h.b16 %v3188
    %v3421 = vunpack.c.l.b16 %v3189
    %v3422 = vunpack.c.h.b16 %v3189
    %v3423 = vunpack.c.l.b16 %v3190
    %v3424 = vunpack.c.h.b16 %v3190
    %v3425 = vunpack.c.l.b16 %v3191
    %v3426 = vunpack.c.h.b16 %v3191
    %v3427 = vunpack.c.l.b16 %v3192
    %v3428 = vunpack.c.h.b16 %v3192
    %v3429 = vunpack.c.l.b16 %v3193
    %v3430 = vunpack.c.h.b16 %v3193
    %v3431 = vunpack.c.l.b16 %v3194
    %v3432 = vunpack.c.h.b16 %v3194
    %v3433 = vunpack.c.l.b16 %v3195
    %v3434 = vunpack.c.h.b16 %v3195
    %v3435 = vunpack.c.l.b16 %v3196
    %v3436 = vunpack.c.h.b16 %v3196
    %v3437 = vunpack.c.l.b16 %v3197
    %v3438 = vunpack.c.h.b16 %v3197
    %v3439 = vunpack.c.l.b16 %v3198
    %v3440 = vunpack.c.h.b16 %v3198
    %v3441 = vpack.c.b16 %v3321, %v3313
    %v3442 = vpack.c.b16 %v3322, %v3314
    %v3443 = vpack.c.b16 %v3323, %v3315
    %v3444 = vpack.c.b16 %v3324, %v3316
    %v3445 = vpack.c.b16 %v3325, %v3317
    %v3446 = vpack.c.b16 %v3326, %v3318
    %v3447 = vpack.c.b16 %v3327, %v3319
    %v3448 = vpack.c.b16 %v3328, %v3320
    %v3449 = vpack.c.b16 %v3337, %v3329
    %v3450 = vpack.c.b16 %v3338, %v3330
    %v3451 = vpack.c.b16 %v3339, %v3331
    %v3452 = vpack.c.b16 %v3340, %v3332
    %v3453 = vpack.c.b16 %v3341, %v3333
    %v3454 = vpack.c.b16 %v3342, %v3334
    %v3455 = vpack.c.b16 %v3343, %v3335
    %v3456 = vpack.c.b16 %v3344, %v3336
    %v3457 = vpack.c.b16 %v3353, %v3345
    %v3458 = vpack.c.b16 %v3354, %v3346
    %v3459 = vpack.c.b16 %v3355, %v3347
    %v3460 = vpack.c.b16 %v3356, %v3348
    %v3461 = vpack.c.b16 %v3357, %v3349
    %v3462 = vpack.c.b16 %v3358, %v3350
    %v3463 = vpack.c.b16 %v3359, %v3351
    %v3464 = vpack.c.b16 %v3360, %v3352
    %v3465 = vpack.c.b16 %v3369, %v3361
    %v3466 = vpack.c.b16 %v3370, %v3362
    %v3467 = vpack.c.b16 %v3371, %v3363
    %v3468 = vpack.c.b16 %v3372, %v3364
    %v3469 = vpack.c.b16 %v3373, %v3365
    %v3470 = vpack.c.b16 %v3374, %v3366
    %v3471 = vpack.c.b16 %v3375, %v3367
    %v3472 = vpack.c.b16 %v3376, %v3368
    %v3473 = vpack.c.b16 %v3385, %v3377
    %v3474 = vpack.c.b16 %v3386, %v3378
    %v3475 = vpack.c.b16 %v3387, %v3379
    %v3476 = vpack.c.b16 %v3388, %v3380
    %v3477 = vpack.c.b16 %v3389, %v3381
    %v3478 = vpack.c.b16 %v3390, %v3382
    %v3479 = vpack.c.b16 %v3391, %v3383
    %v3480 = vpack.c.b16 %v3392, %v3384
    %v3481 = vpack.c.b16 %v3401, %v3393
    %v3482 = vpack.c.b16 %v3402, %v3394
    %v3483 = vpack.c.b16 %v3403, %v3395
    %v3484 = vpack.c.b16 %v3404, %v3396
    %v3485 = vpack.c.b16 %v3405, %v3397
    %v3486 = vpack.c.b16 %v3406, %v3398
    %v3487 = vpack.c.b16 %v3407, %v3399
    %v3488 = vpack.c.b16 %v3408, %v3400
    %v3489 = vpack.c.b16 %v3417, %v3409
    %v3490 = vpack.c.b16 %v3418, %v3410
    %v3491 = vpack.c.b16 %v3419, %v3411
    %v3492 = vpack.c.b16 %v3420, %v3412
    %v3493 = vpack.c.b16 %v3421, %v3413
    %v3494 = vpack.c.b16 %v3422, %v3414
    %v3495 = vpack.c.b16 %v3423, %v3415
    %v3496 = vpack.c.b16 %v3424, %v3416
    %v3497 = vpack.c.b16 %v3433, %v3425
    %v3498 = vpack.c.b16 %v3434, %v3426
    %v3499 = vpack.c.b16 %v3435, %v3427
    %v3500 = vpack.c.b16 %v3436, %v3428
    %v3501 = vpack.c.b16 %v3437, %v3429
    %v3502 = vpack.c.b16 %v3438, %v3430
    %v3503 = vpack.c.b16 %v3439, %v3431
    %v3504 = vpack.c.b16 %v3440, %v3432
    %3569 = vmatprep.subr.bf16.mxu0 %v3442
    %3570 = vmatpush1.bf16.msra.mxu0 %v3441
    %3571 = vmatprep.subr.bf16.mxu0 %v3450
    %3572 = vmatpush1.bf16.msra.mxu0 %v3449
    %3573 = vmatprep.subr.bf16.mxu0 %v3458
    %3574 = vmatpush1.bf16.msra.mxu0 %v3457
    %3575 = vmatprep.subr.bf16.mxu0 %v3466
    %3576 = vmatpush1.bf16.msra.mxu0 %v3465
    %3577 = vmatprep.subr.bf16.mxu0 %v3474
    %3578 = vmatpush1.bf16.msra.mxu0 %v3473
    %3579 = vmatprep.subr.bf16.mxu0 %v3482
    %3580 = vmatpush1.bf16.msra.mxu0 %v3481
    %3581 = vmatprep.subr.bf16.mxu0 %v3490
    %3582 = vmatpush1.bf16.msra.mxu0 %v3489
    %3583 = vmatprep.subr.bf16.mxu0 %v3498
    %3584 = vmatpush1.bf16.msra.mxu0 %v3497
    %3585 = vmatprep.subr.bf16.mxu0 0
    %3586 = vmatpush1.bf16.msra.mxu0 0
    %3587 = vmatprep.subr.bf16.mxu0 0
    %3588 = vmatpush1.bf16.msra.mxu0 0
    %3589 = vmatprep.subr.bf16.mxu0 0
    %3590 = vmatpush1.bf16.msra.mxu0 0
    %3591 = vmatprep.subr.bf16.mxu0 0
    %3592 = vmatpush1.bf16.msra.mxu0 0
    %3593 = vmatprep.subr.bf16.mxu0 0
    %3594 = vmatpush1.bf16.msra.mxu0 0
    %3595 = vmatprep.subr.bf16.mxu0 0
    %3596 = vmatpush1.bf16.msra.mxu0 0
    %3597 = vmatprep.subr.bf16.mxu0 0
    %3598 = vmatpush1.bf16.msra.mxu0 0
    %3599 = vmatprep.subr.bf16.mxu0 0
    %3600 = vmatpush1.bf16.msra.mxu0 0
    %3601 = vmatprep.mubr.bf16.mxu0 0
    %3602 = vmatmul.mubr.bf16.gmra.mrb[0].mxu0 %v3247
    %v3603 = vpop.f32.mrb[0].mxu0
    %v3604 = vadd.f32 %v3204, %v3603
    %v3605 = vpop.f32.mrb[0].mxu0
    %v3606 = vadd.f32 %v3208, %v3605
    %v3607 = vpop.f32.mrb[0].mxu0
    %v3608 = vpop.f32.mrb[0].mxu0
    %3609 = vdwg.mxu0
    %3610 = vmatprep.subr.bf16.mxu0 %v3444
    %3611 = vmatpush1.bf16.msra.mxu0 %v3443
    %3612 = vmatprep.subr.bf16.mxu0 %v3452
    %3613 = vmatpush1.bf16.msra.mxu0 %v3451
    %3614 = vmatprep.subr.bf16.mxu0 %v3460
    %3615 = vmatpush1.bf16.msra.mxu0 %v3459
    %3616 = vmatprep.subr.bf16.mxu0 %v3468
    %3617 = vmatpush1.bf16.msra.mxu0 %v3467
    %3618 = vmatprep.subr.bf16.mxu0 %v3476
    %3619 = vmatpush1.bf16.msra.mxu0 %v3475
    %3620 = vmatprep.subr.bf16.mxu0 %v3484
    %3621 = vmatpush1.bf16.msra.mxu0 %v3483
    %3622 = vmatprep.subr.bf16.mxu0 %v3492
    %3623 = vmatpush1.bf16.msra.mxu0 %v3491
    %3624 = vmatprep.subr.bf16.mxu0 %v3500
    %3625 = vmatpush1.bf16.msra.mxu0 %v3499
    %3626 = vmatprep.subr.bf16.mxu0 0
    %3627 = vmatpush1.bf16.msra.mxu0 0
    %3628 = vmatprep.subr.bf16.mxu0 0
    %3629 = vmatpush1.bf16.msra.mxu0 0
    %3630 = vmatprep.subr.bf16.mxu0 0
    %3631 = vmatpush1.bf16.msra.mxu0 0
    %3632 = vmatprep.subr.bf16.mxu0 0
    %3633 = vmatpush1.bf16.msra.mxu0 0
    %3634 = vmatprep.subr.bf16.mxu0 0
    %3635 = vmatpush1.bf16.msra.mxu0 0
    %3636 = vmatprep.subr.bf16.mxu0 0
    %3637 = vmatpush1.bf16.msra.mxu0 0
    %3638 = vmatprep.subr.bf16.mxu0 0
    %3639 = vmatpush1.bf16.msra.mxu0 0
    %3640 = vmatprep.subr.bf16.mxu0 0
    %3641 = vmatpush1.bf16.msra.mxu0 0
    %3642 = vmatprep.mubr.bf16.mxu0 0
    %3643 = vmatmul.mubr.bf16.gmra.mrb[0].mxu0 %v3247
    %v3644 = vpop.f32.mrb[0].mxu0
    %v3645 = vadd.f32 %v3212, %v3644
    %v3646 = vpop.f32.mrb[0].mxu0
    %v3647 = vadd.f32 %v3216, %v3646
    %v3648 = vpop.f32.mrb[0].mxu0
    %v3649 = vpop.f32.mrb[0].mxu0
    %3650 = vdwg.mxu0
    %3651 = vmatprep.subr.bf16.mxu0 %v3446
    %3652 = vmatpush1.bf16.msra.mxu0 %v3445
    %3653 = vmatprep.subr.bf16.mxu0 %v3454
    %3654 = vmatpush1.bf16.msra.mxu0 %v3453
    %3655 = vmatprep.subr.bf16.mxu0 %v3462
    %3656 = vmatpush1.bf16.msra.mxu0 %v3461
    %3657 = vmatprep.subr.bf16.mxu0 %v3470
    %3658 = vmatpush1.bf16.msra.mxu0 %v3469
    %3659 = vmatprep.subr.bf16.mxu0 %v3478
    %3660 = vmatpush1.bf16.msra.mxu0 %v3477
    %3661 = vmatprep.subr.bf16.mxu0 %v3486
    %3662 = vmatpush1.bf16.msra.mxu0 %v3485
    %3663 = vmatprep.subr.bf16.mxu0 %v3494
    %3664 = vmatpush1.bf16.msra.mxu0 %v3493
    %3665 = vmatprep.subr.bf16.mxu0 %v3502
    %3666 = vmatpush1.bf16.msra.mxu0 %v3501
    %3667 = vmatprep.subr.bf16.mxu0 0
    %3668 = vmatpush1.bf16.msra.mxu0 0
    %3669 = vmatprep.subr.bf16.mxu0 0
    %3670 = vmatpush1.bf16.msra.mxu0 0
    %3671 = vmatprep.subr.bf16.mxu0 0
    %3672 = vmatpush1.bf16.msra.mxu0 0
    %3673 = vmatprep.subr.bf16.mxu0 0
    %3674 = vmatpush1.bf16.msra.mxu0 0
    %3675 = vmatprep.subr.bf16.mxu0 0
    %3676 = vmatpush1.bf16.msra.mxu0 0
    %3677 = vmatprep.subr.bf16.mxu0 0
    %3678 = vmatpush1.bf16.msra.mxu0 0
    %3679 = vmatprep.subr.bf16.mxu0 0
    %3680 = vmatpush1.bf16.msra.mxu0 0
    %3681 = vmatprep.subr.bf16.mxu0 0
    %3682 = vmatpush1.bf16.msra.mxu0 0
    %3683 = vmatprep.mubr.bf16.mxu0 0
    %3684 = vmatmul.mubr.bf16.gmra.mrb[0].mxu0 %v3247
    %v3685 = vpop.f32.mrb[0].mxu0
    %v3686 = vadd.f32 %v3220, %v3685
    %v3687 = vpop.f32.mrb[0].mxu0
    %v3688 = vadd.f32 %v3224, %v3687
    %v3689 = vpop.f32.mrb[0].mxu0
    %v3690 = vpop.f32.mrb[0].mxu0
    %3691 = vdwg.mxu0
    %3692 = vmatprep.subr.bf16.mxu0 %v3448
    %3693 = vmatpush1.bf16.msra.mxu0 %v3447
    %3694 = vmatprep.subr.bf16.mxu0 %v3456
    %3695 = vmatpush1.bf16.msra.mxu0 %v3455
    %3696 = vmatprep.subr.bf16.mxu0 %v3464
    %3697 = vmatpush1.bf16.msra.mxu0 %v3463
    %3698 = vmatprep.subr.bf16.mxu0 %v3472
    %3699 = vmatpush1.bf16.msra.mxu0 %v3471
    %3700 = vmatprep.subr.bf16.mxu0 %v3480
    %3701 = vmatpush1.bf16.msra.mxu0 %v3479
    %3702 = vmatprep.subr.bf16.mxu0 %v3488
    %3703 = vmatpush1.bf16.msra.mxu0 %v3487
    %3704 = vmatprep.subr.bf16.mxu0 %v3496
    %3705 = vmatpush1.bf16.msra.mxu0 %v3495
    %3706 = vmatprep.subr.bf16.mxu0 %v3504
    %3707 = vmatpush1.bf16.msra.mxu0 %v3503
    %3708 = vmatprep.subr.bf16.mxu0 0
    %3709 = vmatpush1.bf16.msra.mxu0 0
    %3710 = vmatprep.subr.bf16.mxu0 0
    %3711 = vmatpush1.bf16.msra.mxu0 0
    %3712 = vmatprep.subr.bf16.mxu0 0
    %3713 = vmatpush1.bf16.msra.mxu0 0
    %3714 = vmatprep.subr.bf16.mxu0 0
    %3715 = vmatpush1.bf16.msra.mxu0 0
    %3716 = vmatprep.subr.bf16.mxu0 0
    %3717 = vmatpush1.bf16.msra.mxu0 0
    %3718 = vmatprep.subr.bf16.mxu0 0
    %3719 = vmatpush1.bf16.msra.mxu0 0
    %3720 = vmatprep.subr.bf16.mxu0 0
    %3721 = vmatpush1.bf16.msra.mxu0 0
    %3722 = vmatprep.subr.bf16.mxu0 0
    %3723 = vmatpush1.bf16.msra.mxu0 0
    %3724 = vmatprep.mubr.bf16.mxu0 0
    %3725 = vmatmul.mubr.bf16.gmra.mrb[0].mxu0 %v3247
    %v3726 = vpop.f32.mrb[0].mxu0
    %v3727 = vadd.f32 %v3228, %v3726
    %v3728 = vpop.f32.mrb[0].mxu0
    %v3729 = vadd.f32 %v3232, %v3728
    %v3730 = vpop.f32.mrb[0].mxu0
    %v3731 = vpop.f32.mrb[0].mxu0
    %3732 = vdwg.mxu0
    %v3741 = vcombine.low %v3604, %v3606
    %v3742 = vcombine.low %v3645, %v3647
    %v3744 = vunpack.c.l.s4 1983009808
    %v3745 = vunpack.c.0.s8 %v3744
    %v3746 = vlaneseq
    %v3747 = vshrl.u32 %v3746, 7
    %v3748 = vsub.s32 %v3745, %v3747
    %v3749 = vrot.slane %v3741, %v3748
    %v3751 = vunpack.c.l.s4 1983009808
    %v3752 = vunpack.c.0.s8 %v3751
    %v3753 = vlaneseq
    %v3754 = vshrl.u32 %v3753, 7
    %v3755 = vsub.s32 %v3752, %v3754
    %v3756 = vrot.slane %v3742, %v3755
    %v3757 = vcombine.low %v3749, %v3756
    %v3758 = vcombine.low %v3686, %v3688
    %v3759 = vcombine.low %v3727, %v3729
    %v3761 = vunpack.c.l.s4 1983009808
    %v3762 = vunpack.c.0.s8 %v3761
    %v3763 = vlaneseq
    %v3764 = vshrl.u32 %v3763, 7
    %v3765 = vsub.s32 %v3762, %v3764
    %v3766 = vrot.slane %v3758, %v3765
    %v3768 = vunpack.c.l.s4 1983009808
    %v3769 = vunpack.c.0.s8 %v3768
    %v3770 = vlaneseq
    %v3771 = vshrl.u32 %v3770, 7
    %v3772 = vsub.s32 %v3769, %v3771
    %v3773 = vrot.slane %v3759, %v3772
    %v3774 = vcombine.low %v3766, %v3773
    %3777 = vst [vmem:[#allocation35] sm:$0xff] %v3757
    %3778 = vst [vmem:[#allocation35 + $0x8] sm:$0xff] %v3774
    %v3779 = vmul.f32 %v3604, 0.5
    %v3780 = vmul.f32 %v3606, 0.5
    %v3781 = vmul.f32 %v3645, 0.5
    %v3782 = vmul.f32 %v3647, 0.5
    %v3783 = vmul.f32 %v3686, 0.5
    %v3784 = vmul.f32 %v3688, 0.5
    %v3785 = vmul.f32 %v3727, 0.5
    %v3786 = vmul.f32 %v3729, 0.5
    %v3787 = vmul.f32 %v3604, 0.044715
    %v3788 = vmul.f32 %v3606, 0.044715
    %v3789 = vmul.f32 %v3645, 0.044715
    %v3790 = vmul.f32 %v3647, 0.044715
    %v3791 = vmul.f32 %v3686, 0.044715
    %v3792 = vmul.f32 %v3688, 0.044715
    %v3793 = vmul.f32 %v3727, 0.044715
    %v3794 = vmul.f32 %v3729, 0.044715
    %v3795 = vmul.f32 %v3787, %v3604
    %v3796 = vmul.f32 %v3788, %v3606
    %v3797 = vmul.f32 %v3789, %v3645
    %v3798 = vmul.f32 %v3790, %v3647
    %v3799 = vmul.f32 %v3791, %v3686
    %v3800 = vmul.f32 %v3792, %v3688
    %v3801 = vmul.f32 %v3793, %v3727
    %v3802 = vmul.f32 %v3794, %v3729
    %v3803 = vmul.f32 %v3795, %v3604
    %v3804 = vmul.f32 %v3796, %v3606
    %v3805 = vmul.f32 %v3797, %v3645
    %v3806 = vmul.f32 %v3798, %v3647
    %v3807 = vmul.f32 %v3799, %v3686
    %v3808 = vmul.f32 %v3800, %v3688
    %v3809 = vmul.f32 %v3801, %v3727
    %v3810 = vmul.f32 %v3802, %v3729
    %v3811 = vadd.f32 %v3604, %v3803
    %v3812 = vadd.f32 %v3606, %v3804
    %v3813 = vadd.f32 %v3645, %v3805
    %v3814 = vadd.f32 %v3647, %v3806
    %v3815 = vadd.f32 %v3686, %v3807
    %v3816 = vadd.f32 %v3688, %v3808
    %v3817 = vadd.f32 %v3727, %v3809
    %v3818 = vadd.f32 %v3729, %v3810
    %v3819 = vmul.f32 %v3811, 0.7978846
    %v3820 = vmul.f32 %v3812, 0.7978846
    %v3821 = vmul.f32 %v3813, 0.7978846
    %v3822 = vmul.f32 %v3814, 0.7978846
    %v3823 = vmul.f32 %v3815, 0.7978846
    %v3824 = vmul.f32 %v3816, 0.7978846
    %v3825 = vmul.f32 %v3817, 0.7978846
    %v3826 = vmul.f32 %v3818, 0.7978846
    %v3827 = vtanh.pop %v3819
    %v3828 = vtanh.pop %v3820
    %v3829 = vtanh.pop %v3821
    %v3830 = vtanh.pop %v3822
    %v3831 = vtanh.pop %v3823
    %v3832 = vtanh.pop %v3824
    %v3833 = vtanh.pop %v3825
    %v3834 = vtanh.pop %v3826
    %v3835 = vadd.f32 %v3827, 1.0
    %v3836 = vadd.f32 %v3828, 1.0
    %v3837 = vadd.f32 %v3829, 1.0
    %v3838 = vadd.f32 %v3830, 1.0
    %v3839 = vadd.f32 %v3831, 1.0
    %v3840 = vadd.f32 %v3832, 1.0
    %v3841 = vadd.f32 %v3833, 1.0
    %v3842 = vadd.f32 %v3834, 1.0
    %v3843 = vmul.f32 %v3779, %v3835
    %v3844 = vmul.f32 %v3780, %v3836
    %v3845 = vmul.f32 %v3781, %v3837
    %v3846 = vmul.f32 %v3782, %v3838
    %v3847 = vmul.f32 %v3783, %v3839
    %v3848 = vmul.f32 %v3784, %v3840
    %v3849 = vmul.f32 %v3785, %v3841
    %v3850 = vmul.f32 %v3786, %v3842
    %v3851 = vpack.c.bf16 %v3843, %v3843
    %v3852 = vpack.c.bf16 %v3844, %v3844
    %v3853 = vpack.c.bf16 %v3845, %v3845
    %v3854 = vpack.c.bf16 %v3846, %v3846
    %v3855 = vpack.c.bf16 %v3847, %v3847
    %v3856 = vpack.c.bf16 %v3848, %v3848
    %v3857 = vpack.c.bf16 %v3849, %v3849
    %v3858 = vpack.c.bf16 %v3850, %v3850
    %v3859 = vld [vmem:[#allocation32] sm:$0xf]
    %v3860 = vld [vmem:[#allocation32 + $0x4] sm:$0xf]
    %v3861 = vld [vmem:[#allocation32 + $0x8] sm:$0xf]
    %v3862 = vld [vmem:[#allocation32 + $0xc] sm:$0xf]
    %v3863 = vld [vmem:[#allocation32 + $0x10] sm:$0xf]
    %v3864 = vld [vmem:[#allocation32 + $0x14] sm:$0xf]
    %v3865 = vld [vmem:[#allocation32 + $0x18] sm:$0xf]
    %v3866 = vld [vmem:[#allocation32 + $0x1c] sm:$0xf]
    %v3867 = vld [vmem:[#allocation32 + $0x20] sm:$0xf]
    %v3868 = vld [vmem:[#allocation32 + $0x24] sm:$0xf]
    %v3869 = vld [vmem:[#allocation32 + $0x28] sm:$0xf]
    %v3870 = vld [vmem:[#allocation32 + $0x2c] sm:$0xf]
    %v3871 = vld [vmem:[#allocation32 + $0x30] sm:$0xf]
    %v3872 = vld [vmem:[#allocation32 + $0x34] sm:$0xf]
    %v3873 = vld [vmem:[#allocation32 + $0x38] sm:$0xf]
    %v3874 = vld [vmem:[#allocation32 + $0x3c] sm:$0xf]
    %v3875 = vld [vmem:[#allocation32 + $0x40] sm:$0xf]
    %v3876 = vld [vmem:[#allocation32 + $0x44] sm:$0xf]
    %v3877 = vld [vmem:[#allocation32 + $0x48] sm:$0xf]
    %v3878 = vld [vmem:[#allocation32 + $0x4c] sm:$0xf]
    %v3879 = vld [vmem:[#allocation32 + $0x50] sm:$0xf]
    %v3880 = vld [vmem:[#allocation32 + $0x54] sm:$0xf]
    %v3881 = vld [vmem:[#allocation32 + $0x58] sm:$0xf]
    %v3882 = vld [vmem:[#allocation32 + $0x5c] sm:$0xf]
    %v3883 = vld [vmem:[#allocation32 + $0x60] sm:$0xf]
    %v3884 = vld [vmem:[#allocation32 + $0x64] sm:$0xf]
    %v3885 = vld [vmem:[#allocation32 + $0x68] sm:$0xf]
    %v3886 = vld [vmem:[#allocation32 + $0x6c] sm:$0xf]
    %v3887 = vld [vmem:[#allocation32 + $0x70] sm:$0xf]
    %v3888 = vld [vmem:[#allocation32 + $0x74] sm:$0xf]
    %v3889 = vld [vmem:[#allocation32 + $0x78] sm:$0xf]
    %v3890 = vld [vmem:[#allocation32 + $0x7c] sm:$0xf]
    %v3891 = vld [vmem:[#allocation32 + $0x80] sm:$0xf]
    %v3892 = vld [vmem:[#allocation32 + $0x84] sm:$0xf]
    %v3893 = vld [vmem:[#allocation32 + $0x88] sm:$0xf]
    %v3894 = vld [vmem:[#allocation32 + $0x8c] sm:$0xf]
    %v3895 = vld [vmem:[#allocation32 + $0x90] sm:$0xf]
    %v3896 = vld [vmem:[#allocation32 + $0x94] sm:$0xf]
    %v3897 = vld [vmem:[#allocation32 + $0x98] sm:$0xf]
    %v3898 = vld [vmem:[#allocation32 + $0x9c] sm:$0xf]
    %v3899 = vld [vmem:[#allocation32 + $0xa0] sm:$0xf]
    %v3900 = vld [vmem:[#allocation32 + $0xa4] sm:$0xf]
    %v3901 = vld [vmem:[#allocation32 + $0xa8] sm:$0xf]
    %v3902 = vld [vmem:[#allocation32 + $0xac] sm:$0xf]
    %v3903 = vld [vmem:[#allocation32 + $0xb0] sm:$0xf]
    %v3904 = vld [vmem:[#allocation32 + $0xb4] sm:$0xf]
    %v3905 = vld [vmem:[#allocation32 + $0xb8] sm:$0xf]
    %v3906 = vld [vmem:[#allocation32 + $0xbc] sm:$0xf]
    %v3907 = vld [vmem:[#allocation32 + $0xc0] sm:$0xf]
    %v3908 = vld [vmem:[#allocation32 + $0xc4] sm:$0xf]
    %v3909 = vld [vmem:[#allocation32 + $0xc8] sm:$0xf]
    %v3910 = vld [vmem:[#allocation32 + $0xcc] sm:$0xf]
    %v3911 = vld [vmem:[#allocation32 + $0xd0] sm:$0xf]
    %v3912 = vld [vmem:[#allocation32 + $0xd4] sm:$0xf]
    %v3913 = vld [vmem:[#allocation32 + $0xd8] sm:$0xf]
    %v3914 = vld [vmem:[#allocation32 + $0xdc] sm:$0xf]
    %v3915 = vld [vmem:[#allocation32 + $0xe0] sm:$0xf]
    %v3916 = vld [vmem:[#allocation32 + $0xe4] sm:$0xf]
    %v3917 = vld [vmem:[#allocation32 + $0xe8] sm:$0xf]
    %v3918 = vld [vmem:[#allocation32 + $0xec] sm:$0xf]
    %v3919 = vld [vmem:[#allocation32 + $0xf0] sm:$0xf]
    %v3920 = vld [vmem:[#allocation32 + $0xf4] sm:$0xf]
    %v3921 = vld [vmem:[#allocation32 + $0xf8] sm:$0xf]
    %v3922 = vld [vmem:[#allocation32 + $0xfc] sm:$0xf]
    %v3923 = vld [vmem:[#allocation32 + $0x100] sm:$0xf]
    %v3924 = vld [vmem:[#allocation32 + $0x104] sm:$0xf]
    %v3925 = vld [vmem:[#allocation32 + $0x108] sm:$0xf]
    %v3926 = vld [vmem:[#allocation32 + $0x10c] sm:$0xf]
    %v3927 = vld [vmem:[#allocation32 + $0x110] sm:$0xf]
    %v3928 = vld [vmem:[#allocation32 + $0x114] sm:$0xf]
    %v3929 = vld [vmem:[#allocation32 + $0x118] sm:$0xf]
    %v3930 = vld [vmem:[#allocation32 + $0x11c] sm:$0xf]
    %v3931 = vld [vmem:[#allocation32 + $0x120] sm:$0xf]
    %v3932 = vld [vmem:[#allocation32 + $0x124] sm:$0xf]
    %v3933 = vld [vmem:[#allocation32 + $0x128] sm:$0xf]
    %v3934 = vld [vmem:[#allocation32 + $0x12c] sm:$0xf]
    %v3935 = vld [vmem:[#allocation32 + $0x130] sm:$0xf]
    %v3936 = vld [vmem:[#allocation32 + $0x134] sm:$0xf]
    %v3937 = vld [vmem:[#allocation32 + $0x138] sm:$0xf]
    %v3938 = vld [vmem:[#allocation32 + $0x13c] sm:$0xf]
    %v3939 = vld [vmem:[#allocation32 + $0x140] sm:$0xf]
    %v3940 = vld [vmem:[#allocation32 + $0x144] sm:$0xf]
    %v3941 = vld [vmem:[#allocation32 + $0x148] sm:$0xf]
    %v3942 = vld [vmem:[#allocation32 + $0x14c] sm:$0xf]
    %v3943 = vld [vmem:[#allocation32 + $0x150] sm:$0xf]
    %v3944 = vld [vmem:[#allocation32 + $0x154] sm:$0xf]
    %v3945 = vld [vmem:[#allocation32 + $0x158] sm:$0xf]
    %v3946 = vld [vmem:[#allocation32 + $0x15c] sm:$0xf]
    %v3947 = vld [vmem:[#allocation32 + $0x160] sm:$0xf]
    %v3948 = vld [vmem:[#allocation32 + $0x164] sm:$0xf]
    %v3949 = vld [vmem:[#allocation32 + $0x168] sm:$0xf]
    %v3950 = vld [vmem:[#allocation32 + $0x16c] sm:$0xf]
    %v3951 = vld [vmem:[#allocation32 + $0x170] sm:$0xf]
    %v3952 = vld [vmem:[#allocation32 + $0x174] sm:$0xf]
    %v3953 = vld [vmem:[#allocation32 + $0x178] sm:$0xf]
    %v3954 = vld [vmem:[#allocation32 + $0x17c] sm:$0xf]
    %v3955 = vld [vmem:[#allocation32 + $0x180] sm:$0xf]
    %v3956 = vld [vmem:[#allocation32 + $0x184] sm:$0xf]
    %v3957 = vld [vmem:[#allocation32 + $0x188] sm:$0xf]
    %v3958 = vld [vmem:[#allocation32 + $0x18c] sm:$0xf]
    %v3959 = vld [vmem:[#allocation32 + $0x190] sm:$0xf]
    %v3960 = vld [vmem:[#allocation32 + $0x194] sm:$0xf]
    %v3961 = vld [vmem:[#allocation32 + $0x198] sm:$0xf]
    %v3962 = vld [vmem:[#allocation32 + $0x19c] sm:$0xf]
    %v3963 = vld [vmem:[#allocation32 + $0x1a0] sm:$0xf]
    %v3964 = vld [vmem:[#allocation32 + $0x1a4] sm:$0xf]
    %v3965 = vld [vmem:[#allocation32 + $0x1a8] sm:$0xf]
    %v3966 = vld [vmem:[#allocation32 + $0x1ac] sm:$0xf]
    %v3967 = vld [vmem:[#allocation32 + $0x1b0] sm:$0xf]
    %v3968 = vld [vmem:[#allocation32 + $0x1b4] sm:$0xf]
    %v3969 = vld [vmem:[#allocation32 + $0x1b8] sm:$0xf]
    %v3970 = vld [vmem:[#allocation32 + $0x1bc] sm:$0xf]
    %v3971 = vld [vmem:[#allocation32 + $0x1c0] sm:$0xf]
    %v3972 = vld [vmem:[#allocation32 + $0x1c4] sm:$0xf]
    %v3973 = vld [vmem:[#allocation32 + $0x1c8] sm:$0xf]
    %v3974 = vld [vmem:[#allocation32 + $0x1cc] sm:$0xf]
    %v3975 = vld [vmem:[#allocation32 + $0x1d0] sm:$0xf]
    %v3976 = vld [vmem:[#allocation32 + $0x1d4] sm:$0xf]
    %v3977 = vld [vmem:[#allocation32 + $0x1d8] sm:$0xf]
    %v3978 = vld [vmem:[#allocation32 + $0x1dc] sm:$0xf]
    %v3979 = vld [vmem:[#allocation32 + $0x1e0] sm:$0xf]
    %v3980 = vld [vmem:[#allocation32 + $0x1e4] sm:$0xf]
    %v3981 = vld [vmem:[#allocation32 + $0x1e8] sm:$0xf]
    %v3982 = vld [vmem:[#allocation32 + $0x1ec] sm:$0xf]
    %v3983 = vld [vmem:[#allocation32 + $0x1f0] sm:$0xf]
    %v3984 = vld [vmem:[#allocation32 + $0x1f4] sm:$0xf]
    %v3985 = vld [vmem:[#allocation32 + $0x1f8] sm:$0xf]
    %v3986 = vld [vmem:[#allocation32 + $0x1fc] sm:$0xf]
    %v3987 = vld [vmem:[#allocation34] sm:$0x1]
    %v3989 = vlaneseq
    %v3990 = vshrl.u32 %v3989, 7
    %v3991 = vsub.s32 0, %v3990
    %v3992 = vrot.slane %v3987, %v3991
    %v4122 = vunpack.c.l.b16 %v3859
    %v4123 = vunpack.c.l.b16 %v3860
    %v4124 = vunpack.c.l.b16 %v3861
    %v4125 = vunpack.c.l.b16 %v3862
    %v4126 = vunpack.c.l.b16 %v3863
    %v4127 = vunpack.c.l.b16 %v3864
    %v4128 = vunpack.c.l.b16 %v3865
    %v4129 = vunpack.c.l.b16 %v3866
    %v4130 = vunpack.c.l.b16 %v3867
    %v4131 = vunpack.c.l.b16 %v3868
    %v4132 = vunpack.c.l.b16 %v3869
    %v4133 = vunpack.c.l.b16 %v3870
    %v4134 = vunpack.c.l.b16 %v3871
    %v4135 = vunpack.c.l.b16 %v3872
    %v4136 = vunpack.c.l.b16 %v3873
    %v4137 = vunpack.c.l.b16 %v3874
    %v4138 = vunpack.c.l.b16 %v3875
    %v4139 = vunpack.c.l.b16 %v3876
    %v4140 = vunpack.c.l.b16 %v3877
    %v4141 = vunpack.c.l.b16 %v3878
    %v4142 = vunpack.c.l.b16 %v3879
    %v4143 = vunpack.c.l.b16 %v3880
    %v4144 = vunpack.c.l.b16 %v3881
    %v4145 = vunpack.c.l.b16 %v3882
    %v4146 = vunpack.c.l.b16 %v3883
    %v4147 = vunpack.c.l.b16 %v3884
    %v4148 = vunpack.c.l.b16 %v3885
    %v4149 = vunpack.c.l.b16 %v3886
    %v4150 = vunpack.c.l.b16 %v3887
    %v4151 = vunpack.c.l.b16 %v3888
    %v4152 = vunpack.c.l.b16 %v3889
    %v4153 = vunpack.c.l.b16 %v3890
    %v4154 = vunpack.c.l.b16 %v3891
    %v4155 = vunpack.c.l.b16 %v3892
    %v4156 = vunpack.c.l.b16 %v3893
    %v4157 = vunpack.c.l.b16 %v3894
    %v4158 = vunpack.c.l.b16 %v3895
    %v4159 = vunpack.c.l.b16 %v3896
    %v4160 = vunpack.c.l.b16 %v3897
    %v4161 = vunpack.c.l.b16 %v3898
    %v4162 = vunpack.c.l.b16 %v3899
    %v4163 = vunpack.c.l.b16 %v3900
    %v4164 = vunpack.c.l.b16 %v3901
    %v4165 = vunpack.c.l.b16 %v3902
    %v4166 = vunpack.c.l.b16 %v3903
    %v4167 = vunpack.c.l.b16 %v3904
    %v4168 = vunpack.c.l.b16 %v3905
    %v4169 = vunpack.c.l.b16 %v3906
    %v4170 = vunpack.c.l.b16 %v3907
    %v4171 = vunpack.c.l.b16 %v3908
    %v4172 = vunpack.c.l.b16 %v3909
    %v4173 = vunpack.c.l.b16 %v3910
    %v4174 = vunpack.c.l.b16 %v3911
    %v4175 = vunpack.c.l.b16 %v3912
    %v4176 = vunpack.c.l.b16 %v3913
    %v4177 = vunpack.c.l.b16 %v3914
    %v4178 = vunpack.c.l.b16 %v3915
    %v4179 = vunpack.c.l.b16 %v3916
    %v4180 = vunpack.c.l.b16 %v3917
    %v4181 = vunpack.c.l.b16 %v3918
    %v4182 = vunpack.c.l.b16 %v3919
    %v4183 = vunpack.c.l.b16 %v3920
    %v4184 = vunpack.c.l.b16 %v3921
    %v4185 = vunpack.c.l.b16 %v3922
    %v4186 = vunpack.c.l.b16 %v3923
    %v4187 = vunpack.c.l.b16 %v3924
    %v4188 = vunpack.c.l.b16 %v3925
    %v4189 = vunpack.c.l.b16 %v3926
    %v4190 = vunpack.c.l.b16 %v3927
    %v4191 = vunpack.c.l.b16 %v3928
    %v4192 = vunpack.c.l.b16 %v3929
    %v4193 = vunpack.c.l.b16 %v3930
    %v4194 = vunpack.c.l.b16 %v3931
    %v4195 = vunpack.c.l.b16 %v3932
    %v4196 = vunpack.c.l.b16 %v3933
    %v4197 = vunpack.c.l.b16 %v3934
    %v4198 = vunpack.c.l.b16 %v3935
    %v4199 = vunpack.c.l.b16 %v3936
    %v4200 = vunpack.c.l.b16 %v3937
    %v4201 = vunpack.c.l.b16 %v3938
    %v4202 = vunpack.c.l.b16 %v3939
    %v4203 = vunpack.c.l.b16 %v3940
    %v4204 = vunpack.c.l.b16 %v3941
    %v4205 = vunpack.c.l.b16 %v3942
    %v4206 = vunpack.c.l.b16 %v3943
    %v4207 = vunpack.c.l.b16 %v3944
    %v4208 = vunpack.c.l.b16 %v3945
    %v4209 = vunpack.c.l.b16 %v3946
    %v4210 = vunpack.c.l.b16 %v3947
    %v4211 = vunpack.c.l.b16 %v3948
    %v4212 = vunpack.c.l.b16 %v3949
    %v4213 = vunpack.c.l.b16 %v3950
    %v4214 = vunpack.c.l.b16 %v3951
    %v4215 = vunpack.c.l.b16 %v3952
    %v4216 = vunpack.c.l.b16 %v3953
    %v4217 = vunpack.c.l.b16 %v3954
    %v4218 = vunpack.c.l.b16 %v3955
    %v4219 = vunpack.c.l.b16 %v3956
    %v4220 = vunpack.c.l.b16 %v3957
    %v4221 = vunpack.c.l.b16 %v3958
    %v4222 = vunpack.c.l.b16 %v3959
    %v4223 = vunpack.c.l.b16 %v3960
    %v4224 = vunpack.c.l.b16 %v3961
    %v4225 = vunpack.c.l.b16 %v3962
    %v4226 = vunpack.c.l.b16 %v3963
    %v4227 = vunpack.c.l.b16 %v3964
    %v4228 = vunpack.c.l.b16 %v3965
    %v4229 = vunpack.c.l.b16 %v3966
    %v4230 = vunpack.c.l.b16 %v3967
    %v4231 = vunpack.c.l.b16 %v3968
    %v4232 = vunpack.c.l.b16 %v3969
    %v4233 = vunpack.c.l.b16 %v3970
    %v4234 = vunpack.c.l.b16 %v3971
    %v4235 = vunpack.c.l.b16 %v3972
    %v4236 = vunpack.c.l.b16 %v3973
    %v4237 = vunpack.c.l.b16 %v3974
    %v4238 = vunpack.c.l.b16 %v3975
    %v4239 = vunpack.c.l.b16 %v3976
    %v4240 = vunpack.c.l.b16 %v3977
    %v4241 = vunpack.c.l.b16 %v3978
    %v4242 = vunpack.c.l.b16 %v3979
    %v4243 = vunpack.c.l.b16 %v3980
    %v4244 = vunpack.c.l.b16 %v3981
    %v4245 = vunpack.c.l.b16 %v3982
    %v4246 = vunpack.c.l.b16 %v3983
    %v4247 = vunpack.c.l.b16 %v3984
    %v4248 = vunpack.c.l.b16 %v3985
    %v4249 = vunpack.c.l.b16 %v3986
    %v4250 = vpack.c.b16 %v4123, %v4122
    %v4251 = vpack.c.b16 %v4125, %v4124
    %v4252 = vpack.c.b16 %v4127, %v4126
    %v4253 = vpack.c.b16 %v4129, %v4128
    %v4254 = vpack.c.b16 %v4131, %v4130
    %v4255 = vpack.c.b16 %v4133, %v4132
    %v4256 = vpack.c.b16 %v4135, %v4134
    %v4257 = vpack.c.b16 %v4137, %v4136
    %v4258 = vpack.c.b16 %v4139, %v4138
    %v4259 = vpack.c.b16 %v4141, %v4140
    %v4260 = vpack.c.b16 %v4143, %v4142
    %v4261 = vpack.c.b16 %v4145, %v4144
    %v4262 = vpack.c.b16 %v4147, %v4146
    %v4263 = vpack.c.b16 %v4149, %v4148
    %v4264 = vpack.c.b16 %v4151, %v4150
    %v4265 = vpack.c.b16 %v4153, %v4152
    %v4266 = vpack.c.b16 %v4155, %v4154
    %v4267 = vpack.c.b16 %v4157, %v4156
    %v4268 = vpack.c.b16 %v4159, %v4158
    %v4269 = vpack.c.b16 %v4161, %v4160
    %v4270 = vpack.c.b16 %v4163, %v4162
    %v4271 = vpack.c.b16 %v4165, %v4164
    %v4272 = vpack.c.b16 %v4167, %v4166
    %v4273 = vpack.c.b16 %v4169, %v4168
    %v4274 = vpack.c.b16 %v4171, %v4170
    %v4275 = vpack.c.b16 %v4173, %v4172
    %v4276 = vpack.c.b16 %v4175, %v4174
    %v4277 = vpack.c.b16 %v4177, %v4176
    %v4278 = vpack.c.b16 %v4179, %v4178
    %v4279 = vpack.c.b16 %v4181, %v4180
    %v4280 = vpack.c.b16 %v4183, %v4182
    %v4281 = vpack.c.b16 %v4185, %v4184
    %v4282 = vpack.c.b16 %v4187, %v4186
    %v4283 = vpack.c.b16 %v4189, %v4188
    %v4284 = vpack.c.b16 %v4191, %v4190
    %v4285 = vpack.c.b16 %v4193, %v4192
    %v4286 = vpack.c.b16 %v4195, %v4194
    %v4287 = vpack.c.b16 %v4197, %v4196
    %v4288 = vpack.c.b16 %v4199, %v4198
    %v4289 = vpack.c.b16 %v4201, %v4200
    %v4290 = vpack.c.b16 %v4203, %v4202
    %v4291 = vpack.c.b16 %v4205, %v4204
    %v4292 = vpack.c.b16 %v4207, %v4206
    %v4293 = vpack.c.b16 %v4209, %v4208
    %v4294 = vpack.c.b16 %v4211, %v4210
    %v4295 = vpack.c.b16 %v4213, %v4212
    %v4296 = vpack.c.b16 %v4215, %v4214
    %v4297 = vpack.c.b16 %v4217, %v4216
    %v4298 = vpack.c.b16 %v4219, %v4218
    %v4299 = vpack.c.b16 %v4221, %v4220
    %v4300 = vpack.c.b16 %v4223, %v4222
    %v4301 = vpack.c.b16 %v4225, %v4224
    %v4302 = vpack.c.b16 %v4227, %v4226
    %v4303 = vpack.c.b16 %v4229, %v4228
    %v4304 = vpack.c.b16 %v4231, %v4230
    %v4305 = vpack.c.b16 %v4233, %v4232
    %v4306 = vpack.c.b16 %v4235, %v4234
    %v4307 = vpack.c.b16 %v4237, %v4236
    %v4308 = vpack.c.b16 %v4239, %v4238
    %v4309 = vpack.c.b16 %v4241, %v4240
    %v4310 = vpack.c.b16 %v4243, %v4242
    %v4311 = vpack.c.b16 %v4245, %v4244
    %v4312 = vpack.c.b16 %v4247, %v4246
    %v4313 = vpack.c.b16 %v4249, %v4248
    %4378 = vmatprep.subr.bf16.mxu0 0
    %4379 = vmatpush1.bf16.msra.mxu0 %v4250
    %4380 = vmatprep.subr.bf16.mxu0 0
    %4381 = vmatpush1.bf16.msra.mxu0 %v4251
    %4382 = vmatprep.subr.bf16.mxu0 0
    %4383 = vmatpush1.bf16.msra.mxu0 %v4252
    %4384 = vmatprep.subr.bf16.mxu0 0
    %4385 = vmatpush1.bf16.msra.mxu0 %v4253
    %4386 = vmatprep.subr.bf16.mxu0 0
    %4387 = vmatpush1.bf16.msra.mxu0 %v4254
    %4388 = vmatprep.subr.bf16.mxu0 0
    %4389 = vmatpush1.bf16.msra.mxu0 %v4255
    %4390 = vmatprep.subr.bf16.mxu0 0
    %4391 = vmatpush1.bf16.msra.mxu0 %v4256
    %4392 = vmatprep.subr.bf16.mxu0 0
    %4393 = vmatpush1.bf16.msra.mxu0 %v4257
    %4394 = vmatprep.subr.bf16.mxu0 0
    %4395 = vmatpush1.bf16.msra.mxu0 %v4258
    %4396 = vmatprep.subr.bf16.mxu0 0
    %4397 = vmatpush1.bf16.msra.mxu0 %v4259
    %4398 = vmatprep.subr.bf16.mxu0 0
    %4399 = vmatpush1.bf16.msra.mxu0 %v4260
    %4400 = vmatprep.subr.bf16.mxu0 0
    %4401 = vmatpush1.bf16.msra.mxu0 %v4261
    %4402 = vmatprep.subr.bf16.mxu0 0
    %4403 = vmatpush1.bf16.msra.mxu0 %v4262
    %4404 = vmatprep.subr.bf16.mxu0 0
    %4405 = vmatpush1.bf16.msra.mxu0 %v4263
    %4406 = vmatprep.subr.bf16.mxu0 0
    %4407 = vmatpush1.bf16.msra.mxu0 %v4264
    %4408 = vmatprep.subr.bf16.mxu0 0
    %4409 = vmatpush1.bf16.msra.mxu0 %v4265
    %4410 = vmatprep.mubr.bf16.mxu0 %v3852
    %4411 = vmatmul.mubr.bf16.gmra.mrb[0].mxu0 %v3851
    %v4412 = vpop.f32.mrb[0].mxu0
    %v4413 = vadd.f32 %v3992, %v4412
    %v4414 = vpop.f32.mrb[0].mxu0
    %v4415 = vpop.f32.mrb[0].mxu0
    %v4416 = vpop.f32.mrb[0].mxu0
    %4417 = vdwg.mxu0
    %4418 = vmatprep.subr.bf16.mxu0 0
    %4419 = vmatpush1.bf16.msra.mxu0 %v4266
    %4420 = vmatprep.subr.bf16.mxu0 0
    %4421 = vmatpush1.bf16.msra.mxu0 %v4267
    %4422 = vmatprep.subr.bf16.mxu0 0
    %4423 = vmatpush1.bf16.msra.mxu0 %v4268
    %4424 = vmatprep.subr.bf16.mxu0 0
    %4425 = vmatpush1.bf16.msra.mxu0 %v4269
    %4426 = vmatprep.subr.bf16.mxu0 0
    %4427 = vmatpush1.bf16.msra.mxu0 %v4270
    %4428 = vmatprep.subr.bf16.mxu0 0
    %4429 = vmatpush1.bf16.msra.mxu0 %v4271
    %4430 = vmatprep.subr.bf16.mxu0 0
    %4431 = vmatpush1.bf16.msra.mxu0 %v4272
    %4432 = vmatprep.subr.bf16.mxu0 0
    %4433 = vmatpush1.bf16.msra.mxu0 %v4273
    %4434 = vmatprep.subr.bf16.mxu0 0
    %4435 = vmatpush1.bf16.msra.mxu0 %v4274
    %4436 = vmatprep.subr.bf16.mxu0 0
    %4437 = vmatpush1.bf16.msra.mxu0 %v4275
    %4438 = vmatprep.subr.bf16.mxu0 0
    %4439 = vmatpush1.bf16.msra.mxu0 %v4276
    %4440 = vmatprep.subr.bf16.mxu0 0
    %4441 = vmatpush1.bf16.msra.mxu0 %v4277
    %4442 = vmatprep.subr.bf16.mxu0 0
    %4443 = vmatpush1.bf16.msra.mxu0 %v4278
    %4444 = vmatprep.subr.bf16.mxu0 0
    %4445 = vmatpush1.bf16.msra.mxu0 %v4279
    %4446 = vmatprep.subr.bf16.mxu0 0
    %4447 = vmatpush1.bf16.msra.mxu0 %v4280
    %4448 = vmatprep.subr.bf16.mxu0 0
    %4449 = vmatpush1.bf16.msra.mxu0 %v4281
    %4450 = vmatprep.mubr.bf16.mxu0 %v3854
    %4451 = vmatmul.mubr.bf16.gmra.mrb[0].mxu0 %v3853
    %v4452 = vpop.f32.mrb[0].mxu0
    %v4453 = vadd.f32 %v4413, %v4452
    %v4454 = vpop.f32.mrb[0].mxu0
    %v4455 = vpop.f32.mrb[0].mxu0
    %v4456 = vpop.f32.mrb[0].mxu0
    %4457 = vdwg.mxu0
    %4458 = vmatprep.subr.bf16.mxu0 0
    %4459 = vmatpush1.bf16.msra.mxu0 %v4282
    %4460 = vmatprep.subr.bf16.mxu0 0
    %4461 = vmatpush1.bf16.msra.mxu0 %v4283
    %4462 = vmatprep.subr.bf16.mxu0 0
    %4463 = vmatpush1.bf16.msra.mxu0 %v4284
    %4464 = vmatprep.subr.bf16.mxu0 0
    %4465 = vmatpush1.bf16.msra.mxu0 %v4285
    %4466 = vmatprep.subr.bf16.mxu0 0
    %4467 = vmatpush1.bf16.msra.mxu0 %v4286
    %4468 = vmatprep.subr.bf16.mxu0 0
    %4469 = vmatpush1.bf16.msra.mxu0 %v4287
    %4470 = vmatprep.subr.bf16.mxu0 0
    %4471 = vmatpush1.bf16.msra.mxu0 %v4288
    %4472 = vmatprep.subr.bf16.mxu0 0
    %4473 = vmatpush1.bf16.msra.mxu0 %v4289
    %4474 = vmatprep.subr.bf16.mxu0 0
    %4475 = vmatpush1.bf16.msra.mxu0 %v4290
    %4476 = vmatprep.subr.bf16.mxu0 0
    %4477 = vmatpush1.bf16.msra.mxu0 %v4291
    %4478 = vmatprep.subr.bf16.mxu0 0
    %4479 = vmatpush1.bf16.msra.mxu0 %v4292
    %4480 = vmatprep.subr.bf16.mxu0 0
    %4481 = vmatpush1.bf16.msra.mxu0 %v4293
    %4482 = vmatprep.subr.bf16.mxu0 0
    %4483 = vmatpush1.bf16.msra.mxu0 %v4294
    %4484 = vmatprep.subr.bf16.mxu0 0
    %4485 = vmatpush1.bf16.msra.mxu0 %v4295
    %4486 = vmatprep.subr.bf16.mxu0 0
    %4487 = vmatpush1.bf16.msra.mxu0 %v4296
    %4488 = vmatprep.subr.bf16.mxu0 0
    %4489 = vmatpush1.bf16.msra.mxu0 %v4297
    %4490 = vmatprep.mubr.bf16.mxu0 %v3856
    %4491 = vmatmul.mubr.bf16.gmra.mrb[0].mxu0 %v3855
    %v4492 = vpop.f32.mrb[0].mxu0
    %v4493 = vadd.f32 %v4453, %v4492
    %v4494 = vpop.f32.mrb[0].mxu0
    %v4495 = vpop.f32.mrb[0].mxu0
    %v4496 = vpop.f32.mrb[0].mxu0
    %4497 = vdwg.mxu0
    %4498 = vmatprep.subr.bf16.mxu0 0
    %4499 = vmatpush1.bf16.msra.mxu0 %v4298
    %4500 = vmatprep.subr.bf16.mxu0 0
    %4501 = vmatpush1.bf16.msra.mxu0 %v4299
    %4502 = vmatprep.subr.bf16.mxu0 0
    %4503 = vmatpush1.bf16.msra.mxu0 %v4300
    %4504 = vmatprep.subr.bf16.mxu0 0
    %4505 = vmatpush1.bf16.msra.mxu0 %v4301
    %4506 = vmatprep.subr.bf16.mxu0 0
    %4507 = vmatpush1.bf16.msra.mxu0 %v4302
    %4508 = vmatprep.subr.bf16.mxu0 0
    %4509 = vmatpush1.bf16.msra.mxu0 %v4303
    %4510 = vmatprep.subr.bf16.mxu0 0
    %4511 = vmatpush1.bf16.msra.mxu0 %v4304
    %4512 = vmatprep.subr.bf16.mxu0 0
    %4513 = vmatpush1.bf16.msra.mxu0 %v4305
    %4514 = vmatprep.subr.bf16.mxu0 0
    %4515 = vmatpush1.bf16.msra.mxu0 %v4306
    %4516 = vmatprep.subr.bf16.mxu0 0
    %4517 = vmatpush1.bf16.msra.mxu0 %v4307
    %4518 = vmatprep.subr.bf16.mxu0 0
    %4519 = vmatpush1.bf16.msra.mxu0 %v4308
    %4520 = vmatprep.subr.bf16.mxu0 0
    %4521 = vmatpush1.bf16.msra.mxu0 %v4309
    %4522 = vmatprep.subr.bf16.mxu0 0
    %4523 = vmatpush1.bf16.msra.mxu0 %v4310
    %4524 = vmatprep.subr.bf16.mxu0 0
    %4525 = vmatpush1.bf16.msra.mxu0 %v4311
    %4526 = vmatprep.subr.bf16.mxu0 0
    %4527 = vmatpush1.bf16.msra.mxu0 %v4312
    %4528 = vmatprep.subr.bf16.mxu0 0
    %4529 = vmatpush1.bf16.msra.mxu0 %v4313
    %4530 = vmatprep.mubr.bf16.mxu0 %v3858
    %4531 = vmatmul.mubr.bf16.gmra.mrb[0].mxu0 %v3857
    %v4532 = vpop.f32.mrb[0].mxu0
    %v4533 = vadd.f32 %v4493, %v4532
    %v4534 = vpop.f32.mrb[0].mxu0
    %v4535 = vpop.f32.mrb[0].mxu0
    %v4536 = vpop.f32.mrb[0].mxu0
    %4537 = vdwg.mxu0
    %4538 = vst [vmem:[#allocation36] sm:$0x3] %v4533
    // Predicated region
    $region170: #{mlp_mixer_forward.1} parent=1 // pred_check
      _
    $region171: #{mlp_mixer_forward.1} parent=1 // pred_check_branch
      %4540 = sbr.rel (0) target = $region173
    $region172: #{mlp_mixer_forward.1} parent=1 // pred_region
      %s4542 = ssub.s32 256, 256
      %4543 = vsyncadd [#allocation4], %s4542
      %s4545 = sshll.u32 [#allocation35], 4
      %s4546 = int_to_ptr.vmem [resolvable:$true] %s4545
      %4548 = dma.vmem_to_hbm [thread:$0]  %s4546, 256, %s21, [#allocation4]
    $region173: #{mlp_mixer_forward.1} parent=1 // pred_fallthru
      _
    // Predicated region
    $region174: #{mlp_mixer_forward.1} parent=1 // pred_check
      _
    $region175: #{mlp_mixer_forward.1} parent=1 // pred_check_branch
      %4550 = sbr.rel (0) target = $region177
    $region176: #{mlp_mixer_forward.1} parent=1 // pred_region
      %s4552 = ssub.s32 32, 32
      %4553 = vsyncadd [#allocation37], %s4552
      %s4555 = sshll.u32 [#allocation36], 4
      %s4556 = int_to_ptr.vmem [resolvable:$true] %s4555
      %4558 = dma.vmem_to_hbm [thread:$0]  %s4556, 32, %s22, [#allocation37]
    $region177: #{mlp_mixer_forward.1} parent=1 // pred_fallthru
      _
    // Predicated region
    $region178: #{mlp_mixer_forward.1} parent=1 // pred_check
      _
    $region179: #{mlp_mixer_forward.1} parent=1 // pred_check_branch
      %4560 = sbr.rel (0) target = $region181
    $region180: #{mlp_mixer_forward.1} parent=1 // pred_region
      %4561 = dma.done [#allocation4], 256
    $region181: #{mlp_mixer_forward.1} parent=1 // pred_fallthru
      _
    // Predicated region
    $region182: #{mlp_mixer_forward.1} parent=1 // pred_check
      _
    $region183: #{mlp_mixer_forward.1} parent=1 // pred_check_branch
      %4563 = sbr.rel (0) target = $region185
    $region184: #{mlp_mixer_forward.1} parent=1 // pred_region
      %4564 = dma.done [#allocation37], 32
    $region185: #{mlp_mixer_forward.1} parent=1 // pred_fallthru
      _
    %4565 = vsyncpa [#allocation3], 1
    %4566 = vsyncpa [#allocation6], 1
    %4567 = vsyncpa [#allocation9], 1
    %4568 = vsyncpa [#allocation12], 1
    %4569 = vsyncpa [#allocation15], 1
    %4570 = vsyncpa [#allocation18], 1
    %4571 = vsyncpa [#allocation21], 1
    %4572 = vsyncpa [#allocation24], 1
    %4573 = vsyncpa [#allocation27], 1
    %4574 = vsyncpa [#allocation30], 1
    %4575 = vsyncpa [#allocation33], 1
    %4576 = vsyncpa [#allocation4], 1
    %4577 = vsyncpa [#allocation37], 1

</llo_original>
